<compile_context>
chip_gen: v6e
topology: v6e:2x2x1
jax: 0.10.0
libtpu: 0.0.40
codegen_flags: <defaults>
</compile_context>

<pallas_src>
import math

import jax
import jax.numpy as jnp
from jax.experimental import pallas as pl
from jax.experimental.pallas import tpu as pltpu  # noqa: F401  (kept per convention)


def _round_up(n, m):
    return -(-n // m) * m


# -----------------------------------------------------------------------------
# Kernel
# -----------------------------------------------------------------------------
def _build_kernel(BL, layer_meta):
    """layer_meta: list of (row_offset, cin, cout, pad_cin) into the packed weights."""
    n_enc = 3

    def kernel(x_ref, w_ref, ops_ref, out_ref):
        # Row-space operators, loaded once (each (BL, BL) f32; BL=32 -> 4 KiB).
        s_m = ops_ref[0 * BL:1 * BL, :]   # (S_m @ t)[b, l] = t[b, (l-1) mod L]
        s_p = ops_ref[1 * BL:2 * BL, :]   # (S_p @ t)[b, l] = t[b, (l+1) mod L]
        r_b = ops_ref[2 * BL:3 * BL, :]   # block-diag of (Q @ P): pool + interp

        h = x_ref[...]                    # (B*L, Cin), batch folded, stays 2-D

        def cconv(h2, off, cin, cout, pad):
            # Packed layout per layer (all offsets 8-sublane aligned):
            #   row  off                  : bias (1, cout)
            #   rows off+8 + t*pad ..+cin : tap t weight (cin, cout), t = 0..2
            bias = w_ref[off:off + 1, :cout]
            w0 = w_ref[off + 8 + 0 * pad: off + 8 + 0 * pad + cin, :cout]
            w1 = w_ref[off + 8 + 1 * pad: off + 8 + 1 * pad + cin, :cout]
            w2 = w_ref[off + 8 + 2 * pad: off + 8 + 2 * pad + cin, :cout]
            # Three small MXU pushes instead of one lane-concatenated im2col.
            t0 = jnp.dot(h2, w0, preferred_element_type=jnp.float32)
            t1 = jnp.dot(h2, w1, preferred_element_type=jnp.float32)
            t2 = jnp.dot(h2, w2, preferred_element_type=jnp.float32)
            # Circular shifts of the tap outputs as exact row-permutation
            # matmuls (MXU idle -> ~free; no sublane shuffles, no 3-D reshape).
            return (jnp.dot(s_m, t0, preferred_element_type=jnp.float32)
                    + t1
                    + jnp.dot(s_p, t2, preferred_element_type=jnp.float32)
                    + bias)

        # ---------------- encoder: (conv -> relu) x 3 ----------------
        for off, cin, cout, pad in layer_meta[:n_enc]:
            h = jnp.maximum(cconv(h, off, cin, cout, pad), 0.0)

        # ---- AdaptiveAvgPool1d + linear interp, fused & batched: h = R_blk @ h ----
        h = jnp.dot(r_b, h, preferred_element_type=jnp.float32)

        # ---------------- decoder: conv+relu, conv+relu, conv ----------------
        dec = layer_meta[n_enc:]
        for li, (off, cin, cout, pad) in enumerate(dec):
            o = cconv(h, off, cin, cout, pad)
            h = o if li == len(dec) - 1 else jnp.maximum(o, 0.0)

        out_ref[...] = h.astype(out_ref.dtype)   # lane layout: (B*L, Cout) slab

    return kernel


# -----------------------------------------------------------------------------
# One-time host-side packing (hoisted out of the per-call path)
# -----------------------------------------------------------------------------
def _pack_params(params):
    """Pack all layers' tap weights + bias into one f32 matrix.

    Returns (packed, meta); meta = [(row_offset, cin, cout, pad_cin), ...].
    Each tap block is padded to an 8-sublane boundary so in-kernel slices stay
    aligned; lane width = max cout (32) to keep DMA bytes minimal.
    """
    lane_w = max(int(w.shape[2]) for (w, _b) in params)
    blocks, meta, off = [], [], 0
    for (w, b) in params:
        k, cin, cout = (int(d) for d in w.shape)          # (3, cin, cout)
        pad = _round_up(cin, 8)
        rows = 8 + k * pad
        blk = jnp.zeros((rows, lane_w), jnp.float32)
        blk = blk.at[0:1, :cout].set(b)
        for t in range(k):
            blk = blk.at[8 + t * pad: 8 + t * pad + cin, :cout].set(w[t])
        blocks.append(blk)
        meta.append((off, cin, cout, pad))
        off += rows
    return jnp.concatenate(blocks, axis=0), meta


def _build_row_operators(P, Q, B, L):
    """Stack [S_minus; S_plus; R_blk] as one (3*B*L, B*L) f32 operand."""
    # Fused pool+interp operator R = Q @ P.  Fine while L*L*4B << VMEM; on v7x
    # at large L keep P and Q factored (two skinny matmuls) instead.
    R = jnp.dot(Q.astype(jnp.float32), P.astype(jnp.float32))       # (L, L)
    eye_b = jnp.eye(B, dtype=jnp.float32)
    eye_l = jnp.eye(L, dtype=jnp.float32)
    s_m = jnp.roll(eye_l, -1, axis=1)      # (s_m @ t)[l] = t[(l-1) mod L]
    s_p = jnp.roll(eye_l, 1, axis=1)       # (s_p @ t)[l] = t[(l+1) mod L]
    return jnp.concatenate(
        [jnp.kron(eye_b, s_m), jnp.kron(eye_b, s_p), jnp.kron(eye_b, R)],
        axis=0)


def make_forward(params, P, Q, B, L):
    """Build a jitted forward(x) closing over pre-packed device operands."""
    BL = B * L
    wpack, meta = _pack_params(params)
    ops = _build_row_operators(P, Q, B, L)
    cin0 = meta[0][1]
    cout_last = meta[-1][2]

    kernel = _build_kernel(BL, meta)
    # Grid-less call: whole problem is one VMEM-resident block (default
    # full-array specs) -> no per-grid-step overhead, no cross-TC split of a
    # microsecond-scale workload.  Switch point: add a batch-parallel grid
    # axis for v7x's 2 TensorCores once B*L grows.
    call = pl.pallas_call(
        kernel,
        out_shape=jax.ShapeDtypeStruct((BL, cout_last), jnp.float32),
    )

    @jax.jit
    def forward(x):
        # (B, L, C) <-> (B*L, C) reshapes are free XLA bitcasts on contiguous data.
        h = call(x.reshape(BL, cin0), wpack, ops)
        return h.reshape(B, L, cout_last)

    return forward


# -----------------------------------------------------------------------------
# Parameter / matrix construction (deterministic, in-script)
# -----------------------------------------------------------------------------
def _conv_params(key, cin, cout, k=3):
    kw, kb = jax.random.split(key)
    bound = 1.0 / math.sqrt(cin * k)
    # stored tap-major: (k, cin, cout)  (PyTorch stores (cout, cin, k))
    w = jax.random.uniform(kw, (k, cin, cout), jnp.float32, -bound, bound)
    b = jax.random.uniform(kb, (1, cout), jnp.float32, -bound, bound)
    return w, b


def make_params(key, in_channels, latent_channels):
    keys = jax.random.split(key, 6)
    return (
        _conv_params(keys[0], in_channels, 16),
        _conv_params(keys[1], 16, 32),
        _conv_params(keys[2], 32, latent_channels),
        _conv_params(keys[3], latent_channels, 32),
        _conv_params(keys[4], 32, 16),
        _conv_params(keys[5], 16, in_channels),
    )


def make_adaptive_avgpool_matrix(L_in, L_out):
    """AdaptiveAvgPool1d(L_out) on a length-L_in input, as an (L_out, L_in) matrix."""
    rows = []
    for i in range(L_out):
        start = (i * L_in) // L_out
        end = -(-((i + 1) * L_in) // L_out)  # ceil
        row = [0.0] * L_in
        inv = 1.0 / (end - start)
        for j in range(start, end):
            row[j] = inv
        rows.append(row)
    return jnp.array(rows, dtype=jnp.float32)


def make_linear_interp_matrix(L_in, L_out):
    """F.interpolate(mode='linear', align_corners=True) L_in -> L_out, as (L_out, L_in)."""
    rows = []
    for j in range(L_out):
        pos = 0.0 if L_out == 1 else j * (L_in - 1) / (L_out - 1)
        lo = int(math.floor(pos))
        hi = min(lo + 1, L_in - 1)
        frac = pos - lo
        row = [0.0] * L_in
        row[lo] += 1.0 - frac
        row[hi] += frac
        rows.append(row)
    return jnp.array(rows, dtype=jnp.float32)


# -----------------------------------------------------------------------------
# Pure-JAX reference (same math, no Pallas) for a correctness check
# -----------------------------------------------------------------------------
def ref_forward(x, params, P, Q):
    L = x.shape[1]

    def cconv(h, w, b):
        hp = jnp.concatenate([h[:, L - 1:L, :], h, h[:, 0:1, :]], axis=1)
        return (hp[:, 0:L] @ w[0] + hp[:, 1:L + 1] @ w[1]
                + hp[:, 2:L + 2] @ w[2]) + b

    (w1, b1), (w2, b2), (w3, b3), (w4, b4), (w5, b5), (w6, b6) = params
    h = jax.nn.relu(cconv(x, w1, b1))
    h = jax.nn.relu(cconv(h, w2, b2))
    z = jax.nn.relu(cconv(h, w3, b3))
    zp = jnp.einsum('pl,blc->bpc', P, z)
    zi = jnp.einsum('lp,bpc->blc', Q, zp)
    d = jax.nn.relu(cconv(zi, w4, b4))
    d = jax.nn.relu(cconv(d, w5, b5))
    return cconv(d, w6, b6)


# -----------------------------------------------------------------------------
# Main
# -----------------------------------------------------------------------------
if __name__ == "__main__":
    B = 2            # batch
    L = 16           # scan length (sequence)
    in_channels = 2
    latent_channels = 2
    latent_length = 8

    key = jax.random.PRNGKey(0)
    kx, kp = jax.random.split(key)
    x = jax.random.normal(kx, (B, L, in_channels), dtype=jnp.float32)

    params = make_params(kp, in_channels, latent_channels)
    P = make_adaptive_avgpool_matrix(L, latent_length)   # (latent_length, L)
    Q = make_linear_interp_matrix(latent_length, L)      # (L, latent_length)

    # Weight packing + operator construction happen ONCE here, not per call.
    forward = make_forward(params, P, Q, B, L)

    out = jax.block_until_ready(forward(x))

    ref = ref_forward(x, params, P, Q)
    assert out.shape == (B, L, in_channels)
    assert jnp.allclose(out, ref, atol=1e-4, rtol=1e-4), "mismatch vs reference"

    print("KERNEL_OK")
</pallas_src>

<mosaic_0001>
module attributes {stable_mosaic.version = 11 : i64} {
  func.func @kernel(%arg0: memref<32x2xf32, #tpu.memory_space<vmem>>, %arg1: memref<384x32xf32, #tpu.memory_space<vmem>>, %arg2: memref<96x32xf32, #tpu.memory_space<vmem>>, %arg3: memref<32x2xf32, #tpu.memory_space<vmem>>) attributes {dimension_semantics = [], scalar_prefetch = 0 : i64, scratch_operands = 0 : i64, tpu.core_type = #tpu.core_type<tc>} {
    %c0 = arith.constant 0 : index
    %c0_0 = arith.constant 0 : index
    %0 = vector.load %arg2[%c0, %c0_0] : memref<96x32xf32, #tpu.memory_space<vmem>>, vector<32x32xf32>
    %c32 = arith.constant 32 : index
    %c0_1 = arith.constant 0 : index
    %1 = vector.load %arg2[%c32, %c0_1] : memref<96x32xf32, #tpu.memory_space<vmem>>, vector<32x32xf32>
    %c64 = arith.constant 64 : index
    %c0_2 = arith.constant 0 : index
    %2 = vector.load %arg2[%c64, %c0_2] : memref<96x32xf32, #tpu.memory_space<vmem>>, vector<32x32xf32>
    %c0_3 = arith.constant 0 : index
    %c0_4 = arith.constant 0 : index
    %3 = vector.load %arg0[%c0_3, %c0_4] : memref<32x2xf32, #tpu.memory_space<vmem>>, vector<32x2xf32>
    %c0_5 = arith.constant 0 : index
    %c0_6 = arith.constant 0 : index
    %4 = vector.load %arg1[%c0_5, %c0_6] : memref<384x32xf32, #tpu.memory_space<vmem>>, vector<1x16xf32>
    %c8 = arith.constant 8 : index
    %c0_7 = arith.constant 0 : index
    %5 = vector.load %arg1[%c8, %c0_7] : memref<384x32xf32, #tpu.memory_space<vmem>>, vector<2x16xf32>
    %c16 = arith.constant 16 : index
    %c0_8 = arith.constant 0 : index
    %6 = vector.load %arg1[%c16, %c0_8] : memref<384x32xf32, #tpu.memory_space<vmem>>, vector<2x16xf32>
    %c24 = arith.constant 24 : index
    %c0_9 = arith.constant 0 : index
    %7 = vector.load %arg1[%c24, %c0_9] : memref<384x32xf32, #tpu.memory_space<vmem>>, vector<2x16xf32>
    %cst = arith.constant dense<0.000000e+00> : vector<32x16xf32>
    %8 = tpu.matmul %3, %5, %cst {dimension_numbers = #tpu.dot_dimension_numbers<[1], [0], [0], [1], [0, 0, 1, 1], [], []>} : vector<32x2xf32>, vector<2x16xf32>, vector<32x16xf32> -> vector<32x16xf32>
    %cst_10 = arith.constant dense<0.000000e+00> : vector<32x16xf32>
    %9 = tpu.matmul %3, %6, %cst_10 {dimension_numbers = #tpu.dot_dimension_numbers<[1], [0], [0], [1], [0, 0, 1, 1], [], []>} : vector<32x2xf32>, vector<2x16xf32>, vector<32x16xf32> -> vector<32x16xf32>
    %cst_11 = arith.constant dense<0.000000e+00> : vector<32x16xf32>
    %10 = tpu.matmul %3, %7, %cst_11 {dimension_numbers = #tpu.dot_dimension_numbers<[1], [0], [0], [1], [0, 0, 1, 1], [], []>} : vector<32x2xf32>, vector<2x16xf32>, vector<32x16xf32> -> vector<32x16xf32>
    %cst_12 = arith.constant dense<0.000000e+00> : vector<32x16xf32>
    %11 = tpu.matmul %0, %8, %cst_12 {dimension_numbers = #tpu.dot_dimension_numbers<[1], [0], [0], [1], [0, 0, 1, 1], [], []>} : vector<32x32xf32>, vector<32x16xf32>, vector<32x16xf32> -> vector<32x16xf32>
    %12 = arith.addf %11, %9 : vector<32x16xf32>
    %cst_13 = arith.constant dense<0.000000e+00> : vector<32x16xf32>
    %13 = tpu.matmul %1, %10, %cst_13 {dimension_numbers = #tpu.dot_dimension_numbers<[1], [0], [0], [1], [0, 0, 1, 1], [], []>} : vector<32x32xf32>, vector<32x16xf32>, vector<32x16xf32> -> vector<32x16xf32>
    %14 = arith.addf %12, %13 : vector<32x16xf32>
    %15 = vector.broadcast %4 : vector<1x16xf32> to vector<32x16xf32>
    %16 = arith.addf %14, %15 : vector<32x16xf32>
    %cst_14 = arith.constant 0.000000e+00 : f32
    %17 = vector.broadcast %cst_14 : f32 to vector<32x16xf32>
    %18 = arith.maximumf %16, %17 : vector<32x16xf32>
    %c32_15 = arith.constant 32 : index
    %c0_16 = arith.constant 0 : index
    %19 = vector.load %arg1[%c32_15, %c0_16] : memref<384x32xf32, #tpu.memory_space<vmem>>, vector<1x32xf32>
    %c40 = arith.constant 40 : index
    %c0_17 = arith.constant 0 : index
    %20 = vector.load %arg1[%c40, %c0_17] : memref<384x32xf32, #tpu.memory_space<vmem>>, vector<16x32xf32>
    %c56 = arith.constant 56 : index
    %c0_18 = arith.constant 0 : index
    %21 = vector.load %arg1[%c56, %c0_18] : memref<384x32xf32, #tpu.memory_space<vmem>>, vector<16x32xf32>
    %c72 = arith.constant 72 : index
    %c0_19 = arith.constant 0 : index
    %22 = vector.load %arg1[%c72, %c0_19] : memref<384x32xf32, #tpu.memory_space<vmem>>, vector<16x32xf32>
    %cst_20 = arith.constant dense<0.000000e+00> : vector<32x32xf32>
    %23 = tpu.matmul %18, %20, %cst_20 {dimension_numbers = #tpu.dot_dimension_numbers<[1], [0], [0], [1], [0, 0, 1, 1], [], []>} : vector<32x16xf32>, vector<16x32xf32>, vector<32x32xf32> -> vector<32x32xf32>
    %cst_21 = arith.constant dense<0.000000e+00> : vector<32x32xf32>
    %24 = tpu.matmul %18, %21, %cst_21 {dimension_numbers = #tpu.dot_dimension_numbers<[1], [0], [0], [1], [0, 0, 1, 1], [], []>} : vector<32x16xf32>, vector<16x32xf32>, vector<32x32xf32> -> vector<32x32xf32>
    %cst_22 = arith.constant dense<0.000000e+00> : vector<32x32xf32>
    %25 = tpu.matmul %18, %22, %cst_22 {dimension_numbers = #tpu.dot_dimension_numbers<[1], [0], [0], [1], [0, 0, 1, 1], [], []>} : vector<32x16xf32>, vector<16x32xf32>, vector<32x32xf32> -> vector<32x32xf32>
    %cst_23 = arith.constant dense<0.000000e+00> : vector<32x32xf32>
    %26 = tpu.matmul %0, %23, %cst_23 {dimension_numbers = #tpu.dot_dimension_numbers<[1], [0], [0], [1], [0, 0, 1, 1], [], []>} : vector<32x32xf32>, vector<32x32xf32>, vector<32x32xf32> -> vector<32x32xf32>
    %27 = arith.addf %26, %24 : vector<32x32xf32>
    %cst_24 = arith.constant dense<0.000000e+00> : vector<32x32xf32>
    %28 = tpu.matmul %1, %25, %cst_24 {dimension_numbers = #tpu.dot_dimension_numbers<[1], [0], [0], [1], [0, 0, 1, 1], [], []>} : vector<32x32xf32>, vector<32x32xf32>, vector<32x32xf32> -> vector<32x32xf32>
    %29 = arith.addf %27, %28 : vector<32x32xf32>
    %30 = vector.broadcast %19 : vector<1x32xf32> to vector<32x32xf32>
    %31 = arith.addf %29, %30 : vector<32x32xf32>
    %cst_25 = arith.constant 0.000000e+00 : f32
    %32 = vector.broadcast %cst_25 : f32 to vector<32x32xf32>
    %33 = arith.maximumf %31, %32 : vector<32x32xf32>
    %c88 = arith.constant 88 : index
    %c0_26 = arith.constant 0 : index
    %34 = vector.load %arg1[%c88, %c0_26] : memref<384x32xf32, #tpu.memory_space<vmem>>, vector<1x2xf32>
    %c96 = arith.constant 96 : index
    %c0_27 = arith.constant 0 : index
    %35 = vector.load %arg1[%c96, %c0_27] : memref<384x32xf32, #tpu.memory_space<vmem>>, vector<32x2xf32>
    %c128 = arith.constant 128 : index
    %c0_28 = arith.constant 0 : index
    %36 = vector.load %arg1[%c128, %c0_28] : memref<384x32xf32, #tpu.memory_space<vmem>>, vector<32x2xf32>
    %c160 = arith.constant 160 : index
    %c0_29 = arith.constant 0 : index
    %37 = vector.load %arg1[%c160, %c0_29] : memref<384x32xf32, #tpu.memory_space<vmem>>, vector<32x2xf32>
    %cst_30 = arith.constant dense<0.000000e+00> : vector<32x2xf32>
    %38 = tpu.matmul %33, %35, %cst_30 {dimension_numbers = #tpu.dot_dimension_numbers<[1], [0], [0], [1], [0, 0, 1, 1], [], []>} : vector<32x32xf32>, vector<32x2xf32>, vector<32x2xf32> -> vector<32x2xf32>
    %cst_31 = arith.constant dense<0.000000e+00> : vector<32x2xf32>
    %39 = tpu.matmul %33, %36, %cst_31 {dimension_numbers = #tpu.dot_dimension_numbers<[1], [0], [0], [1], [0, 0, 1, 1], [], []>} : vector<32x32xf32>, vector<32x2xf32>, vector<32x2xf32> -> vector<32x2xf32>
    %cst_32 = arith.constant dense<0.000000e+00> : vector<32x2xf32>
    %40 = tpu.matmul %33, %37, %cst_32 {dimension_numbers = #tpu.dot_dimension_numbers<[1], [0], [0], [1], [0, 0, 1, 1], [], []>} : vector<32x32xf32>, vector<32x2xf32>, vector<32x2xf32> -> vector<32x2xf32>
    %cst_33 = arith.constant dense<0.000000e+00> : vector<32x2xf32>
    %41 = tpu.matmul %0, %38, %cst_33 {dimension_numbers = #tpu.dot_dimension_numbers<[1], [0], [0], [1], [0, 0, 1, 1], [], []>} : vector<32x32xf32>, vector<32x2xf32>, vector<32x2xf32> -> vector<32x2xf32>
    %42 = arith.addf %41, %39 : vector<32x2xf32>
    %cst_34 = arith.constant dense<0.000000e+00> : vector<32x2xf32>
    %43 = tpu.matmul %1, %40, %cst_34 {dimension_numbers = #tpu.dot_dimension_numbers<[1], [0], [0], [1], [0, 0, 1, 1], [], []>} : vector<32x32xf32>, vector<32x2xf32>, vector<32x2xf32> -> vector<32x2xf32>
    %44 = arith.addf %42, %43 : vector<32x2xf32>
    %45 = vector.broadcast %34 : vector<1x2xf32> to vector<32x2xf32>
    %46 = arith.addf %44, %45 : vector<32x2xf32>
    %cst_35 = arith.constant 0.000000e+00 : f32
    %47 = vector.broadcast %cst_35 : f32 to vector<32x2xf32>
    %48 = arith.maximumf %46, %47 : vector<32x2xf32>
    %cst_36 = arith.constant dense<0.000000e+00> : vector<32x2xf32>
    %49 = tpu.matmul %2, %48, %cst_36 {dimension_numbers = #tpu.dot_dimension_numbers<[1], [0], [0], [1], [0, 0, 1, 1], [], []>} : vector<32x32xf32>, vector<32x2xf32>, vector<32x2xf32> -> vector<32x2xf32>
    %c192 = arith.constant 192 : index
    %c0_37 = arith.constant 0 : index
    %50 = vector.load %arg1[%c192, %c0_37] : memref<384x32xf32, #tpu.memory_space<vmem>>, vector<1x32xf32>
    %c200 = arith.constant 200 : index
    %c0_38 = arith.constant 0 : index
    %51 = vector.load %arg1[%c200, %c0_38] : memref<384x32xf32, #tpu.memory_space<vmem>>, vector<2x32xf32>
    %c208 = arith.constant 208 : index
    %c0_39 = arith.constant 0 : index
    %52 = vector.load %arg1[%c208, %c0_39] : memref<384x32xf32, #tpu.memory_space<vmem>>, vector<2x32xf32>
    %c216 = arith.constant 216 : index
    %c0_40 = arith.constant 0 : index
    %53 = vector.load %arg1[%c216, %c0_40] : memref<384x32xf32, #tpu.memory_space<vmem>>, vector<2x32xf32>
    %cst_41 = arith.constant dense<0.000000e+00> : vector<32x32xf32>
    %54 = tpu.matmul %49, %51, %cst_41 {dimension_numbers = #tpu.dot_dimension_numbers<[1], [0], [0], [1], [0, 0, 1, 1], [], []>} : vector<32x2xf32>, vector<2x32xf32>, vector<32x32xf32> -> vector<32x32xf32>
    %cst_42 = arith.constant dense<0.000000e+00> : vector<32x32xf32>
    %55 = tpu.matmul %49, %52, %cst_42 {dimension_numbers = #tpu.dot_dimension_numbers<[1], [0], [0], [1], [0, 0, 1, 1], [], []>} : vector<32x2xf32>, vector<2x32xf32>, vector<32x32xf32> -> vector<32x32xf32>
    %cst_43 = arith.constant dense<0.000000e+00> : vector<32x32xf32>
    %56 = tpu.matmul %49, %53, %cst_43 {dimension_numbers = #tpu.dot_dimension_numbers<[1], [0], [0], [1], [0, 0, 1, 1], [], []>} : vector<32x2xf32>, vector<2x32xf32>, vector<32x32xf32> -> vector<32x32xf32>
    %cst_44 = arith.constant dense<0.000000e+00> : vector<32x32xf32>
    %57 = tpu.matmul %0, %54, %cst_44 {dimension_numbers = #tpu.dot_dimension_numbers<[1], [0], [0], [1], [0, 0, 1, 1], [], []>} : vector<32x32xf32>, vector<32x32xf32>, vector<32x32xf32> -> vector<32x32xf32>
    %58 = arith.addf %57, %55 : vector<32x32xf32>
    %cst_45 = arith.constant dense<0.000000e+00> : vector<32x32xf32>
    %59 = tpu.matmul %1, %56, %cst_45 {dimension_numbers = #tpu.dot_dimension_numbers<[1], [0], [0], [1], [0, 0, 1, 1], [], []>} : vector<32x32xf32>, vector<32x32xf32>, vector<32x32xf32> -> vector<32x32xf32>
    %60 = arith.addf %58, %59 : vector<32x32xf32>
    %61 = vector.broadcast %50 : vector<1x32xf32> to vector<32x32xf32>
    %62 = arith.addf %60, %61 : vector<32x32xf32>
    %cst_46 = arith.constant 0.000000e+00 : f32
    %63 = vector.broadcast %cst_46 : f32 to vector<32x32xf32>
    %64 = arith.maximumf %62, %63 : vector<32x32xf32>
    %c224 = arith.constant 224 : index
    %c0_47 = arith.constant 0 : index
    %65 = vector.load %arg1[%c224, %c0_47] : memref<384x32xf32, #tpu.memory_space<vmem>>, vector<1x16xf32>
    %c232 = arith.constant 232 : index
    %c0_48 = arith.constant 0 : index
    %66 = vector.load %arg1[%c232, %c0_48] : memref<384x32xf32, #tpu.memory_space<vmem>>, vector<32x16xf32>
    %c264 = arith.constant 264 : index
    %c0_49 = arith.constant 0 : index
    %67 = vector.load %arg1[%c264, %c0_49] : memref<384x32xf32, #tpu.memory_space<vmem>>, vector<32x16xf32>
    %c296 = arith.constant 296 : index
    %c0_50 = arith.constant 0 : index
    %68 = vector.load %arg1[%c296, %c0_50] : memref<384x32xf32, #tpu.memory_space<vmem>>, vector<32x16xf32>
    %cst_51 = arith.constant dense<0.000000e+00> : vector<32x16xf32>
    %69 = tpu.matmul %64, %66, %cst_51 {dimension_numbers = #tpu.dot_dimension_numbers<[1], [0], [0], [1], [0, 0, 1, 1], [], []>} : vector<32x32xf32>, vector<32x16xf32>, vector<32x16xf32> -> vector<32x16xf32>
    %cst_52 = arith.constant dense<0.000000e+00> : vector<32x16xf32>
    %70 = tpu.matmul %64, %67, %cst_52 {dimension_numbers = #tpu.dot_dimension_numbers<[1], [0], [0], [1], [0, 0, 1, 1], [], []>} : vector<32x32xf32>, vector<32x16xf32>, vector<32x16xf32> -> vector<32x16xf32>
    %cst_53 = arith.constant dense<0.000000e+00> : vector<32x16xf32>
    %71 = tpu.matmul %64, %68, %cst_53 {dimension_numbers = #tpu.dot_dimension_numbers<[1], [0], [0], [1], [0, 0, 1, 1], [], []>} : vector<32x32xf32>, vector<32x16xf32>, vector<32x16xf32> -> vector<32x16xf32>
    %cst_54 = arith.constant dense<0.000000e+00> : vector<32x16xf32>
    %72 = tpu.matmul %0, %69, %cst_54 {dimension_numbers = #tpu.dot_dimension_numbers<[1], [0], [0], [1], [0, 0, 1, 1], [], []>} : vector<32x32xf32>, vector<32x16xf32>, vector<32x16xf32> -> vector<32x16xf32>
    %73 = arith.addf %72, %70 : vector<32x16xf32>
    %cst_55 = arith.constant dense<0.000000e+00> : vector<32x16xf32>
    %74 = tpu.matmul %1, %71, %cst_55 {dimension_numbers = #tpu.dot_dimension_numbers<[1], [0], [0], [1], [0, 0, 1, 1], [], []>} : vector<32x32xf32>, vector<32x16xf32>, vector<32x16xf32> -> vector<32x16xf32>
    %75 = arith.addf %73, %74 : vector<32x16xf32>
    %76 = vector.broadcast %65 : vector<1x16xf32> to vector<32x16xf32>
    %77 = arith.addf %75, %76 : vector<32x16xf32>
    %cst_56 = arith.constant 0.000000e+00 : f32
    %78 = vector.broadcast %cst_56 : f32 to vector<32x16xf32>
    %79 = arith.maximumf %77, %78 : vector<32x16xf32>
    %c328 = arith.constant 328 : index
    %c0_57 = arith.constant 0 : index
    %80 = vector.load %arg1[%c328, %c0_57] : memref<384x32xf32, #tpu.memory_space<vmem>>, vector<1x2xf32>
    %c336 = arith.constant 336 : index
    %c0_58 = arith.constant 0 : index
    %81 = vector.load %arg1[%c336, %c0_58] : memref<384x32xf32, #tpu.memory_space<vmem>>, vector<16x2xf32>
    %c352 = arith.constant 352 : index
    %c0_59 = arith.constant 0 : index
    %82 = vector.load %arg1[%c352, %c0_59] : memref<384x32xf32, #tpu.memory_space<vmem>>, vector<16x2xf32>
    %c368 = arith.constant 368 : index
    %c0_60 = arith.constant 0 : index
    %83 = vector.load %arg1[%c368, %c0_60] : memref<384x32xf32, #tpu.memory_space<vmem>>, vector<16x2xf32>
    %cst_61 = arith.constant dense<0.000000e+00> : vector<32x2xf32>
    %84 = tpu.matmul %79, %81, %cst_61 {dimension_numbers = #tpu.dot_dimension_numbers<[1], [0], [0], [1], [0, 0, 1, 1], [], []>} : vector<32x16xf32>, vector<16x2xf32>, vector<32x2xf32> -> vector<32x2xf32>
    %cst_62 = arith.constant dense<0.000000e+00> : vector<32x2xf32>
    %85 = tpu.matmul %79, %82, %cst_62 {dimension_numbers = #tpu.dot_dimension_numbers<[1], [0], [0], [1], [0, 0, 1, 1], [], []>} : vector<32x16xf32>, vector<16x2xf32>, vector<32x2xf32> -> vector<32x2xf32>
    %cst_63 = arith.constant dense<0.000000e+00> : vector<32x2xf32>
    %86 = tpu.matmul %79, %83, %cst_63 {dimension_numbers = #tpu.dot_dimension_numbers<[1], [0], [0], [1], [0, 0, 1, 1], [], []>} : vector<32x16xf32>, vector<16x2xf32>, vector<32x2xf32> -> vector<32x2xf32>
    %cst_64 = arith.constant dense<0.000000e+00> : vector<32x2xf32>
    %87 = tpu.matmul %0, %84, %cst_64 {dimension_numbers = #tpu.dot_dimension_numbers<[1], [0], [0], [1], [0, 0, 1, 1], [], []>} : vector<32x32xf32>, vector<32x2xf32>, vector<32x2xf32> -> vector<32x2xf32>
    %88 = arith.addf %87, %85 : vector<32x2xf32>
    %cst_65 = arith.constant dense<0.000000e+00> : vector<32x2xf32>
    %89 = tpu.matmul %1, %86, %cst_65 {dimension_numbers = #tpu.dot_dimension_numbers<[1], [0], [0], [1], [0, 0, 1, 1], [], []>} : vector<32x32xf32>, vector<32x2xf32>, vector<32x2xf32> -> vector<32x2xf32>
    %90 = arith.addf %88, %89 : vector<32x2xf32>
    %91 = vector.broadcast %80 : vector<1x2xf32> to vector<32x2xf32>
    %92 = arith.addf %90, %91 : vector<32x2xf32>
    %c0_66 = arith.constant 0 : index
    %c0_67 = arith.constant 0 : index
    %93 = vector.load %arg3[%c0_66, %c0_67] : memref<32x2xf32, #tpu.memory_space<vmem>>, vector<32x2xf32>
    tpu.vector_store %arg3[%c0_66, %c0_67], %92 {strides = array<i32>} : memref<32x2xf32, #tpu.memory_space<vmem>>, vector<32x2xf32>,
    return
  }
}

</mosaic_0001>

<llo_original>
// kernel: forward.1
$region0: #{forward.1}
  #allocation0 [shape = 'u32[]', space=smem, size = 0x4, offset = 0x4, fixed_abs, tag = 'smem constant byte address 0x4 - core index']
  #allocation1 [shape = 'u32[144,128]{1,0:T(1,128)}', space=vmem, size = 0x12000, scoped, tag = 'internal scratch']
  %s0 = inlined_call_operand.vmem [shape: f32[32,2], index: 0, kind: input, shape index: {}]
  %s1 = inlined_call_operand.hbm [shape: f32[384,32], index: 1, kind: input, shape index: {}]
  %s2 = inlined_call_operand.hbm [shape: f32[96,32], index: 2, kind: input, shape index: {}]
  %s3 = inlined_call_operand.vmem [shape: f32[32,2], index: 3, kind: output, shape index: {}]
  %s4 = sld [smem:[#allocation0]]
  $region30: #{forward.1} parent=0
    _
  %s6 = ssub.s32 1, %s4
  %s7 = scalar_select 0, %s6, %s4
  $region1: #{forward.1} parent=0
    #allocation2 [shape = 'u8[196608]{0}', space=vmem, size = 0x30000, scoped, tag = 'input window, operand 1, single buffered']
    #allocation3 [shape = 's32[1]{0}', space=sflag, size = 0x4, scoped, tag = 'scoped memory for forward.1']
    #allocation4 [shape = 'u8[49152]{0}', space=vmem, size = 0xc000, scoped, tag = 'input window, operand 2, single buffered']
    #allocation5 [shape = 's32[1]{0}', space=sflag, size = 0x4, scoped, tag = 'scoped memory for forward.1']
    %8 = vsyncpa [#allocation3], 0
    %9 = vsyncpa [#allocation5], 0
    // Predicated region
    $region2: #{forward.1} parent=1 // pred_check
      _
    $region3: #{forward.1} parent=1 // pred_check_branch
      %11 = sbr.rel (0) target = $region5
    $region4: #{forward.1} parent=1 // pred_region
      _
    $region5: #{forward.1} parent=1 // pred_fallthru
      _
    // Predicated region
    $region6: #{forward.1} parent=1 // pred_check
      _
    $region7: #{forward.1} parent=1 // pred_check_branch
      %13 = sbr.rel (0) target = $region9
    $region8: #{forward.1} parent=1 // pred_region
      %s15 = ssub.s32 6144, 6144
      %16 = vsyncadd [#allocation3], %s15
      %s17 = sshll.u32 [#allocation2], 4
      %s18 = int_to_ptr.vmem [resolvable:$true] %s17
      %23 = dma.hbm_to_vmem [thread:$0]  %s1, 6144, %s18, [#allocation3], 128, 128, 8
    $region9: #{forward.1} parent=1 // pred_fallthru
      _
    // Predicated region
    $region10: #{forward.1} parent=1 // pred_check
      _
    $region11: #{forward.1} parent=1 // pred_check_branch
      %25 = sbr.rel (0) target = $region13
    $region12: #{forward.1} parent=1 // pred_region
      %s27 = ssub.s32 1536, 1536
      %28 = vsyncadd [#allocation5], %s27
      %s29 = sshll.u32 [#allocation4], 4
      %s30 = int_to_ptr.vmem [resolvable:$true] %s29
      %35 = dma.hbm_to_vmem [thread:$0]  %s2, 1536, %s30, [#allocation5], 128, 128, 8
    $region13: #{forward.1} parent=1 // pred_fallthru
      _
    // Predicated region
    $region14: #{forward.1} parent=1 // pred_check
      _
    $region15: #{forward.1} parent=1 // pred_check_branch
      %37 = sbr.rel (0) target = $region17
    $region16: #{forward.1} parent=1 // pred_region
      %38 = dma.done [#allocation3], 6144
    $region17: #{forward.1} parent=1 // pred_fallthru
      _
    // Predicated region
    $region18: #{forward.1} parent=1 // pred_check
      _
    $region19: #{forward.1} parent=1 // pred_check_branch
      %40 = sbr.rel (0) target = $region21
    $region20: #{forward.1} parent=1 // pred_region
      %41 = dma.done [#allocation5], 1536
    $region21: #{forward.1} parent=1 // pred_fallthru
      _
    %v42 = vld [vmem:[#allocation4] sm:$0xff]
    %v43 = vld [vmem:[#allocation4 + $0x8] sm:$0xff]
    %v44 = vld [vmem:[#allocation4 + $0x10] sm:$0xff]
    %v45 = vld [vmem:[#allocation4 + $0x18] sm:$0xff]
    %v46 = vld [vmem:[#allocation4 + $0x20] sm:$0xff]
    %v47 = vld [vmem:[#allocation4 + $0x28] sm:$0xff]
    %v48 = vld [vmem:[#allocation4 + $0x30] sm:$0xff]
    %v49 = vld [vmem:[#allocation4 + $0x38] sm:$0xff]
    %v50 = vld [vmem:[#allocation4 + $0x40] sm:$0xff]
    %v51 = vld [vmem:[#allocation4 + $0x48] sm:$0xff]
    %v52 = vld [vmem:[#allocation4 + $0x50] sm:$0xff]
    %v53 = vld [vmem:[#allocation4 + $0x58] sm:$0xff]
    %v54 = vld [vmem:[%s0] sm:$0xff]
    %v55 = vld [vmem:[%s0 + $0x8] sm:$0xff]
    %v56 = vld [vmem:[%s0 + $0x10] sm:$0xff]
    %v57 = vld [vmem:[%s0 + $0x18] sm:$0xff]
    %v58 = vld [vmem:[#allocation2] sm:$0x1]
    %v59 = vld [vmem:[#allocation2 + $0x8] sm:$0x3]
    %v60 = vld [vmem:[#allocation2 + $0x10] sm:$0x3]
    %v61 = vld [vmem:[#allocation2 + $0x18] sm:$0x3]
    %vm62 = vcmask 15360
    %v64 = vsel %vm62, %v54, 0
    %v67 = vsel %vm62, %v55, 0
    %v70 = vsel %vm62, %v56, 0
    %v73 = vsel %vm62, %v57, 0
    %vm75 = vcmask 1041408
    %v77 = vsel %vm75, %v59, 0
    %79 = vmatprep.subr.mxu0 0.0
    %80 = vmatpush1.msra.mxu0 0.0
    %81 = vmatprep.subr.mxu0 0.0
    %82 = vmatpush1.msra.mxu0 0.0
    %83 = vmatprep.subr.mxu0 0.0
    %84 = vmatpush1.msra.mxu0 0.0
    %85 = vmatprep.subr.mxu0 0.0
    %86 = vmatpush1.msra.mxu0 0.0
    %87 = vmatprep.subr.mxu0 0.0
    %88 = vmatpush1.msra.mxu0 0.0
    %89 = vmatprep.subr.mxu0 0.0
    %90 = vmatpush1.msra.mxu0 0.0
    %91 = vmatprep.subr.mxu0 0.0
    %92 = vmatpush1.msra.mxu0 0.0
    %93 = vmatprep.subr.mxu0 0.0
    %94 = vmatpush1.msra.mxu0 0.0
    %95 = vmatprep.subr.mxu0 0.0
    %96 = vmatpush1.msra.mxu0 0.0
    %97 = vmatprep.subr.mxu0 0.0
    %98 = vmatpush1.msra.mxu0 0.0
    %99 = vmatprep.subr.mxu0 0.0
    %100 = vmatpush1.msra.mxu0 0.0
    %101 = vmatprep.subr.mxu0 0.0
    %102 = vmatpush1.msra.mxu0 0.0
    %103 = vmatprep.subr.mxu0 0.0
    %104 = vmatpush1.msra.mxu0 0.0
    %105 = vmatprep.subr.mxu0 0.0
    %106 = vmatpush1.msra.mxu0 0.0
    %107 = vmatprep.subr.mxu0 0.0
    %108 = vmatpush1.msra.mxu0 0.0
    %109 = vmatprep.subr.mxu0 0.0
    %110 = vmatpush1.msra.mxu0 %v77
    %111 = vmatprep.subr.mxu0 0.0
    %112 = vmatpush2.msra.mxu0 0.0
    %113 = vmatprep.subr.mxu0 0.0
    %114 = vmatpush2.msra.mxu0 0.0
    %115 = vmatprep.subr.mxu0 0.0
    %116 = vmatpush2.msra.mxu0 0.0
    %117 = vmatprep.subr.mxu0 0.0
    %118 = vmatpush2.msra.mxu0 0.0
    %119 = vmatprep.subr.mxu0 0.0
    %120 = vmatpush2.msra.mxu0 0.0
    %121 = vmatprep.subr.mxu0 0.0
    %122 = vmatpush2.msra.mxu0 0.0
    %123 = vmatprep.subr.mxu0 0.0
    %124 = vmatpush2.msra.mxu0 0.0
    %125 = vmatprep.subr.mxu0 0.0
    %126 = vmatpush2.msra.mxu0 0.0
    %127 = vmatprep.subr.mxu0 0.0
    %128 = vmatpush2.msra.mxu0 0.0
    %129 = vmatprep.subr.mxu0 0.0
    %130 = vmatpush2.msra.mxu0 0.0
    %131 = vmatprep.subr.mxu0 0.0
    %132 = vmatpush2.msra.mxu0 0.0
    %133 = vmatprep.subr.mxu0 0.0
    %134 = vmatpush2.msra.mxu0 0.0
    %135 = vmatprep.subr.mxu0 0.0
    %136 = vmatpush2.msra.mxu0 0.0
    %137 = vmatprep.subr.mxu0 0.0
    %138 = vmatpush2.msra.mxu0 0.0
    %139 = vmatprep.subr.mxu0 0.0
    %140 = vmatpush2.msra.mxu0 0.0
    %141 = vmatprep.subr.mxu0 0.0
    %142 = vmatpush2.msra.mxu0 0.0
    %143 = vmatprep.mubr.f32.mxu0 0.0
    %144 = vmatmul.mubr.f32.gmra.mxu0 %v64
    %v145 = vpop.f32.mrf.mxu0
    %v146 = vadd.f32 0.0, %v145
    %v147 = vpop.f32.mrf.mxu0
    %148 = vmatprep.mubr.f32.mxu0 0.0
    %149 = vmatmul.mubr.f32.gmra.mxu0 %v67
    %v150 = vpop.f32.mrf.mxu0
    %v151 = vadd.f32 0.0, %v150
    %v152 = vpop.f32.mrf.mxu0
    %153 = vmatprep.mubr.f32.mxu0 0.0
    %154 = vmatmul.mubr.f32.gmra.mxu0 %v70
    %v155 = vpop.f32.mrf.mxu0
    %v156 = vadd.f32 0.0, %v155
    %v157 = vpop.f32.mrf.mxu0
    %158 = vmatprep.mubr.f32.mxu0 0.0
    %159 = vmatmul.mubr.f32.gmra.mxu0 %v73
    %v160 = vpop.f32.mrf.mxu0
    %v161 = vadd.f32 0.0, %v160
    %v162 = vpop.f32.mrf.mxu0
    %163 = vdwg.mxu0
    %v165 = vsel %vm75, %v60, 0
    %167 = vmatprep.subr.mxu0 0.0
    %168 = vmatpush1.msra.mxu0 0.0
    %169 = vmatprep.subr.mxu0 0.0
    %170 = vmatpush1.msra.mxu0 0.0
    %171 = vmatprep.subr.mxu0 0.0
    %172 = vmatpush1.msra.mxu0 0.0
    %173 = vmatprep.subr.mxu0 0.0
    %174 = vmatpush1.msra.mxu0 0.0
    %175 = vmatprep.subr.mxu0 0.0
    %176 = vmatpush1.msra.mxu0 0.0
    %177 = vmatprep.subr.mxu0 0.0
    %178 = vmatpush1.msra.mxu0 0.0
    %179 = vmatprep.subr.mxu0 0.0
    %180 = vmatpush1.msra.mxu0 0.0
    %181 = vmatprep.subr.mxu0 0.0
    %182 = vmatpush1.msra.mxu0 0.0
    %183 = vmatprep.subr.mxu0 0.0
    %184 = vmatpush1.msra.mxu0 0.0
    %185 = vmatprep.subr.mxu0 0.0
    %186 = vmatpush1.msra.mxu0 0.0
    %187 = vmatprep.subr.mxu0 0.0
    %188 = vmatpush1.msra.mxu0 0.0
    %189 = vmatprep.subr.mxu0 0.0
    %190 = vmatpush1.msra.mxu0 0.0
    %191 = vmatprep.subr.mxu0 0.0
    %192 = vmatpush1.msra.mxu0 0.0
    %193 = vmatprep.subr.mxu0 0.0
    %194 = vmatpush1.msra.mxu0 0.0
    %195 = vmatprep.subr.mxu0 0.0
    %196 = vmatpush1.msra.mxu0 0.0
    %197 = vmatprep.subr.mxu0 0.0
    %198 = vmatpush1.msra.mxu0 %v165
    %199 = vmatprep.subr.mxu0 0.0
    %200 = vmatpush2.msra.mxu0 0.0
    %201 = vmatprep.subr.mxu0 0.0
    %202 = vmatpush2.msra.mxu0 0.0
    %203 = vmatprep.subr.mxu0 0.0
    %204 = vmatpush2.msra.mxu0 0.0
    %205 = vmatprep.subr.mxu0 0.0
    %206 = vmatpush2.msra.mxu0 0.0
    %207 = vmatprep.subr.mxu0 0.0
    %208 = vmatpush2.msra.mxu0 0.0
    %209 = vmatprep.subr.mxu0 0.0
    %210 = vmatpush2.msra.mxu0 0.0
    %211 = vmatprep.subr.mxu0 0.0
    %212 = vmatpush2.msra.mxu0 0.0
    %213 = vmatprep.subr.mxu0 0.0
    %214 = vmatpush2.msra.mxu0 0.0
    %215 = vmatprep.subr.mxu0 0.0
    %216 = vmatpush2.msra.mxu0 0.0
    %217 = vmatprep.subr.mxu0 0.0
    %218 = vmatpush2.msra.mxu0 0.0
    %219 = vmatprep.subr.mxu0 0.0
    %220 = vmatpush2.msra.mxu0 0.0
    %221 = vmatprep.subr.mxu0 0.0
    %222 = vmatpush2.msra.mxu0 0.0
    %223 = vmatprep.subr.mxu0 0.0
    %224 = vmatpush2.msra.mxu0 0.0
    %225 = vmatprep.subr.mxu0 0.0
    %226 = vmatpush2.msra.mxu0 0.0
    %227 = vmatprep.subr.mxu0 0.0
    %228 = vmatpush2.msra.mxu0 0.0
    %229 = vmatprep.subr.mxu0 0.0
    %230 = vmatpush2.msra.mxu0 0.0
    %231 = vmatprep.mubr.f32.mxu0 0.0
    %232 = vmatmul.mubr.f32.gmra.mxu0 %v64
    %v233 = vpop.f32.mrf.mxu0
    %v234 = vadd.f32 0.0, %v233
    %v235 = vpop.f32.mrf.mxu0
    %236 = vmatprep.mubr.f32.mxu0 0.0
    %237 = vmatmul.mubr.f32.gmra.mxu0 %v67
    %v238 = vpop.f32.mrf.mxu0
    %v239 = vadd.f32 0.0, %v238
    %v240 = vpop.f32.mrf.mxu0
    %241 = vmatprep.mubr.f32.mxu0 0.0
    %242 = vmatmul.mubr.f32.gmra.mxu0 %v70
    %v243 = vpop.f32.mrf.mxu0
    %v244 = vadd.f32 0.0, %v243
    %v245 = vpop.f32.mrf.mxu0
    %246 = vmatprep.mubr.f32.mxu0 0.0
    %247 = vmatmul.mubr.f32.gmra.mxu0 %v73
    %v248 = vpop.f32.mrf.mxu0
    %v249 = vadd.f32 0.0, %v248
    %v250 = vpop.f32.mrf.mxu0
    %251 = vdwg.mxu0
    %v253 = vsel %vm75, %v61, 0
    %255 = vmatprep.subr.mxu0 0.0
    %256 = vmatpush1.msra.mxu0 0.0
    %257 = vmatprep.subr.mxu0 0.0
    %258 = vmatpush1.msra.mxu0 0.0
    %259 = vmatprep.subr.mxu0 0.0
    %260 = vmatpush1.msra.mxu0 0.0
    %261 = vmatprep.subr.mxu0 0.0
    %262 = vmatpush1.msra.mxu0 0.0
    %263 = vmatprep.subr.mxu0 0.0
    %264 = vmatpush1.msra.mxu0 0.0
    %265 = vmatprep.subr.mxu0 0.0
    %266 = vmatpush1.msra.mxu0 0.0
    %267 = vmatprep.subr.mxu0 0.0
    %268 = vmatpush1.msra.mxu0 0.0
    %269 = vmatprep.subr.mxu0 0.0
    %270 = vmatpush1.msra.mxu0 0.0
    %271 = vmatprep.subr.mxu0 0.0
    %272 = vmatpush1.msra.mxu0 0.0
    %273 = vmatprep.subr.mxu0 0.0
    %274 = vmatpush1.msra.mxu0 0.0
    %275 = vmatprep.subr.mxu0 0.0
    %276 = vmatpush1.msra.mxu0 0.0
    %277 = vmatprep.subr.mxu0 0.0
    %278 = vmatpush1.msra.mxu0 0.0
    %279 = vmatprep.subr.mxu0 0.0
    %280 = vmatpush1.msra.mxu0 0.0
    %281 = vmatprep.subr.mxu0 0.0
    %282 = vmatpush1.msra.mxu0 0.0
    %283 = vmatprep.subr.mxu0 0.0
    %284 = vmatpush1.msra.mxu0 0.0
    %285 = vmatprep.subr.mxu0 0.0
    %286 = vmatpush1.msra.mxu0 %v253
    %287 = vmatprep.subr.mxu0 0.0
    %288 = vmatpush2.msra.mxu0 0.0
    %289 = vmatprep.subr.mxu0 0.0
    %290 = vmatpush2.msra.mxu0 0.0
    %291 = vmatprep.subr.mxu0 0.0
    %292 = vmatpush2.msra.mxu0 0.0
    %293 = vmatprep.subr.mxu0 0.0
    %294 = vmatpush2.msra.mxu0 0.0
    %295 = vmatprep.subr.mxu0 0.0
    %296 = vmatpush2.msra.mxu0 0.0
    %297 = vmatprep.subr.mxu0 0.0
    %298 = vmatpush2.msra.mxu0 0.0
    %299 = vmatprep.subr.mxu0 0.0
    %300 = vmatpush2.msra.mxu0 0.0
    %301 = vmatprep.subr.mxu0 0.0
    %302 = vmatpush2.msra.mxu0 0.0
    %303 = vmatprep.subr.mxu0 0.0
    %304 = vmatpush2.msra.mxu0 0.0
    %305 = vmatprep.subr.mxu0 0.0
    %306 = vmatpush2.msra.mxu0 0.0
    %307 = vmatprep.subr.mxu0 0.0
    %308 = vmatpush2.msra.mxu0 0.0
    %309 = vmatprep.subr.mxu0 0.0
    %310 = vmatpush2.msra.mxu0 0.0
    %311 = vmatprep.subr.mxu0 0.0
    %312 = vmatpush2.msra.mxu0 0.0
    %313 = vmatprep.subr.mxu0 0.0
    %314 = vmatpush2.msra.mxu0 0.0
    %315 = vmatprep.subr.mxu0 0.0
    %316 = vmatpush2.msra.mxu0 0.0
    %317 = vmatprep.subr.mxu0 0.0
    %318 = vmatpush2.msra.mxu0 0.0
    %319 = vmatprep.mubr.f32.mxu0 0.0
    %320 = vmatmul.mubr.f32.gmra.mxu0 %v64
    %v321 = vpop.f32.mrf.mxu0
    %v322 = vadd.f32 0.0, %v321
    %v323 = vpop.f32.mrf.mxu0
    %324 = vmatprep.mubr.f32.mxu0 0.0
    %325 = vmatmul.mubr.f32.gmra.mxu0 %v67
    %v326 = vpop.f32.mrf.mxu0
    %v327 = vadd.f32 0.0, %v326
    %v328 = vpop.f32.mrf.mxu0
    %329 = vmatprep.mubr.f32.mxu0 0.0
    %330 = vmatmul.mubr.f32.gmra.mxu0 %v70
    %v331 = vpop.f32.mrf.mxu0
    %v332 = vadd.f32 0.0, %v331
    %v333 = vpop.f32.mrf.mxu0
    %334 = vmatprep.mubr.f32.mxu0 0.0
    %335 = vmatmul.mubr.f32.gmra.mxu0 %v73
    %v336 = vpop.f32.mrf.mxu0
    %v337 = vadd.f32 0.0, %v336
    %v338 = vpop.f32.mrf.mxu0
    %339 = vdwg.mxu0
    %vm340 = vcmask 261120
    %v342 = vsel %vm340, %v42, 0
    %v345 = vsel %vm340, %v43, 0
    %v348 = vsel %vm340, %v44, 0
    %v351 = vsel %vm340, %v45, 0
    %353 = vmatprep.subr.mxu0 0.0
    %354 = vmatpush1.msra.mxu0 0.0
    %355 = vmatprep.subr.mxu0 0.0
    %356 = vmatpush1.msra.mxu0 0.0
    %357 = vmatprep.subr.mxu0 0.0
    %358 = vmatpush1.msra.mxu0 0.0
    %359 = vmatprep.subr.mxu0 0.0
    %360 = vmatpush1.msra.mxu0 0.0
    %361 = vmatprep.subr.mxu0 0.0
    %362 = vmatpush1.msra.mxu0 0.0
    %363 = vmatprep.subr.mxu0 0.0
    %364 = vmatpush1.msra.mxu0 0.0
    %365 = vmatprep.subr.mxu0 0.0
    %366 = vmatpush1.msra.mxu0 0.0
    %367 = vmatprep.subr.mxu0 0.0
    %368 = vmatpush1.msra.mxu0 0.0
    %369 = vmatprep.subr.mxu0 0.0
    %370 = vmatpush1.msra.mxu0 0.0
    %371 = vmatprep.subr.mxu0 0.0
    %372 = vmatpush1.msra.mxu0 0.0
    %373 = vmatprep.subr.mxu0 0.0
    %374 = vmatpush1.msra.mxu0 0.0
    %375 = vmatprep.subr.mxu0 0.0
    %376 = vmatpush1.msra.mxu0 0.0
    %377 = vmatprep.subr.mxu0 0.0
    %378 = vmatpush1.msra.mxu0 %v161
    %379 = vmatprep.subr.mxu0 0.0
    %380 = vmatpush1.msra.mxu0 %v156
    %381 = vmatprep.subr.mxu0 0.0
    %382 = vmatpush1.msra.mxu0 %v151
    %383 = vmatprep.subr.mxu0 0.0
    %384 = vmatpush1.msra.mxu0 %v146
    %385 = vmatprep.subr.mxu0 0.0
    %386 = vmatpush2.msra.mxu0 0.0
    %387 = vmatprep.subr.mxu0 0.0
    %388 = vmatpush2.msra.mxu0 0.0
    %389 = vmatprep.subr.mxu0 0.0
    %390 = vmatpush2.msra.mxu0 0.0
    %391 = vmatprep.subr.mxu0 0.0
    %392 = vmatpush2.msra.mxu0 0.0
    %393 = vmatprep.subr.mxu0 0.0
    %394 = vmatpush2.msra.mxu0 0.0
    %395 = vmatprep.subr.mxu0 0.0
    %396 = vmatpush2.msra.mxu0 0.0
    %397 = vmatprep.subr.mxu0 0.0
    %398 = vmatpush2.msra.mxu0 0.0
    %399 = vmatprep.subr.mxu0 0.0
    %400 = vmatpush2.msra.mxu0 0.0
    %401 = vmatprep.subr.mxu0 0.0
    %402 = vmatpush2.msra.mxu0 0.0
    %403 = vmatprep.subr.mxu0 0.0
    %404 = vmatpush2.msra.mxu0 0.0
    %405 = vmatprep.subr.mxu0 0.0
    %406 = vmatpush2.msra.mxu0 0.0
    %407 = vmatprep.subr.mxu0 0.0
    %408 = vmatpush2.msra.mxu0 0.0
    %409 = vmatprep.subr.mxu0 0.0
    %410 = vmatpush2.msra.mxu0 0.0
    %411 = vmatprep.subr.mxu0 0.0
    %412 = vmatpush2.msra.mxu0 0.0
    %413 = vmatprep.subr.mxu0 0.0
    %414 = vmatpush2.msra.mxu0 0.0
    %415 = vmatprep.subr.mxu0 0.0
    %416 = vmatpush2.msra.mxu0 0.0
    %417 = vmatprep.mubr.f32.mxu0 0.0
    %418 = vmatmul.mubr.f32.gmra.mxu0 %v342
    %v419 = vpop.f32.mrf.mxu0
    %v420 = vadd.f32 %v234, %v419
    %v421 = vpop.f32.mrf.mxu0
    %422 = vmatprep.mubr.f32.mxu0 0.0
    %423 = vmatmul.mubr.f32.gmra.mxu0 %v345
    %v424 = vpop.f32.mrf.mxu0
    %v425 = vadd.f32 %v239, %v424
    %v426 = vpop.f32.mrf.mxu0
    %427 = vmatprep.mubr.f32.mxu0 0.0
    %428 = vmatmul.mubr.f32.gmra.mxu0 %v348
    %v429 = vpop.f32.mrf.mxu0
    %v430 = vadd.f32 %v244, %v429
    %v431 = vpop.f32.mrf.mxu0
    %432 = vmatprep.mubr.f32.mxu0 0.0
    %433 = vmatmul.mubr.f32.gmra.mxu0 %v351
    %v434 = vpop.f32.mrf.mxu0
    %v435 = vadd.f32 %v249, %v434
    %v436 = vpop.f32.mrf.mxu0
    %437 = vdwg.mxu0
    %v439 = vsel %vm340, %v46, 0
    %v442 = vsel %vm340, %v47, 0
    %v445 = vsel %vm340, %v48, 0
    %v448 = vsel %vm340, %v49, 0
    %450 = vmatprep.subr.mxu0 0.0
    %451 = vmatpush1.msra.mxu0 0.0
    %452 = vmatprep.subr.mxu0 0.0
    %453 = vmatpush1.msra.mxu0 0.0
    %454 = vmatprep.subr.mxu0 0.0
    %455 = vmatpush1.msra.mxu0 0.0
    %456 = vmatprep.subr.mxu0 0.0
    %457 = vmatpush1.msra.mxu0 0.0
    %458 = vmatprep.subr.mxu0 0.0
    %459 = vmatpush1.msra.mxu0 0.0
    %460 = vmatprep.subr.mxu0 0.0
    %461 = vmatpush1.msra.mxu0 0.0
    %462 = vmatprep.subr.mxu0 0.0
    %463 = vmatpush1.msra.mxu0 0.0
    %464 = vmatprep.subr.mxu0 0.0
    %465 = vmatpush1.msra.mxu0 0.0
    %466 = vmatprep.subr.mxu0 0.0
    %467 = vmatpush1.msra.mxu0 0.0
    %468 = vmatprep.subr.mxu0 0.0
    %469 = vmatpush1.msra.mxu0 0.0
    %470 = vmatprep.subr.mxu0 0.0
    %471 = vmatpush1.msra.mxu0 0.0
    %472 = vmatprep.subr.mxu0 0.0
    %473 = vmatpush1.msra.mxu0 0.0
    %474 = vmatprep.subr.mxu0 0.0
    %475 = vmatpush1.msra.mxu0 %v337
    %476 = vmatprep.subr.mxu0 0.0
    %477 = vmatpush1.msra.mxu0 %v332
    %478 = vmatprep.subr.mxu0 0.0
    %479 = vmatpush1.msra.mxu0 %v327
    %480 = vmatprep.subr.mxu0 0.0
    %481 = vmatpush1.msra.mxu0 %v322
    %482 = vmatprep.subr.mxu0 0.0
    %483 = vmatpush2.msra.mxu0 0.0
    %484 = vmatprep.subr.mxu0 0.0
    %485 = vmatpush2.msra.mxu0 0.0
    %486 = vmatprep.subr.mxu0 0.0
    %487 = vmatpush2.msra.mxu0 0.0
    %488 = vmatprep.subr.mxu0 0.0
    %489 = vmatpush2.msra.mxu0 0.0
    %490 = vmatprep.subr.mxu0 0.0
    %491 = vmatpush2.msra.mxu0 0.0
    %492 = vmatprep.subr.mxu0 0.0
    %493 = vmatpush2.msra.mxu0 0.0
    %494 = vmatprep.subr.mxu0 0.0
    %495 = vmatpush2.msra.mxu0 0.0
    %496 = vmatprep.subr.mxu0 0.0
    %497 = vmatpush2.msra.mxu0 0.0
    %498 = vmatprep.subr.mxu0 0.0
    %499 = vmatpush2.msra.mxu0 0.0
    %500 = vmatprep.subr.mxu0 0.0
    %501 = vmatpush2.msra.mxu0 0.0
    %502 = vmatprep.subr.mxu0 0.0
    %503 = vmatpush2.msra.mxu0 0.0
    %504 = vmatprep.subr.mxu0 0.0
    %505 = vmatpush2.msra.mxu0 0.0
    %506 = vmatprep.subr.mxu0 0.0
    %507 = vmatpush2.msra.mxu0 0.0
    %508 = vmatprep.subr.mxu0 0.0
    %509 = vmatpush2.msra.mxu0 0.0
    %510 = vmatprep.subr.mxu0 0.0
    %511 = vmatpush2.msra.mxu0 0.0
    %512 = vmatprep.subr.mxu0 0.0
    %513 = vmatpush2.msra.mxu0 0.0
    %514 = vmatprep.mubr.f32.mxu0 0.0
    %515 = vmatmul.mubr.f32.gmra.mxu0 %v439
    %v516 = vpop.f32.mrf.mxu0
    %v517 = vadd.f32 0.0, %v516
    %v518 = vpop.f32.mrf.mxu0
    %519 = vmatprep.mubr.f32.mxu0 0.0
    %520 = vmatmul.mubr.f32.gmra.mxu0 %v442
    %v521 = vpop.f32.mrf.mxu0
    %v522 = vadd.f32 0.0, %v521
    %v523 = vpop.f32.mrf.mxu0
    %524 = vmatprep.mubr.f32.mxu0 0.0
    %525 = vmatmul.mubr.f32.gmra.mxu0 %v445
    %v526 = vpop.f32.mrf.mxu0
    %v527 = vadd.f32 0.0, %v526
    %v528 = vpop.f32.mrf.mxu0
    %529 = vmatprep.mubr.f32.mxu0 0.0
    %530 = vmatmul.mubr.f32.gmra.mxu0 %v448
    %v531 = vpop.f32.mrf.mxu0
    %v532 = vadd.f32 0.0, %v531
    %v533 = vpop.f32.mrf.mxu0
    %534 = vdwg.mxu0
    %v535 = vadd.f32 %v420, %v517
    %v536 = vadd.f32 %v425, %v522
    %v537 = vadd.f32 %v430, %v527
    %v538 = vadd.f32 %v435, %v532
    %v539 = vlaneseq
    %v540 = vshrl.u32 %v539, 7
    %v541 = vsub.s32 0, %v540
    %v542 = vrot.slane %v58, %v541
    %v543 = vadd.f32 %v535, %v542
    %v544 = vadd.f32 %v536, %v542
    %v545 = vadd.f32 %v537, %v542
    %v546 = vadd.f32 %v538, %v542
    %v547 = vmax.f32 %v543, 0.0
    %v548 = vmax.f32 %v544, 0.0
    %v549 = vmax.f32 %v545, 0.0
    %v550 = vmax.f32 %v546, 0.0
    %v551 = vld [vmem:[#allocation2 + $0x20] sm:$0x1]
    %v552 = vld [vmem:[#allocation2 + $0x28] sm:$0xff]
    %v553 = vld [vmem:[#allocation2 + $0x30] sm:$0xff]
    %v554 = vld [vmem:[#allocation2 + $0x38] sm:$0xff]
    %v555 = vld [vmem:[#allocation2 + $0x40] sm:$0xff]
    %v556 = vld [vmem:[#allocation2 + $0x48] sm:$0xff]
    %v557 = vld [vmem:[#allocation2 + $0x50] sm:$0xff]
    %vm558 = vcmask 130048
    %v560 = vsel %vm558, %v547, 0
    %v563 = vsel %vm558, %v548, 0
    %v566 = vsel %vm558, %v549, 0
    %v569 = vsel %vm558, %v550, 0
    %571 = vmatprep.subr.mxu0 0.0
    %572 = vmatpush1.msra.mxu0 0.0
    %573 = vmatprep.subr.mxu0 0.0
    %574 = vmatpush1.msra.mxu0 0.0
    %575 = vmatprep.subr.mxu0 0.0
    %576 = vmatpush1.msra.mxu0 0.0
    %577 = vmatprep.subr.mxu0 0.0
    %578 = vmatpush1.msra.mxu0 0.0
    %579 = vmatprep.subr.mxu0 0.0
    %580 = vmatpush1.msra.mxu0 0.0
    %581 = vmatprep.subr.mxu0 0.0
    %582 = vmatpush1.msra.mxu0 0.0
    %583 = vmatprep.subr.mxu0 0.0
    %584 = vmatpush1.msra.mxu0 0.0
    %585 = vmatprep.subr.mxu0 0.0
    %586 = vmatpush1.msra.mxu0 0.0
    %587 = vmatprep.subr.mxu0 0.0
    %588 = vmatpush1.msra.mxu0 0.0
    %589 = vmatprep.subr.mxu0 0.0
    %590 = vmatpush1.msra.mxu0 0.0
    %591 = vmatprep.subr.mxu0 0.0
    %592 = vmatpush1.msra.mxu0 0.0
    %593 = vmatprep.subr.mxu0 0.0
    %594 = vmatpush1.msra.mxu0 0.0
    %595 = vmatprep.subr.mxu0 0.0
    %596 = vmatpush1.msra.mxu0 0.0
    %597 = vmatprep.subr.mxu0 0.0
    %598 = vmatpush1.msra.mxu0 0.0
    %599 = vmatprep.subr.mxu0 0.0
    %600 = vmatpush1.msra.mxu0 %v553
    %601 = vmatprep.subr.mxu0 0.0
    %602 = vmatpush1.msra.mxu0 %v552
    %603 = vmatprep.subr.mxu0 0.0
    %604 = vmatpush2.msra.mxu0 0.0
    %605 = vmatprep.subr.mxu0 0.0
    %606 = vmatpush2.msra.mxu0 0.0
    %607 = vmatprep.subr.mxu0 0.0
    %608 = vmatpush2.msra.mxu0 0.0
    %609 = vmatprep.subr.mxu0 0.0
    %610 = vmatpush2.msra.mxu0 0.0
    %611 = vmatprep.subr.mxu0 0.0
    %612 = vmatpush2.msra.mxu0 0.0
    %613 = vmatprep.subr.mxu0 0.0
    %614 = vmatpush2.msra.mxu0 0.0
    %615 = vmatprep.subr.mxu0 0.0
    %616 = vmatpush2.msra.mxu0 0.0
    %617 = vmatprep.subr.mxu0 0.0
    %618 = vmatpush2.msra.mxu0 0.0
    %619 = vmatprep.subr.mxu0 0.0
    %620 = vmatpush2.msra.mxu0 0.0
    %621 = vmatprep.subr.mxu0 0.0
    %622 = vmatpush2.msra.mxu0 0.0
    %623 = vmatprep.subr.mxu0 0.0
    %624 = vmatpush2.msra.mxu0 0.0
    %625 = vmatprep.subr.mxu0 0.0
    %626 = vmatpush2.msra.mxu0 0.0
    %627 = vmatprep.subr.mxu0 0.0
    %628 = vmatpush2.msra.mxu0 0.0
    %629 = vmatprep.subr.mxu0 0.0
    %630 = vmatpush2.msra.mxu0 0.0
    %631 = vmatprep.subr.mxu0 0.0
    %632 = vmatpush2.msra.mxu0 0.0
    %633 = vmatprep.subr.mxu0 0.0
    %634 = vmatpush2.msra.mxu0 0.0
    %635 = vmatprep.mubr.f32.mxu0 0.0
    %636 = vmatmul.mubr.f32.gmra.mxu0 %v560
    %v637 = vpop.f32.mrf.mxu0
    %v638 = vadd.f32 0.0, %v637
    %v639 = vpop.f32.mrf.mxu0
    %640 = vmatprep.mubr.f32.mxu0 0.0
    %641 = vmatmul.mubr.f32.gmra.mxu0 %v563
    %v642 = vpop.f32.mrf.mxu0
    %v643 = vadd.f32 0.0, %v642
    %v644 = vpop.f32.mrf.mxu0
    %645 = vmatprep.mubr.f32.mxu0 0.0
    %646 = vmatmul.mubr.f32.gmra.mxu0 %v566
    %v647 = vpop.f32.mrf.mxu0
    %v648 = vadd.f32 0.0, %v647
    %v649 = vpop.f32.mrf.mxu0
    %650 = vmatprep.mubr.f32.mxu0 0.0
    %651 = vmatmul.mubr.f32.gmra.mxu0 %v569
    %v652 = vpop.f32.mrf.mxu0
    %v653 = vadd.f32 0.0, %v652
    %v654 = vpop.f32.mrf.mxu0
    %655 = vdwg.mxu0
    %656 = vmatprep.subr.mxu0 0.0
    %657 = vmatpush1.msra.mxu0 0.0
    %658 = vmatprep.subr.mxu0 0.0
    %659 = vmatpush1.msra.mxu0 0.0
    %660 = vmatprep.subr.mxu0 0.0
    %661 = vmatpush1.msra.mxu0 0.0
    %662 = vmatprep.subr.mxu0 0.0
    %663 = vmatpush1.msra.mxu0 0.0
    %664 = vmatprep.subr.mxu0 0.0
    %665 = vmatpush1.msra.mxu0 0.0
    %666 = vmatprep.subr.mxu0 0.0
    %667 = vmatpush1.msra.mxu0 0.0
    %668 = vmatprep.subr.mxu0 0.0
    %669 = vmatpush1.msra.mxu0 0.0
    %670 = vmatprep.subr.mxu0 0.0
    %671 = vmatpush1.msra.mxu0 0.0
    %672 = vmatprep.subr.mxu0 0.0
    %673 = vmatpush1.msra.mxu0 0.0
    %674 = vmatprep.subr.mxu0 0.0
    %675 = vmatpush1.msra.mxu0 0.0
    %676 = vmatprep.subr.mxu0 0.0
    %677 = vmatpush1.msra.mxu0 0.0
    %678 = vmatprep.subr.mxu0 0.0
    %679 = vmatpush1.msra.mxu0 0.0
    %680 = vmatprep.subr.mxu0 0.0
    %681 = vmatpush1.msra.mxu0 0.0
    %682 = vmatprep.subr.mxu0 0.0
    %683 = vmatpush1.msra.mxu0 0.0
    %684 = vmatprep.subr.mxu0 0.0
    %685 = vmatpush1.msra.mxu0 %v555
    %686 = vmatprep.subr.mxu0 0.0
    %687 = vmatpush1.msra.mxu0 %v554
    %688 = vmatprep.subr.mxu0 0.0
    %689 = vmatpush2.msra.mxu0 0.0
    %690 = vmatprep.subr.mxu0 0.0
    %691 = vmatpush2.msra.mxu0 0.0
    %692 = vmatprep.subr.mxu0 0.0
    %693 = vmatpush2.msra.mxu0 0.0
    %694 = vmatprep.subr.mxu0 0.0
    %695 = vmatpush2.msra.mxu0 0.0
    %696 = vmatprep.subr.mxu0 0.0
    %697 = vmatpush2.msra.mxu0 0.0
    %698 = vmatprep.subr.mxu0 0.0
    %699 = vmatpush2.msra.mxu0 0.0
    %700 = vmatprep.subr.mxu0 0.0
    %701 = vmatpush2.msra.mxu0 0.0
    %702 = vmatprep.subr.mxu0 0.0
    %703 = vmatpush2.msra.mxu0 0.0
    %704 = vmatprep.subr.mxu0 0.0
    %705 = vmatpush2.msra.mxu0 0.0
    %706 = vmatprep.subr.mxu0 0.0
    %707 = vmatpush2.msra.mxu0 0.0
    %708 = vmatprep.subr.mxu0 0.0
    %709 = vmatpush2.msra.mxu0 0.0
    %710 = vmatprep.subr.mxu0 0.0
    %711 = vmatpush2.msra.mxu0 0.0
    %712 = vmatprep.subr.mxu0 0.0
    %713 = vmatpush2.msra.mxu0 0.0
    %714 = vmatprep.subr.mxu0 0.0
    %715 = vmatpush2.msra.mxu0 0.0
    %716 = vmatprep.subr.mxu0 0.0
    %717 = vmatpush2.msra.mxu0 0.0
    %718 = vmatprep.subr.mxu0 0.0
    %719 = vmatpush2.msra.mxu0 0.0
    %720 = vmatprep.mubr.f32.mxu0 0.0
    %721 = vmatmul.mubr.f32.gmra.mxu0 %v560
    %v722 = vpop.f32.mrf.mxu0
    %v723 = vadd.f32 0.0, %v722
    %v724 = vpop.f32.mrf.mxu0
    %725 = vmatprep.mubr.f32.mxu0 0.0
    %726 = vmatmul.mubr.f32.gmra.mxu0 %v563
    %v727 = vpop.f32.mrf.mxu0
    %v728 = vadd.f32 0.0, %v727
    %v729 = vpop.f32.mrf.mxu0
    %730 = vmatprep.mubr.f32.mxu0 0.0
    %731 = vmatmul.mubr.f32.gmra.mxu0 %v566
    %v732 = vpop.f32.mrf.mxu0
    %v733 = vadd.f32 0.0, %v732
    %v734 = vpop.f32.mrf.mxu0
    %735 = vmatprep.mubr.f32.mxu0 0.0
    %736 = vmatmul.mubr.f32.gmra.mxu0 %v569
    %v737 = vpop.f32.mrf.mxu0
    %v738 = vadd.f32 0.0, %v737
    %v739 = vpop.f32.mrf.mxu0
    %740 = vdwg.mxu0
    %741 = vmatprep.subr.mxu0 0.0
    %742 = vmatpush1.msra.mxu0 0.0
    %743 = vmatprep.subr.mxu0 0.0
    %744 = vmatpush1.msra.mxu0 0.0
    %745 = vmatprep.subr.mxu0 0.0
    %746 = vmatpush1.msra.mxu0 0.0
    %747 = vmatprep.subr.mxu0 0.0
    %748 = vmatpush1.msra.mxu0 0.0
    %749 = vmatprep.subr.mxu0 0.0
    %750 = vmatpush1.msra.mxu0 0.0
    %751 = vmatprep.subr.mxu0 0.0
    %752 = vmatpush1.msra.mxu0 0.0
    %753 = vmatprep.subr.mxu0 0.0
    %754 = vmatpush1.msra.mxu0 0.0
    %755 = vmatprep.subr.mxu0 0.0
    %756 = vmatpush1.msra.mxu0 0.0
    %757 = vmatprep.subr.mxu0 0.0
    %758 = vmatpush1.msra.mxu0 0.0
    %759 = vmatprep.subr.mxu0 0.0
    %760 = vmatpush1.msra.mxu0 0.0
    %761 = vmatprep.subr.mxu0 0.0
    %762 = vmatpush1.msra.mxu0 0.0
    %763 = vmatprep.subr.mxu0 0.0
    %764 = vmatpush1.msra.mxu0 0.0
    %765 = vmatprep.subr.mxu0 0.0
    %766 = vmatpush1.msra.mxu0 0.0
    %767 = vmatprep.subr.mxu0 0.0
    %768 = vmatpush1.msra.mxu0 0.0
    %769 = vmatprep.subr.mxu0 0.0
    %770 = vmatpush1.msra.mxu0 %v557
    %771 = vmatprep.subr.mxu0 0.0
    %772 = vmatpush1.msra.mxu0 %v556
    %773 = vmatprep.subr.mxu0 0.0
    %774 = vmatpush2.msra.mxu0 0.0
    %775 = vmatprep.subr.mxu0 0.0
    %776 = vmatpush2.msra.mxu0 0.0
    %777 = vmatprep.subr.mxu0 0.0
    %778 = vmatpush2.msra.mxu0 0.0
    %779 = vmatprep.subr.mxu0 0.0
    %780 = vmatpush2.msra.mxu0 0.0
    %781 = vmatprep.subr.mxu0 0.0
    %782 = vmatpush2.msra.mxu0 0.0
    %783 = vmatprep.subr.mxu0 0.0
    %784 = vmatpush2.msra.mxu0 0.0
    %785 = vmatprep.subr.mxu0 0.0
    %786 = vmatpush2.msra.mxu0 0.0
    %787 = vmatprep.subr.mxu0 0.0
    %788 = vmatpush2.msra.mxu0 0.0
    %789 = vmatprep.subr.mxu0 0.0
    %790 = vmatpush2.msra.mxu0 0.0
    %791 = vmatprep.subr.mxu0 0.0
    %792 = vmatpush2.msra.mxu0 0.0
    %793 = vmatprep.subr.mxu0 0.0
    %794 = vmatpush2.msra.mxu0 0.0
    %795 = vmatprep.subr.mxu0 0.0
    %796 = vmatpush2.msra.mxu0 0.0
    %797 = vmatprep.subr.mxu0 0.0
    %798 = vmatpush2.msra.mxu0 0.0
    %799 = vmatprep.subr.mxu0 0.0
    %800 = vmatpush2.msra.mxu0 0.0
    %801 = vmatprep.subr.mxu0 0.0
    %802 = vmatpush2.msra.mxu0 0.0
    %803 = vmatprep.subr.mxu0 0.0
    %804 = vmatpush2.msra.mxu0 0.0
    %805 = vmatprep.mubr.f32.mxu0 0.0
    %806 = vmatmul.mubr.f32.gmra.mxu0 %v560
    %v807 = vpop.f32.mrf.mxu0
    %v808 = vadd.f32 0.0, %v807
    %v809 = vpop.f32.mrf.mxu0
    %810 = vmatprep.mubr.f32.mxu0 0.0
    %811 = vmatmul.mubr.f32.gmra.mxu0 %v563
    %v812 = vpop.f32.mrf.mxu0
    %v813 = vadd.f32 0.0, %v812
    %v814 = vpop.f32.mrf.mxu0
    %815 = vmatprep.mubr.f32.mxu0 0.0
    %816 = vmatmul.mubr.f32.gmra.mxu0 %v566
    %v817 = vpop.f32.mrf.mxu0
    %v818 = vadd.f32 0.0, %v817
    %v819 = vpop.f32.mrf.mxu0
    %820 = vmatprep.mubr.f32.mxu0 0.0
    %821 = vmatmul.mubr.f32.gmra.mxu0 %v569
    %v822 = vpop.f32.mrf.mxu0
    %v823 = vadd.f32 0.0, %v822
    %v824 = vpop.f32.mrf.mxu0
    %825 = vdwg.mxu0
    %826 = vmatprep.subr.mxu0 0.0
    %827 = vmatpush1.msra.mxu0 0.0
    %828 = vmatprep.subr.mxu0 0.0
    %829 = vmatpush1.msra.mxu0 0.0
    %830 = vmatprep.subr.mxu0 0.0
    %831 = vmatpush1.msra.mxu0 0.0
    %832 = vmatprep.subr.mxu0 0.0
    %833 = vmatpush1.msra.mxu0 0.0
    %834 = vmatprep.subr.mxu0 0.0
    %835 = vmatpush1.msra.mxu0 0.0
    %836 = vmatprep.subr.mxu0 0.0
    %837 = vmatpush1.msra.mxu0 0.0
    %838 = vmatprep.subr.mxu0 0.0
    %839 = vmatpush1.msra.mxu0 0.0
    %840 = vmatprep.subr.mxu0 0.0
    %841 = vmatpush1.msra.mxu0 0.0
    %842 = vmatprep.subr.mxu0 0.0
    %843 = vmatpush1.msra.mxu0 0.0
    %844 = vmatprep.subr.mxu0 0.0
    %845 = vmatpush1.msra.mxu0 0.0
    %846 = vmatprep.subr.mxu0 0.0
    %847 = vmatpush1.msra.mxu0 0.0
    %848 = vmatprep.subr.mxu0 0.0
    %849 = vmatpush1.msra.mxu0 0.0
    %850 = vmatprep.subr.mxu0 0.0
    %851 = vmatpush1.msra.mxu0 %v653
    %852 = vmatprep.subr.mxu0 0.0
    %853 = vmatpush1.msra.mxu0 %v648
    %854 = vmatprep.subr.mxu0 0.0
    %855 = vmatpush1.msra.mxu0 %v643
    %856 = vmatprep.subr.mxu0 0.0
    %857 = vmatpush1.msra.mxu0 %v638
    %858 = vmatprep.subr.mxu0 0.0
    %859 = vmatpush2.msra.mxu0 0.0
    %860 = vmatprep.subr.mxu0 0.0
    %861 = vmatpush2.msra.mxu0 0.0
    %862 = vmatprep.subr.mxu0 0.0
    %863 = vmatpush2.msra.mxu0 0.0
    %864 = vmatprep.subr.mxu0 0.0
    %865 = vmatpush2.msra.mxu0 0.0
    %866 = vmatprep.subr.mxu0 0.0
    %867 = vmatpush2.msra.mxu0 0.0
    %868 = vmatprep.subr.mxu0 0.0
    %869 = vmatpush2.msra.mxu0 0.0
    %870 = vmatprep.subr.mxu0 0.0
    %871 = vmatpush2.msra.mxu0 0.0
    %872 = vmatprep.subr.mxu0 0.0
    %873 = vmatpush2.msra.mxu0 0.0
    %874 = vmatprep.subr.mxu0 0.0
    %875 = vmatpush2.msra.mxu0 0.0
    %876 = vmatprep.subr.mxu0 0.0
    %877 = vmatpush2.msra.mxu0 0.0
    %878 = vmatprep.subr.mxu0 0.0
    %879 = vmatpush2.msra.mxu0 0.0
    %880 = vmatprep.subr.mxu0 0.0
    %881 = vmatpush2.msra.mxu0 0.0
    %882 = vmatprep.subr.mxu0 0.0
    %883 = vmatpush2.msra.mxu0 0.0
    %884 = vmatprep.subr.mxu0 0.0
    %885 = vmatpush2.msra.mxu0 0.0
    %886 = vmatprep.subr.mxu0 0.0
    %887 = vmatpush2.msra.mxu0 0.0
    %888 = vmatprep.subr.mxu0 0.0
    %889 = vmatpush2.msra.mxu0 0.0
    %890 = vmatprep.mubr.f32.mxu0 0.0
    %891 = vmatmul.mubr.f32.gmra.mxu0 %v342
    %v892 = vpop.f32.mrf.mxu0
    %v893 = vadd.f32 %v723, %v892
    %v894 = vpop.f32.mrf.mxu0
    %895 = vmatprep.mubr.f32.mxu0 0.0
    %896 = vmatmul.mubr.f32.gmra.mxu0 %v345
    %v897 = vpop.f32.mrf.mxu0
    %v898 = vadd.f32 %v728, %v897
    %v899 = vpop.f32.mrf.mxu0
    %900 = vmatprep.mubr.f32.mxu0 0.0
    %901 = vmatmul.mubr.f32.gmra.mxu0 %v348
    %v902 = vpop.f32.mrf.mxu0
    %v903 = vadd.f32 %v733, %v902
    %v904 = vpop.f32.mrf.mxu0
    %905 = vmatprep.mubr.f32.mxu0 0.0
    %906 = vmatmul.mubr.f32.gmra.mxu0 %v351
    %v907 = vpop.f32.mrf.mxu0
    %v908 = vadd.f32 %v738, %v907
    %v909 = vpop.f32.mrf.mxu0
    %910 = vdwg.mxu0
    %911 = vmatprep.subr.mxu0 0.0
    %912 = vmatpush1.msra.mxu0 0.0
    %913 = vmatprep.subr.mxu0 0.0
    %914 = vmatpush1.msra.mxu0 0.0
    %915 = vmatprep.subr.mxu0 0.0
    %916 = vmatpush1.msra.mxu0 0.0
    %917 = vmatprep.subr.mxu0 0.0
    %918 = vmatpush1.msra.mxu0 0.0
    %919 = vmatprep.subr.mxu0 0.0
    %920 = vmatpush1.msra.mxu0 0.0
    %921 = vmatprep.subr.mxu0 0.0
    %922 = vmatpush1.msra.mxu0 0.0
    %923 = vmatprep.subr.mxu0 0.0
    %924 = vmatpush1.msra.mxu0 0.0
    %925 = vmatprep.subr.mxu0 0.0
    %926 = vmatpush1.msra.mxu0 0.0
    %927 = vmatprep.subr.mxu0 0.0
    %928 = vmatpush1.msra.mxu0 0.0
    %929 = vmatprep.subr.mxu0 0.0
    %930 = vmatpush1.msra.mxu0 0.0
    %931 = vmatprep.subr.mxu0 0.0
    %932 = vmatpush1.msra.mxu0 0.0
    %933 = vmatprep.subr.mxu0 0.0
    %934 = vmatpush1.msra.mxu0 0.0
    %935 = vmatprep.subr.mxu0 0.0
    %936 = vmatpush1.msra.mxu0 %v823
    %937 = vmatprep.subr.mxu0 0.0
    %938 = vmatpush1.msra.mxu0 %v818
    %939 = vmatprep.subr.mxu0 0.0
    %940 = vmatpush1.msra.mxu0 %v813
    %941 = vmatprep.subr.mxu0 0.0
    %942 = vmatpush1.msra.mxu0 %v808
    %943 = vmatprep.subr.mxu0 0.0
    %944 = vmatpush2.msra.mxu0 0.0
    %945 = vmatprep.subr.mxu0 0.0
    %946 = vmatpush2.msra.mxu0 0.0
    %947 = vmatprep.subr.mxu0 0.0
    %948 = vmatpush2.msra.mxu0 0.0
    %949 = vmatprep.subr.mxu0 0.0
    %950 = vmatpush2.msra.mxu0 0.0
    %951 = vmatprep.subr.mxu0 0.0
    %952 = vmatpush2.msra.mxu0 0.0
    %953 = vmatprep.subr.mxu0 0.0
    %954 = vmatpush2.msra.mxu0 0.0
    %955 = vmatprep.subr.mxu0 0.0
    %956 = vmatpush2.msra.mxu0 0.0
    %957 = vmatprep.subr.mxu0 0.0
    %958 = vmatpush2.msra.mxu0 0.0
    %959 = vmatprep.subr.mxu0 0.0
    %960 = vmatpush2.msra.mxu0 0.0
    %961 = vmatprep.subr.mxu0 0.0
    %962 = vmatpush2.msra.mxu0 0.0
    %963 = vmatprep.subr.mxu0 0.0
    %964 = vmatpush2.msra.mxu0 0.0
    %965 = vmatprep.subr.mxu0 0.0
    %966 = vmatpush2.msra.mxu0 0.0
    %967 = vmatprep.subr.mxu0 0.0
    %968 = vmatpush2.msra.mxu0 0.0
    %969 = vmatprep.subr.mxu0 0.0
    %970 = vmatpush2.msra.mxu0 0.0
    %971 = vmatprep.subr.mxu0 0.0
    %972 = vmatpush2.msra.mxu0 0.0
    %973 = vmatprep.subr.mxu0 0.0
    %974 = vmatpush2.msra.mxu0 0.0
    %975 = vmatprep.mubr.f32.mxu0 0.0
    %976 = vmatmul.mubr.f32.gmra.mxu0 %v439
    %v977 = vpop.f32.mrf.mxu0
    %v978 = vadd.f32 0.0, %v977
    %v979 = vpop.f32.mrf.mxu0
    %980 = vmatprep.mubr.f32.mxu0 0.0
    %981 = vmatmul.mubr.f32.gmra.mxu0 %v442
    %v982 = vpop.f32.mrf.mxu0
    %v983 = vadd.f32 0.0, %v982
    %v984 = vpop.f32.mrf.mxu0
    %985 = vmatprep.mubr.f32.mxu0 0.0
    %986 = vmatmul.mubr.f32.gmra.mxu0 %v445
    %v987 = vpop.f32.mrf.mxu0
    %v988 = vadd.f32 0.0, %v987
    %v989 = vpop.f32.mrf.mxu0
    %990 = vmatprep.mubr.f32.mxu0 0.0
    %991 = vmatmul.mubr.f32.gmra.mxu0 %v448
    %v992 = vpop.f32.mrf.mxu0
    %v993 = vadd.f32 0.0, %v992
    %v994 = vpop.f32.mrf.mxu0
    %995 = vdwg.mxu0
    %v996 = vadd.f32 %v893, %v978
    %v997 = vadd.f32 %v898, %v983
    %v998 = vadd.f32 %v903, %v988
    %v999 = vadd.f32 %v908, %v993
    %v1000 = vlaneseq
    %v1001 = vshrl.u32 %v1000, 7
    %v1002 = vsub.s32 0, %v1001
    %v1003 = vrot.slane %v551, %v1002
    %v1004 = vadd.f32 %v996, %v1003
    %v1005 = vadd.f32 %v997, %v1003
    %v1006 = vadd.f32 %v998, %v1003
    %v1007 = vadd.f32 %v999, %v1003
    %v1008 = vmax.f32 %v1004, 0.0
    %v1009 = vmax.f32 %v1005, 0.0
    %v1010 = vmax.f32 %v1006, 0.0
    %v1011 = vmax.f32 %v1007, 0.0
    %v1012 = vld [vmem:[#allocation2 + $0x58] sm:$0x1]
    %v1013 = vld [vmem:[#allocation2 + $0x60] sm:$0xff]
    %v1014 = vld [vmem:[#allocation2 + $0x68] sm:$0xff]
    %v1015 = vld [vmem:[#allocation2 + $0x70] sm:$0xff]
    %v1016 = vld [vmem:[#allocation2 + $0x78] sm:$0xff]
    %v1017 = vld [vmem:[#allocation2 + $0x80] sm:$0xff]
    %v1018 = vld [vmem:[#allocation2 + $0x88] sm:$0xff]
    %v1019 = vld [vmem:[#allocation2 + $0x90] sm:$0xff]
    %v1020 = vld [vmem:[#allocation2 + $0x98] sm:$0xff]
    %v1021 = vld [vmem:[#allocation2 + $0xa0] sm:$0xff]
    %v1022 = vld [vmem:[#allocation2 + $0xa8] sm:$0xff]
    %v1023 = vld [vmem:[#allocation2 + $0xb0] sm:$0xff]
    %v1024 = vld [vmem:[#allocation2 + $0xb8] sm:$0xff]
    %v1026 = vsel %vm340, %v1008, 0
    %v1029 = vsel %vm340, %v1009, 0
    %v1032 = vsel %vm340, %v1010, 0
    %v1035 = vsel %vm340, %v1011, 0
    %1037 = vmatprep.subr.mxu0 0.0
    %1038 = vmatpush1.msra.mxu0 0.0
    %1039 = vmatprep.subr.mxu0 0.0
    %1040 = vmatpush1.msra.mxu0 0.0
    %1041 = vmatprep.subr.mxu0 0.0
    %1042 = vmatpush1.msra.mxu0 0.0
    %1043 = vmatprep.subr.mxu0 0.0
    %1044 = vmatpush1.msra.mxu0 0.0
    %1045 = vmatprep.subr.mxu0 0.0
    %1046 = vmatpush1.msra.mxu0 0.0
    %1047 = vmatprep.subr.mxu0 0.0
    %1048 = vmatpush1.msra.mxu0 0.0
    %1049 = vmatprep.subr.mxu0 0.0
    %1050 = vmatpush1.msra.mxu0 0.0
    %1051 = vmatprep.subr.mxu0 0.0
    %1052 = vmatpush1.msra.mxu0 0.0
    %1053 = vmatprep.subr.mxu0 0.0
    %1054 = vmatpush1.msra.mxu0 0.0
    %1055 = vmatprep.subr.mxu0 0.0
    %1056 = vmatpush1.msra.mxu0 0.0
    %1057 = vmatprep.subr.mxu0 0.0
    %1058 = vmatpush1.msra.mxu0 0.0
    %1059 = vmatprep.subr.mxu0 0.0
    %1060 = vmatpush1.msra.mxu0 0.0
    %1061 = vmatprep.subr.mxu0 0.0
    %1062 = vmatpush1.msra.mxu0 %v1016
    %1063 = vmatprep.subr.mxu0 0.0
    %1064 = vmatpush1.msra.mxu0 %v1015
    %1065 = vmatprep.subr.mxu0 0.0
    %1066 = vmatpush1.msra.mxu0 %v1014
    %1067 = vmatprep.subr.mxu0 0.0
    %1068 = vmatpush1.msra.mxu0 %v1013
    %1069 = vmatprep.subr.mxu0 0.0
    %1070 = vmatpush2.msra.mxu0 0.0
    %1071 = vmatprep.subr.mxu0 0.0
    %1072 = vmatpush2.msra.mxu0 0.0
    %1073 = vmatprep.subr.mxu0 0.0
    %1074 = vmatpush2.msra.mxu0 0.0
    %1075 = vmatprep.subr.mxu0 0.0
    %1076 = vmatpush2.msra.mxu0 0.0
    %1077 = vmatprep.subr.mxu0 0.0
    %1078 = vmatpush2.msra.mxu0 0.0
    %1079 = vmatprep.subr.mxu0 0.0
    %1080 = vmatpush2.msra.mxu0 0.0
    %1081 = vmatprep.subr.mxu0 0.0
    %1082 = vmatpush2.msra.mxu0 0.0
    %1083 = vmatprep.subr.mxu0 0.0
    %1084 = vmatpush2.msra.mxu0 0.0
    %1085 = vmatprep.subr.mxu0 0.0
    %1086 = vmatpush2.msra.mxu0 0.0
    %1087 = vmatprep.subr.mxu0 0.0
    %1088 = vmatpush2.msra.mxu0 0.0
    %1089 = vmatprep.subr.mxu0 0.0
    %1090 = vmatpush2.msra.mxu0 0.0
    %1091 = vmatprep.subr.mxu0 0.0
    %1092 = vmatpush2.msra.mxu0 0.0
    %1093 = vmatprep.subr.mxu0 0.0
    %1094 = vmatpush2.msra.mxu0 0.0
    %1095 = vmatprep.subr.mxu0 0.0
    %1096 = vmatpush2.msra.mxu0 0.0
    %1097 = vmatprep.subr.mxu0 0.0
    %1098 = vmatpush2.msra.mxu0 0.0
    %1099 = vmatprep.subr.mxu0 0.0
    %1100 = vmatpush2.msra.mxu0 0.0
    %1101 = vmatprep.mubr.f32.mxu0 0.0
    %1102 = vmatmul.mubr.f32.gmra.mxu0 %v1026
    %v1103 = vpop.f32.mrf.mxu0
    %v1104 = vadd.f32 0.0, %v1103
    %v1105 = vpop.f32.mrf.mxu0
    %1106 = vmatprep.mubr.f32.mxu0 0.0
    %1107 = vmatmul.mubr.f32.gmra.mxu0 %v1029
    %v1108 = vpop.f32.mrf.mxu0
    %v1109 = vadd.f32 0.0, %v1108
    %v1110 = vpop.f32.mrf.mxu0
    %1111 = vmatprep.mubr.f32.mxu0 0.0
    %1112 = vmatmul.mubr.f32.gmra.mxu0 %v1032
    %v1113 = vpop.f32.mrf.mxu0
    %v1114 = vadd.f32 0.0, %v1113
    %v1115 = vpop.f32.mrf.mxu0
    %1116 = vmatprep.mubr.f32.mxu0 0.0
    %1117 = vmatmul.mubr.f32.gmra.mxu0 %v1035
    %v1118 = vpop.f32.mrf.mxu0
    %v1119 = vadd.f32 0.0, %v1118
    %v1120 = vpop.f32.mrf.mxu0
    %1121 = vdwg.mxu0
    %1122 = vmatprep.subr.mxu0 0.0
    %1123 = vmatpush1.msra.mxu0 0.0
    %1124 = vmatprep.subr.mxu0 0.0
    %1125 = vmatpush1.msra.mxu0 0.0
    %1126 = vmatprep.subr.mxu0 0.0
    %1127 = vmatpush1.msra.mxu0 0.0
    %1128 = vmatprep.subr.mxu0 0.0
    %1129 = vmatpush1.msra.mxu0 0.0
    %1130 = vmatprep.subr.mxu0 0.0
    %1131 = vmatpush1.msra.mxu0 0.0
    %1132 = vmatprep.subr.mxu0 0.0
    %1133 = vmatpush1.msra.mxu0 0.0
    %1134 = vmatprep.subr.mxu0 0.0
    %1135 = vmatpush1.msra.mxu0 0.0
    %1136 = vmatprep.subr.mxu0 0.0
    %1137 = vmatpush1.msra.mxu0 0.0
    %1138 = vmatprep.subr.mxu0 0.0
    %1139 = vmatpush1.msra.mxu0 0.0
    %1140 = vmatprep.subr.mxu0 0.0
    %1141 = vmatpush1.msra.mxu0 0.0
    %1142 = vmatprep.subr.mxu0 0.0
    %1143 = vmatpush1.msra.mxu0 0.0
    %1144 = vmatprep.subr.mxu0 0.0
    %1145 = vmatpush1.msra.mxu0 0.0
    %1146 = vmatprep.subr.mxu0 0.0
    %1147 = vmatpush1.msra.mxu0 %v1020
    %1148 = vmatprep.subr.mxu0 0.0
    %1149 = vmatpush1.msra.mxu0 %v1019
    %1150 = vmatprep.subr.mxu0 0.0
    %1151 = vmatpush1.msra.mxu0 %v1018
    %1152 = vmatprep.subr.mxu0 0.0
    %1153 = vmatpush1.msra.mxu0 %v1017
    %1154 = vmatprep.subr.mxu0 0.0
    %1155 = vmatpush2.msra.mxu0 0.0
    %1156 = vmatprep.subr.mxu0 0.0
    %1157 = vmatpush2.msra.mxu0 0.0
    %1158 = vmatprep.subr.mxu0 0.0
    %1159 = vmatpush2.msra.mxu0 0.0
    %1160 = vmatprep.subr.mxu0 0.0
    %1161 = vmatpush2.msra.mxu0 0.0
    %1162 = vmatprep.subr.mxu0 0.0
    %1163 = vmatpush2.msra.mxu0 0.0
    %1164 = vmatprep.subr.mxu0 0.0
    %1165 = vmatpush2.msra.mxu0 0.0
    %1166 = vmatprep.subr.mxu0 0.0
    %1167 = vmatpush2.msra.mxu0 0.0
    %1168 = vmatprep.subr.mxu0 0.0
    %1169 = vmatpush2.msra.mxu0 0.0
    %1170 = vmatprep.subr.mxu0 0.0
    %1171 = vmatpush2.msra.mxu0 0.0
    %1172 = vmatprep.subr.mxu0 0.0
    %1173 = vmatpush2.msra.mxu0 0.0
    %1174 = vmatprep.subr.mxu0 0.0
    %1175 = vmatpush2.msra.mxu0 0.0
    %1176 = vmatprep.subr.mxu0 0.0
    %1177 = vmatpush2.msra.mxu0 0.0
    %1178 = vmatprep.subr.mxu0 0.0
    %1179 = vmatpush2.msra.mxu0 0.0
    %1180 = vmatprep.subr.mxu0 0.0
    %1181 = vmatpush2.msra.mxu0 0.0
    %1182 = vmatprep.subr.mxu0 0.0
    %1183 = vmatpush2.msra.mxu0 0.0
    %1184 = vmatprep.subr.mxu0 0.0
    %1185 = vmatpush2.msra.mxu0 0.0
    %1186 = vmatprep.mubr.f32.mxu0 0.0
    %1187 = vmatmul.mubr.f32.gmra.mxu0 %v1026
    %v1188 = vpop.f32.mrf.mxu0
    %v1189 = vadd.f32 0.0, %v1188
    %v1190 = vpop.f32.mrf.mxu0
    %1191 = vmatprep.mubr.f32.mxu0 0.0
    %1192 = vmatmul.mubr.f32.gmra.mxu0 %v1029
    %v1193 = vpop.f32.mrf.mxu0
    %v1194 = vadd.f32 0.0, %v1193
    %v1195 = vpop.f32.mrf.mxu0
    %1196 = vmatprep.mubr.f32.mxu0 0.0
    %1197 = vmatmul.mubr.f32.gmra.mxu0 %v1032
    %v1198 = vpop.f32.mrf.mxu0
    %v1199 = vadd.f32 0.0, %v1198
    %v1200 = vpop.f32.mrf.mxu0
    %1201 = vmatprep.mubr.f32.mxu0 0.0
    %1202 = vmatmul.mubr.f32.gmra.mxu0 %v1035
    %v1203 = vpop.f32.mrf.mxu0
    %v1204 = vadd.f32 0.0, %v1203
    %v1205 = vpop.f32.mrf.mxu0
    %1206 = vdwg.mxu0
    %1207 = vmatprep.subr.mxu0 0.0
    %1208 = vmatpush1.msra.mxu0 0.0
    %1209 = vmatprep.subr.mxu0 0.0
    %1210 = vmatpush1.msra.mxu0 0.0
    %1211 = vmatprep.subr.mxu0 0.0
    %1212 = vmatpush1.msra.mxu0 0.0
    %1213 = vmatprep.subr.mxu0 0.0
    %1214 = vmatpush1.msra.mxu0 0.0
    %1215 = vmatprep.subr.mxu0 0.0
    %1216 = vmatpush1.msra.mxu0 0.0
    %1217 = vmatprep.subr.mxu0 0.0
    %1218 = vmatpush1.msra.mxu0 0.0
    %1219 = vmatprep.subr.mxu0 0.0
    %1220 = vmatpush1.msra.mxu0 0.0
    %1221 = vmatprep.subr.mxu0 0.0
    %1222 = vmatpush1.msra.mxu0 0.0
    %1223 = vmatprep.subr.mxu0 0.0
    %1224 = vmatpush1.msra.mxu0 0.0
    %1225 = vmatprep.subr.mxu0 0.0
    %1226 = vmatpush1.msra.mxu0 0.0
    %1227 = vmatprep.subr.mxu0 0.0
    %1228 = vmatpush1.msra.mxu0 0.0
    %1229 = vmatprep.subr.mxu0 0.0
    %1230 = vmatpush1.msra.mxu0 0.0
    %1231 = vmatprep.subr.mxu0 0.0
    %1232 = vmatpush1.msra.mxu0 %v1024
    %1233 = vmatprep.subr.mxu0 0.0
    %1234 = vmatpush1.msra.mxu0 %v1023
    %1235 = vmatprep.subr.mxu0 0.0
    %1236 = vmatpush1.msra.mxu0 %v1022
    %1237 = vmatprep.subr.mxu0 0.0
    %1238 = vmatpush1.msra.mxu0 %v1021
    %1239 = vmatprep.subr.mxu0 0.0
    %1240 = vmatpush2.msra.mxu0 0.0
    %1241 = vmatprep.subr.mxu0 0.0
    %1242 = vmatpush2.msra.mxu0 0.0
    %1243 = vmatprep.subr.mxu0 0.0
    %1244 = vmatpush2.msra.mxu0 0.0
    %1245 = vmatprep.subr.mxu0 0.0
    %1246 = vmatpush2.msra.mxu0 0.0
    %1247 = vmatprep.subr.mxu0 0.0
    %1248 = vmatpush2.msra.mxu0 0.0
    %1249 = vmatprep.subr.mxu0 0.0
    %1250 = vmatpush2.msra.mxu0 0.0
    %1251 = vmatprep.subr.mxu0 0.0
    %1252 = vmatpush2.msra.mxu0 0.0
    %1253 = vmatprep.subr.mxu0 0.0
    %1254 = vmatpush2.msra.mxu0 0.0
    %1255 = vmatprep.subr.mxu0 0.0
    %1256 = vmatpush2.msra.mxu0 0.0
    %1257 = vmatprep.subr.mxu0 0.0
    %1258 = vmatpush2.msra.mxu0 0.0
    %1259 = vmatprep.subr.mxu0 0.0
    %1260 = vmatpush2.msra.mxu0 0.0
    %1261 = vmatprep.subr.mxu0 0.0
    %1262 = vmatpush2.msra.mxu0 0.0
    %1263 = vmatprep.subr.mxu0 0.0
    %1264 = vmatpush2.msra.mxu0 0.0
    %1265 = vmatprep.subr.mxu0 0.0
    %1266 = vmatpush2.msra.mxu0 0.0
    %1267 = vmatprep.subr.mxu0 0.0
    %1268 = vmatpush2.msra.mxu0 0.0
    %1269 = vmatprep.subr.mxu0 0.0
    %1270 = vmatpush2.msra.mxu0 0.0
    %1271 = vmatprep.mubr.f32.mxu0 0.0
    %1272 = vmatmul.mubr.f32.gmra.mxu0 %v1026
    %v1273 = vpop.f32.mrf.mxu0
    %v1274 = vadd.f32 0.0, %v1273
    %v1275 = vpop.f32.mrf.mxu0
    %1276 = vmatprep.mubr.f32.mxu0 0.0
    %1277 = vmatmul.mubr.f32.gmra.mxu0 %v1029
    %v1278 = vpop.f32.mrf.mxu0
    %v1279 = vadd.f32 0.0, %v1278
    %v1280 = vpop.f32.mrf.mxu0
    %1281 = vmatprep.mubr.f32.mxu0 0.0
    %1282 = vmatmul.mubr.f32.gmra.mxu0 %v1032
    %v1283 = vpop.f32.mrf.mxu0
    %v1284 = vadd.f32 0.0, %v1283
    %v1285 = vpop.f32.mrf.mxu0
    %1286 = vmatprep.mubr.f32.mxu0 0.0
    %1287 = vmatmul.mubr.f32.gmra.mxu0 %v1035
    %v1288 = vpop.f32.mrf.mxu0
    %v1289 = vadd.f32 0.0, %v1288
    %v1290 = vpop.f32.mrf.mxu0
    %1291 = vdwg.mxu0
    %1292 = vmatprep.subr.mxu0 0.0
    %1293 = vmatpush1.msra.mxu0 0.0
    %1294 = vmatprep.subr.mxu0 0.0
    %1295 = vmatpush1.msra.mxu0 0.0
    %1296 = vmatprep.subr.mxu0 0.0
    %1297 = vmatpush1.msra.mxu0 0.0
    %1298 = vmatprep.subr.mxu0 0.0
    %1299 = vmatpush1.msra.mxu0 0.0
    %1300 = vmatprep.subr.mxu0 0.0
    %1301 = vmatpush1.msra.mxu0 0.0
    %1302 = vmatprep.subr.mxu0 0.0
    %1303 = vmatpush1.msra.mxu0 0.0
    %1304 = vmatprep.subr.mxu0 0.0
    %1305 = vmatpush1.msra.mxu0 0.0
    %1306 = vmatprep.subr.mxu0 0.0
    %1307 = vmatpush1.msra.mxu0 0.0
    %1308 = vmatprep.subr.mxu0 0.0
    %1309 = vmatpush1.msra.mxu0 0.0
    %1310 = vmatprep.subr.mxu0 0.0
    %1311 = vmatpush1.msra.mxu0 0.0
    %1312 = vmatprep.subr.mxu0 0.0
    %1313 = vmatpush1.msra.mxu0 0.0
    %1314 = vmatprep.subr.mxu0 0.0
    %1315 = vmatpush1.msra.mxu0 0.0
    %1316 = vmatprep.subr.mxu0 0.0
    %1317 = vmatpush1.msra.mxu0 %v1119
    %1318 = vmatprep.subr.mxu0 0.0
    %1319 = vmatpush1.msra.mxu0 %v1114
    %1320 = vmatprep.subr.mxu0 0.0
    %1321 = vmatpush1.msra.mxu0 %v1109
    %1322 = vmatprep.subr.mxu0 0.0
    %1323 = vmatpush1.msra.mxu0 %v1104
    %1324 = vmatprep.subr.mxu0 0.0
    %1325 = vmatpush2.msra.mxu0 0.0
    %1326 = vmatprep.subr.mxu0 0.0
    %1327 = vmatpush2.msra.mxu0 0.0
    %1328 = vmatprep.subr.mxu0 0.0
    %1329 = vmatpush2.msra.mxu0 0.0
    %1330 = vmatprep.subr.mxu0 0.0
    %1331 = vmatpush2.msra.mxu0 0.0
    %1332 = vmatprep.subr.mxu0 0.0
    %1333 = vmatpush2.msra.mxu0 0.0
    %1334 = vmatprep.subr.mxu0 0.0
    %1335 = vmatpush2.msra.mxu0 0.0
    %1336 = vmatprep.subr.mxu0 0.0
    %1337 = vmatpush2.msra.mxu0 0.0
    %1338 = vmatprep.subr.mxu0 0.0
    %1339 = vmatpush2.msra.mxu0 0.0
    %1340 = vmatprep.subr.mxu0 0.0
    %1341 = vmatpush2.msra.mxu0 0.0
    %1342 = vmatprep.subr.mxu0 0.0
    %1343 = vmatpush2.msra.mxu0 0.0
    %1344 = vmatprep.subr.mxu0 0.0
    %1345 = vmatpush2.msra.mxu0 0.0
    %1346 = vmatprep.subr.mxu0 0.0
    %1347 = vmatpush2.msra.mxu0 0.0
    %1348 = vmatprep.subr.mxu0 0.0
    %1349 = vmatpush2.msra.mxu0 0.0
    %1350 = vmatprep.subr.mxu0 0.0
    %1351 = vmatpush2.msra.mxu0 0.0
    %1352 = vmatprep.subr.mxu0 0.0
    %1353 = vmatpush2.msra.mxu0 0.0
    %1354 = vmatprep.subr.mxu0 0.0
    %1355 = vmatpush2.msra.mxu0 0.0
    %1356 = vmatprep.mubr.f32.mxu0 0.0
    %1357 = vmatmul.mubr.f32.gmra.mxu0 %v342
    %v1358 = vpop.f32.mrf.mxu0
    %v1359 = vadd.f32 %v1189, %v1358
    %v1360 = vpop.f32.mrf.mxu0
    %1361 = vmatprep.mubr.f32.mxu0 0.0
    %1362 = vmatmul.mubr.f32.gmra.mxu0 %v345
    %v1363 = vpop.f32.mrf.mxu0
    %v1364 = vadd.f32 %v1194, %v1363
    %v1365 = vpop.f32.mrf.mxu0
    %1366 = vmatprep.mubr.f32.mxu0 0.0
    %1367 = vmatmul.mubr.f32.gmra.mxu0 %v348
    %v1368 = vpop.f32.mrf.mxu0
    %v1369 = vadd.f32 %v1199, %v1368
    %v1370 = vpop.f32.mrf.mxu0
    %1371 = vmatprep.mubr.f32.mxu0 0.0
    %1372 = vmatmul.mubr.f32.gmra.mxu0 %v351
    %v1373 = vpop.f32.mrf.mxu0
    %v1374 = vadd.f32 %v1204, %v1373
    %v1375 = vpop.f32.mrf.mxu0
    %1376 = vdwg.mxu0
    %1377 = vmatprep.subr.mxu0 0.0
    %1378 = vmatpush1.msra.mxu0 0.0
    %1379 = vmatprep.subr.mxu0 0.0
    %1380 = vmatpush1.msra.mxu0 0.0
    %1381 = vmatprep.subr.mxu0 0.0
    %1382 = vmatpush1.msra.mxu0 0.0
    %1383 = vmatprep.subr.mxu0 0.0
    %1384 = vmatpush1.msra.mxu0 0.0
    %1385 = vmatprep.subr.mxu0 0.0
    %1386 = vmatpush1.msra.mxu0 0.0
    %1387 = vmatprep.subr.mxu0 0.0
    %1388 = vmatpush1.msra.mxu0 0.0
    %1389 = vmatprep.subr.mxu0 0.0
    %1390 = vmatpush1.msra.mxu0 0.0
    %1391 = vmatprep.subr.mxu0 0.0
    %1392 = vmatpush1.msra.mxu0 0.0
    %1393 = vmatprep.subr.mxu0 0.0
    %1394 = vmatpush1.msra.mxu0 0.0
    %1395 = vmatprep.subr.mxu0 0.0
    %1396 = vmatpush1.msra.mxu0 0.0
    %1397 = vmatprep.subr.mxu0 0.0
    %1398 = vmatpush1.msra.mxu0 0.0
    %1399 = vmatprep.subr.mxu0 0.0
    %1400 = vmatpush1.msra.mxu0 0.0
    %1401 = vmatprep.subr.mxu0 0.0
    %1402 = vmatpush1.msra.mxu0 %v1289
    %1403 = vmatprep.subr.mxu0 0.0
    %1404 = vmatpush1.msra.mxu0 %v1284
    %1405 = vmatprep.subr.mxu0 0.0
    %1406 = vmatpush1.msra.mxu0 %v1279
    %1407 = vmatprep.subr.mxu0 0.0
    %1408 = vmatpush1.msra.mxu0 %v1274
    %1409 = vmatprep.subr.mxu0 0.0
    %1410 = vmatpush2.msra.mxu0 0.0
    %1411 = vmatprep.subr.mxu0 0.0
    %1412 = vmatpush2.msra.mxu0 0.0
    %1413 = vmatprep.subr.mxu0 0.0
    %1414 = vmatpush2.msra.mxu0 0.0
    %1415 = vmatprep.subr.mxu0 0.0
    %1416 = vmatpush2.msra.mxu0 0.0
    %1417 = vmatprep.subr.mxu0 0.0
    %1418 = vmatpush2.msra.mxu0 0.0
    %1419 = vmatprep.subr.mxu0 0.0
    %1420 = vmatpush2.msra.mxu0 0.0
    %1421 = vmatprep.subr.mxu0 0.0
    %1422 = vmatpush2.msra.mxu0 0.0
    %1423 = vmatprep.subr.mxu0 0.0
    %1424 = vmatpush2.msra.mxu0 0.0
    %1425 = vmatprep.subr.mxu0 0.0
    %1426 = vmatpush2.msra.mxu0 0.0
    %1427 = vmatprep.subr.mxu0 0.0
    %1428 = vmatpush2.msra.mxu0 0.0
    %1429 = vmatprep.subr.mxu0 0.0
    %1430 = vmatpush2.msra.mxu0 0.0
    %1431 = vmatprep.subr.mxu0 0.0
    %1432 = vmatpush2.msra.mxu0 0.0
    %1433 = vmatprep.subr.mxu0 0.0
    %1434 = vmatpush2.msra.mxu0 0.0
    %1435 = vmatprep.subr.mxu0 0.0
    %1436 = vmatpush2.msra.mxu0 0.0
    %1437 = vmatprep.subr.mxu0 0.0
    %1438 = vmatpush2.msra.mxu0 0.0
    %1439 = vmatprep.subr.mxu0 0.0
    %1440 = vmatpush2.msra.mxu0 0.0
    %1441 = vmatprep.mubr.f32.mxu0 0.0
    %1442 = vmatmul.mubr.f32.gmra.mxu0 %v439
    %v1443 = vpop.f32.mrf.mxu0
    %v1444 = vadd.f32 0.0, %v1443
    %v1445 = vpop.f32.mrf.mxu0
    %1446 = vmatprep.mubr.f32.mxu0 0.0
    %1447 = vmatmul.mubr.f32.gmra.mxu0 %v442
    %v1448 = vpop.f32.mrf.mxu0
    %v1449 = vadd.f32 0.0, %v1448
    %v1450 = vpop.f32.mrf.mxu0
    %1451 = vmatprep.mubr.f32.mxu0 0.0
    %1452 = vmatmul.mubr.f32.gmra.mxu0 %v445
    %v1453 = vpop.f32.mrf.mxu0
    %v1454 = vadd.f32 0.0, %v1453
    %v1455 = vpop.f32.mrf.mxu0
    %1456 = vmatprep.mubr.f32.mxu0 0.0
    %1457 = vmatmul.mubr.f32.gmra.mxu0 %v448
    %v1458 = vpop.f32.mrf.mxu0
    %v1459 = vadd.f32 0.0, %v1458
    %v1460 = vpop.f32.mrf.mxu0
    %1461 = vdwg.mxu0
    %v1462 = vadd.f32 %v1359, %v1444
    %v1463 = vadd.f32 %v1364, %v1449
    %v1464 = vadd.f32 %v1369, %v1454
    %v1465 = vadd.f32 %v1374, %v1459
    %v1466 = vlaneseq
    %v1467 = vshrl.u32 %v1466, 7
    %v1468 = vsub.s32 0, %v1467
    %v1469 = vrot.slane %v1012, %v1468
    %v1470 = vadd.f32 %v1462, %v1469
    %v1471 = vadd.f32 %v1463, %v1469
    %v1472 = vadd.f32 %v1464, %v1469
    %v1473 = vadd.f32 %v1465, %v1469
    %v1474 = vmax.f32 %v1470, 0.0
    %v1475 = vmax.f32 %v1471, 0.0
    %v1476 = vmax.f32 %v1472, 0.0
    %v1477 = vmax.f32 %v1473, 0.0
    %v1479 = vsel %vm340, %v50, 0
    %v1482 = vsel %vm340, %v51, 0
    %v1485 = vsel %vm340, %v52, 0
    %v1488 = vsel %vm340, %v53, 0
    %1490 = vmatprep.subr.mxu0 0.0
    %1491 = vmatpush1.msra.mxu0 0.0
    %1492 = vmatprep.subr.mxu0 0.0
    %1493 = vmatpush1.msra.mxu0 0.0
    %1494 = vmatprep.subr.mxu0 0.0
    %1495 = vmatpush1.msra.mxu0 0.0
    %1496 = vmatprep.subr.mxu0 0.0
    %1497 = vmatpush1.msra.mxu0 0.0
    %1498 = vmatprep.subr.mxu0 0.0
    %1499 = vmatpush1.msra.mxu0 0.0
    %1500 = vmatprep.subr.mxu0 0.0
    %1501 = vmatpush1.msra.mxu0 0.0
    %1502 = vmatprep.subr.mxu0 0.0
    %1503 = vmatpush1.msra.mxu0 0.0
    %1504 = vmatprep.subr.mxu0 0.0
    %1505 = vmatpush1.msra.mxu0 0.0
    %1506 = vmatprep.subr.mxu0 0.0
    %1507 = vmatpush1.msra.mxu0 0.0
    %1508 = vmatprep.subr.mxu0 0.0
    %1509 = vmatpush1.msra.mxu0 0.0
    %1510 = vmatprep.subr.mxu0 0.0
    %1511 = vmatpush1.msra.mxu0 0.0
    %1512 = vmatprep.subr.mxu0 0.0
    %1513 = vmatpush1.msra.mxu0 0.0
    %1514 = vmatprep.subr.mxu0 0.0
    %1515 = vmatpush1.msra.mxu0 %v1477
    %1516 = vmatprep.subr.mxu0 0.0
    %1517 = vmatpush1.msra.mxu0 %v1476
    %1518 = vmatprep.subr.mxu0 0.0
    %1519 = vmatpush1.msra.mxu0 %v1475
    %1520 = vmatprep.subr.mxu0 0.0
    %1521 = vmatpush1.msra.mxu0 %v1474
    %1522 = vmatprep.subr.mxu0 0.0
    %1523 = vmatpush2.msra.mxu0 0.0
    %1524 = vmatprep.subr.mxu0 0.0
    %1525 = vmatpush2.msra.mxu0 0.0
    %1526 = vmatprep.subr.mxu0 0.0
    %1527 = vmatpush2.msra.mxu0 0.0
    %1528 = vmatprep.subr.mxu0 0.0
    %1529 = vmatpush2.msra.mxu0 0.0
    %1530 = vmatprep.subr.mxu0 0.0
    %1531 = vmatpush2.msra.mxu0 0.0
    %1532 = vmatprep.subr.mxu0 0.0
    %1533 = vmatpush2.msra.mxu0 0.0
    %1534 = vmatprep.subr.mxu0 0.0
    %1535 = vmatpush2.msra.mxu0 0.0
    %1536 = vmatprep.subr.mxu0 0.0
    %1537 = vmatpush2.msra.mxu0 0.0
    %1538 = vmatprep.subr.mxu0 0.0
    %1539 = vmatpush2.msra.mxu0 0.0
    %1540 = vmatprep.subr.mxu0 0.0
    %1541 = vmatpush2.msra.mxu0 0.0
    %1542 = vmatprep.subr.mxu0 0.0
    %1543 = vmatpush2.msra.mxu0 0.0
    %1544 = vmatprep.subr.mxu0 0.0
    %1545 = vmatpush2.msra.mxu0 0.0
    %1546 = vmatprep.subr.mxu0 0.0
    %1547 = vmatpush2.msra.mxu0 0.0
    %1548 = vmatprep.subr.mxu0 0.0
    %1549 = vmatpush2.msra.mxu0 0.0
    %1550 = vmatprep.subr.mxu0 0.0
    %1551 = vmatpush2.msra.mxu0 0.0
    %1552 = vmatprep.subr.mxu0 0.0
    %1553 = vmatpush2.msra.mxu0 0.0
    %1554 = vmatprep.mubr.f32.mxu0 0.0
    %1555 = vmatmul.mubr.f32.gmra.mxu0 %v1479
    %v1556 = vpop.f32.mrf.mxu0
    %v1557 = vadd.f32 0.0, %v1556
    %v1558 = vpop.f32.mrf.mxu0
    %1559 = vmatprep.mubr.f32.mxu0 0.0
    %1560 = vmatmul.mubr.f32.gmra.mxu0 %v1482
    %v1561 = vpop.f32.mrf.mxu0
    %v1562 = vadd.f32 0.0, %v1561
    %v1563 = vpop.f32.mrf.mxu0
    %1564 = vmatprep.mubr.f32.mxu0 0.0
    %1565 = vmatmul.mubr.f32.gmra.mxu0 %v1485
    %v1566 = vpop.f32.mrf.mxu0
    %v1567 = vadd.f32 0.0, %v1566
    %v1568 = vpop.f32.mrf.mxu0
    %1569 = vmatprep.mubr.f32.mxu0 0.0
    %1570 = vmatmul.mubr.f32.gmra.mxu0 %v1488
    %v1571 = vpop.f32.mrf.mxu0
    %v1572 = vadd.f32 0.0, %v1571
    %v1573 = vpop.f32.mrf.mxu0
    %1574 = vdwg.mxu0
    %v1575 = vld [vmem:[#allocation2 + $0xc0] sm:$0x1]
    %v1576 = vld [vmem:[#allocation2 + $0xc8] sm:$0x3]
    %v1577 = vld [vmem:[#allocation2 + $0xd0] sm:$0x3]
    %v1578 = vld [vmem:[#allocation2 + $0xd8] sm:$0x3]
    %v1580 = vsel %vm62, %v1557, 0
    %v1583 = vsel %vm62, %v1562, 0
    %v1586 = vsel %vm62, %v1567, 0
    %v1589 = vsel %vm62, %v1572, 0
    %v1592 = vsel %vm75, %v1576, 0
    %1594 = vmatprep.subr.mxu0 0.0
    %1595 = vmatpush1.msra.mxu0 0.0
    %1596 = vmatprep.subr.mxu0 0.0
    %1597 = vmatpush1.msra.mxu0 0.0
    %1598 = vmatprep.subr.mxu0 0.0
    %1599 = vmatpush1.msra.mxu0 0.0
    %1600 = vmatprep.subr.mxu0 0.0
    %1601 = vmatpush1.msra.mxu0 0.0
    %1602 = vmatprep.subr.mxu0 0.0
    %1603 = vmatpush1.msra.mxu0 0.0
    %1604 = vmatprep.subr.mxu0 0.0
    %1605 = vmatpush1.msra.mxu0 0.0
    %1606 = vmatprep.subr.mxu0 0.0
    %1607 = vmatpush1.msra.mxu0 0.0
    %1608 = vmatprep.subr.mxu0 0.0
    %1609 = vmatpush1.msra.mxu0 0.0
    %1610 = vmatprep.subr.mxu0 0.0
    %1611 = vmatpush1.msra.mxu0 0.0
    %1612 = vmatprep.subr.mxu0 0.0
    %1613 = vmatpush1.msra.mxu0 0.0
    %1614 = vmatprep.subr.mxu0 0.0
    %1615 = vmatpush1.msra.mxu0 0.0
    %1616 = vmatprep.subr.mxu0 0.0
    %1617 = vmatpush1.msra.mxu0 0.0
    %1618 = vmatprep.subr.mxu0 0.0
    %1619 = vmatpush1.msra.mxu0 0.0
    %1620 = vmatprep.subr.mxu0 0.0
    %1621 = vmatpush1.msra.mxu0 0.0
    %1622 = vmatprep.subr.mxu0 0.0
    %1623 = vmatpush1.msra.mxu0 0.0
    %1624 = vmatprep.subr.mxu0 0.0
    %1625 = vmatpush1.msra.mxu0 %v1592
    %1626 = vmatprep.subr.mxu0 0.0
    %1627 = vmatpush2.msra.mxu0 0.0
    %1628 = vmatprep.subr.mxu0 0.0
    %1629 = vmatpush2.msra.mxu0 0.0
    %1630 = vmatprep.subr.mxu0 0.0
    %1631 = vmatpush2.msra.mxu0 0.0
    %1632 = vmatprep.subr.mxu0 0.0
    %1633 = vmatpush2.msra.mxu0 0.0
    %1634 = vmatprep.subr.mxu0 0.0
    %1635 = vmatpush2.msra.mxu0 0.0
    %1636 = vmatprep.subr.mxu0 0.0
    %1637 = vmatpush2.msra.mxu0 0.0
    %1638 = vmatprep.subr.mxu0 0.0
    %1639 = vmatpush2.msra.mxu0 0.0
    %1640 = vmatprep.subr.mxu0 0.0
    %1641 = vmatpush2.msra.mxu0 0.0
    %1642 = vmatprep.subr.mxu0 0.0
    %1643 = vmatpush2.msra.mxu0 0.0
    %1644 = vmatprep.subr.mxu0 0.0
    %1645 = vmatpush2.msra.mxu0 0.0
    %1646 = vmatprep.subr.mxu0 0.0
    %1647 = vmatpush2.msra.mxu0 0.0
    %1648 = vmatprep.subr.mxu0 0.0
    %1649 = vmatpush2.msra.mxu0 0.0
    %1650 = vmatprep.subr.mxu0 0.0
    %1651 = vmatpush2.msra.mxu0 0.0
    %1652 = vmatprep.subr.mxu0 0.0
    %1653 = vmatpush2.msra.mxu0 0.0
    %1654 = vmatprep.subr.mxu0 0.0
    %1655 = vmatpush2.msra.mxu0 0.0
    %1656 = vmatprep.subr.mxu0 0.0
    %1657 = vmatpush2.msra.mxu0 0.0
    %1658 = vmatprep.mubr.f32.mxu0 0.0
    %1659 = vmatmul.mubr.f32.gmra.mxu0 %v1580
    %v1660 = vpop.f32.mrf.mxu0
    %v1661 = vadd.f32 0.0, %v1660
    %v1662 = vpop.f32.mrf.mxu0
    %1663 = vmatprep.mubr.f32.mxu0 0.0
    %1664 = vmatmul.mubr.f32.gmra.mxu0 %v1583
    %v1665 = vpop.f32.mrf.mxu0
    %v1666 = vadd.f32 0.0, %v1665
    %v1667 = vpop.f32.mrf.mxu0
    %1668 = vmatprep.mubr.f32.mxu0 0.0
    %1669 = vmatmul.mubr.f32.gmra.mxu0 %v1586
    %v1670 = vpop.f32.mrf.mxu0
    %v1671 = vadd.f32 0.0, %v1670
    %v1672 = vpop.f32.mrf.mxu0
    %1673 = vmatprep.mubr.f32.mxu0 0.0
    %1674 = vmatmul.mubr.f32.gmra.mxu0 %v1589
    %v1675 = vpop.f32.mrf.mxu0
    %v1676 = vadd.f32 0.0, %v1675
    %v1677 = vpop.f32.mrf.mxu0
    %1678 = vdwg.mxu0
    %v1680 = vsel %vm75, %v1577, 0
    %1682 = vmatprep.subr.mxu0 0.0
    %1683 = vmatpush1.msra.mxu0 0.0
    %1684 = vmatprep.subr.mxu0 0.0
    %1685 = vmatpush1.msra.mxu0 0.0
    %1686 = vmatprep.subr.mxu0 0.0
    %1687 = vmatpush1.msra.mxu0 0.0
    %1688 = vmatprep.subr.mxu0 0.0
    %1689 = vmatpush1.msra.mxu0 0.0
    %1690 = vmatprep.subr.mxu0 0.0
    %1691 = vmatpush1.msra.mxu0 0.0
    %1692 = vmatprep.subr.mxu0 0.0
    %1693 = vmatpush1.msra.mxu0 0.0
    %1694 = vmatprep.subr.mxu0 0.0
    %1695 = vmatpush1.msra.mxu0 0.0
    %1696 = vmatprep.subr.mxu0 0.0
    %1697 = vmatpush1.msra.mxu0 0.0
    %1698 = vmatprep.subr.mxu0 0.0
    %1699 = vmatpush1.msra.mxu0 0.0
    %1700 = vmatprep.subr.mxu0 0.0
    %1701 = vmatpush1.msra.mxu0 0.0
    %1702 = vmatprep.subr.mxu0 0.0
    %1703 = vmatpush1.msra.mxu0 0.0
    %1704 = vmatprep.subr.mxu0 0.0
    %1705 = vmatpush1.msra.mxu0 0.0
    %1706 = vmatprep.subr.mxu0 0.0
    %1707 = vmatpush1.msra.mxu0 0.0
    %1708 = vmatprep.subr.mxu0 0.0
    %1709 = vmatpush1.msra.mxu0 0.0
    %1710 = vmatprep.subr.mxu0 0.0
    %1711 = vmatpush1.msra.mxu0 0.0
    %1712 = vmatprep.subr.mxu0 0.0
    %1713 = vmatpush1.msra.mxu0 %v1680
    %1714 = vmatprep.subr.mxu0 0.0
    %1715 = vmatpush2.msra.mxu0 0.0
    %1716 = vmatprep.subr.mxu0 0.0
    %1717 = vmatpush2.msra.mxu0 0.0
    %1718 = vmatprep.subr.mxu0 0.0
    %1719 = vmatpush2.msra.mxu0 0.0
    %1720 = vmatprep.subr.mxu0 0.0
    %1721 = vmatpush2.msra.mxu0 0.0
    %1722 = vmatprep.subr.mxu0 0.0
    %1723 = vmatpush2.msra.mxu0 0.0
    %1724 = vmatprep.subr.mxu0 0.0
    %1725 = vmatpush2.msra.mxu0 0.0
    %1726 = vmatprep.subr.mxu0 0.0
    %1727 = vmatpush2.msra.mxu0 0.0
    %1728 = vmatprep.subr.mxu0 0.0
    %1729 = vmatpush2.msra.mxu0 0.0
    %1730 = vmatprep.subr.mxu0 0.0
    %1731 = vmatpush2.msra.mxu0 0.0
    %1732 = vmatprep.subr.mxu0 0.0
    %1733 = vmatpush2.msra.mxu0 0.0
    %1734 = vmatprep.subr.mxu0 0.0
    %1735 = vmatpush2.msra.mxu0 0.0
    %1736 = vmatprep.subr.mxu0 0.0
    %1737 = vmatpush2.msra.mxu0 0.0
    %1738 = vmatprep.subr.mxu0 0.0
    %1739 = vmatpush2.msra.mxu0 0.0
    %1740 = vmatprep.subr.mxu0 0.0
    %1741 = vmatpush2.msra.mxu0 0.0
    %1742 = vmatprep.subr.mxu0 0.0
    %1743 = vmatpush2.msra.mxu0 0.0
    %1744 = vmatprep.subr.mxu0 0.0
    %1745 = vmatpush2.msra.mxu0 0.0
    %1746 = vmatprep.mubr.f32.mxu0 0.0
    %1747 = vmatmul.mubr.f32.gmra.mxu0 %v1580
    %v1748 = vpop.f32.mrf.mxu0
    %v1749 = vadd.f32 0.0, %v1748
    %v1750 = vpop.f32.mrf.mxu0
    %1751 = vmatprep.mubr.f32.mxu0 0.0
    %1752 = vmatmul.mubr.f32.gmra.mxu0 %v1583
    %v1753 = vpop.f32.mrf.mxu0
    %v1754 = vadd.f32 0.0, %v1753
    %v1755 = vpop.f32.mrf.mxu0
    %1756 = vmatprep.mubr.f32.mxu0 0.0
    %1757 = vmatmul.mubr.f32.gmra.mxu0 %v1586
    %v1758 = vpop.f32.mrf.mxu0
    %v1759 = vadd.f32 0.0, %v1758
    %v1760 = vpop.f32.mrf.mxu0
    %1761 = vmatprep.mubr.f32.mxu0 0.0
    %1762 = vmatmul.mubr.f32.gmra.mxu0 %v1589
    %v1763 = vpop.f32.mrf.mxu0
    %v1764 = vadd.f32 0.0, %v1763
    %v1765 = vpop.f32.mrf.mxu0
    %1766 = vdwg.mxu0
    %v1768 = vsel %vm75, %v1578, 0
    %1770 = vmatprep.subr.mxu0 0.0
    %1771 = vmatpush1.msra.mxu0 0.0
    %1772 = vmatprep.subr.mxu0 0.0
    %1773 = vmatpush1.msra.mxu0 0.0
    %1774 = vmatprep.subr.mxu0 0.0
    %1775 = vmatpush1.msra.mxu0 0.0
    %1776 = vmatprep.subr.mxu0 0.0
    %1777 = vmatpush1.msra.mxu0 0.0
    %1778 = vmatprep.subr.mxu0 0.0
    %1779 = vmatpush1.msra.mxu0 0.0
    %1780 = vmatprep.subr.mxu0 0.0
    %1781 = vmatpush1.msra.mxu0 0.0
    %1782 = vmatprep.subr.mxu0 0.0
    %1783 = vmatpush1.msra.mxu0 0.0
    %1784 = vmatprep.subr.mxu0 0.0
    %1785 = vmatpush1.msra.mxu0 0.0
    %1786 = vmatprep.subr.mxu0 0.0
    %1787 = vmatpush1.msra.mxu0 0.0
    %1788 = vmatprep.subr.mxu0 0.0
    %1789 = vmatpush1.msra.mxu0 0.0
    %1790 = vmatprep.subr.mxu0 0.0
    %1791 = vmatpush1.msra.mxu0 0.0
    %1792 = vmatprep.subr.mxu0 0.0
    %1793 = vmatpush1.msra.mxu0 0.0
    %1794 = vmatprep.subr.mxu0 0.0
    %1795 = vmatpush1.msra.mxu0 0.0
    %1796 = vmatprep.subr.mxu0 0.0
    %1797 = vmatpush1.msra.mxu0 0.0
    %1798 = vmatprep.subr.mxu0 0.0
    %1799 = vmatpush1.msra.mxu0 0.0
    %1800 = vmatprep.subr.mxu0 0.0
    %1801 = vmatpush1.msra.mxu0 %v1768
    %1802 = vmatprep.subr.mxu0 0.0
    %1803 = vmatpush2.msra.mxu0 0.0
    %1804 = vmatprep.subr.mxu0 0.0
    %1805 = vmatpush2.msra.mxu0 0.0
    %1806 = vmatprep.subr.mxu0 0.0
    %1807 = vmatpush2.msra.mxu0 0.0
    %1808 = vmatprep.subr.mxu0 0.0
    %1809 = vmatpush2.msra.mxu0 0.0
    %1810 = vmatprep.subr.mxu0 0.0
    %1811 = vmatpush2.msra.mxu0 0.0
    %1812 = vmatprep.subr.mxu0 0.0
    %1813 = vmatpush2.msra.mxu0 0.0
    %1814 = vmatprep.subr.mxu0 0.0
    %1815 = vmatpush2.msra.mxu0 0.0
    %1816 = vmatprep.subr.mxu0 0.0
    %1817 = vmatpush2.msra.mxu0 0.0
    %1818 = vmatprep.subr.mxu0 0.0
    %1819 = vmatpush2.msra.mxu0 0.0
    %1820 = vmatprep.subr.mxu0 0.0
    %1821 = vmatpush2.msra.mxu0 0.0
    %1822 = vmatprep.subr.mxu0 0.0
    %1823 = vmatpush2.msra.mxu0 0.0
    %1824 = vmatprep.subr.mxu0 0.0
    %1825 = vmatpush2.msra.mxu0 0.0
    %1826 = vmatprep.subr.mxu0 0.0
    %1827 = vmatpush2.msra.mxu0 0.0
    %1828 = vmatprep.subr.mxu0 0.0
    %1829 = vmatpush2.msra.mxu0 0.0
    %1830 = vmatprep.subr.mxu0 0.0
    %1831 = vmatpush2.msra.mxu0 0.0
    %1832 = vmatprep.subr.mxu0 0.0
    %1833 = vmatpush2.msra.mxu0 0.0
    %1834 = vmatprep.mubr.f32.mxu0 0.0
    %1835 = vmatmul.mubr.f32.gmra.mxu0 %v1580
    %v1836 = vpop.f32.mrf.mxu0
    %v1837 = vadd.f32 0.0, %v1836
    %v1838 = vpop.f32.mrf.mxu0
    %1839 = vmatprep.mubr.f32.mxu0 0.0
    %1840 = vmatmul.mubr.f32.gmra.mxu0 %v1583
    %v1841 = vpop.f32.mrf.mxu0
    %v1842 = vadd.f32 0.0, %v1841
    %v1843 = vpop.f32.mrf.mxu0
    %1844 = vmatprep.mubr.f32.mxu0 0.0
    %1845 = vmatmul.mubr.f32.gmra.mxu0 %v1586
    %v1846 = vpop.f32.mrf.mxu0
    %v1847 = vadd.f32 0.0, %v1846
    %v1848 = vpop.f32.mrf.mxu0
    %1849 = vmatprep.mubr.f32.mxu0 0.0
    %1850 = vmatmul.mubr.f32.gmra.mxu0 %v1589
    %v1851 = vpop.f32.mrf.mxu0
    %v1852 = vadd.f32 0.0, %v1851
    %v1853 = vpop.f32.mrf.mxu0
    %1854 = vdwg.mxu0
    %1855 = vmatprep.subr.mxu0 0.0
    %1856 = vmatpush1.msra.mxu0 0.0
    %1857 = vmatprep.subr.mxu0 0.0
    %1858 = vmatpush1.msra.mxu0 0.0
    %1859 = vmatprep.subr.mxu0 0.0
    %1860 = vmatpush1.msra.mxu0 0.0
    %1861 = vmatprep.subr.mxu0 0.0
    %1862 = vmatpush1.msra.mxu0 0.0
    %1863 = vmatprep.subr.mxu0 0.0
    %1864 = vmatpush1.msra.mxu0 0.0
    %1865 = vmatprep.subr.mxu0 0.0
    %1866 = vmatpush1.msra.mxu0 0.0
    %1867 = vmatprep.subr.mxu0 0.0
    %1868 = vmatpush1.msra.mxu0 0.0
    %1869 = vmatprep.subr.mxu0 0.0
    %1870 = vmatpush1.msra.mxu0 0.0
    %1871 = vmatprep.subr.mxu0 0.0
    %1872 = vmatpush1.msra.mxu0 0.0
    %1873 = vmatprep.subr.mxu0 0.0
    %1874 = vmatpush1.msra.mxu0 0.0
    %1875 = vmatprep.subr.mxu0 0.0
    %1876 = vmatpush1.msra.mxu0 0.0
    %1877 = vmatprep.subr.mxu0 0.0
    %1878 = vmatpush1.msra.mxu0 0.0
    %1879 = vmatprep.subr.mxu0 0.0
    %1880 = vmatpush1.msra.mxu0 %v1676
    %1881 = vmatprep.subr.mxu0 0.0
    %1882 = vmatpush1.msra.mxu0 %v1671
    %1883 = vmatprep.subr.mxu0 0.0
    %1884 = vmatpush1.msra.mxu0 %v1666
    %1885 = vmatprep.subr.mxu0 0.0
    %1886 = vmatpush1.msra.mxu0 %v1661
    %1887 = vmatprep.subr.mxu0 0.0
    %1888 = vmatpush2.msra.mxu0 0.0
    %1889 = vmatprep.subr.mxu0 0.0
    %1890 = vmatpush2.msra.mxu0 0.0
    %1891 = vmatprep.subr.mxu0 0.0
    %1892 = vmatpush2.msra.mxu0 0.0
    %1893 = vmatprep.subr.mxu0 0.0
    %1894 = vmatpush2.msra.mxu0 0.0
    %1895 = vmatprep.subr.mxu0 0.0
    %1896 = vmatpush2.msra.mxu0 0.0
    %1897 = vmatprep.subr.mxu0 0.0
    %1898 = vmatpush2.msra.mxu0 0.0
    %1899 = vmatprep.subr.mxu0 0.0
    %1900 = vmatpush2.msra.mxu0 0.0
    %1901 = vmatprep.subr.mxu0 0.0
    %1902 = vmatpush2.msra.mxu0 0.0
    %1903 = vmatprep.subr.mxu0 0.0
    %1904 = vmatpush2.msra.mxu0 0.0
    %1905 = vmatprep.subr.mxu0 0.0
    %1906 = vmatpush2.msra.mxu0 0.0
    %1907 = vmatprep.subr.mxu0 0.0
    %1908 = vmatpush2.msra.mxu0 0.0
    %1909 = vmatprep.subr.mxu0 0.0
    %1910 = vmatpush2.msra.mxu0 0.0
    %1911 = vmatprep.subr.mxu0 0.0
    %1912 = vmatpush2.msra.mxu0 0.0
    %1913 = vmatprep.subr.mxu0 0.0
    %1914 = vmatpush2.msra.mxu0 0.0
    %1915 = vmatprep.subr.mxu0 0.0
    %1916 = vmatpush2.msra.mxu0 0.0
    %1917 = vmatprep.subr.mxu0 0.0
    %1918 = vmatpush2.msra.mxu0 0.0
    %1919 = vmatprep.mubr.f32.mxu0 0.0
    %1920 = vmatmul.mubr.f32.gmra.mxu0 %v342
    %v1921 = vpop.f32.mrf.mxu0
    %v1922 = vadd.f32 %v1749, %v1921
    %v1923 = vpop.f32.mrf.mxu0
    %1924 = vmatprep.mubr.f32.mxu0 0.0
    %1925 = vmatmul.mubr.f32.gmra.mxu0 %v345
    %v1926 = vpop.f32.mrf.mxu0
    %v1927 = vadd.f32 %v1754, %v1926
    %v1928 = vpop.f32.mrf.mxu0
    %1929 = vmatprep.mubr.f32.mxu0 0.0
    %1930 = vmatmul.mubr.f32.gmra.mxu0 %v348
    %v1931 = vpop.f32.mrf.mxu0
    %v1932 = vadd.f32 %v1759, %v1931
    %v1933 = vpop.f32.mrf.mxu0
    %1934 = vmatprep.mubr.f32.mxu0 0.0
    %1935 = vmatmul.mubr.f32.gmra.mxu0 %v351
    %v1936 = vpop.f32.mrf.mxu0
    %v1937 = vadd.f32 %v1764, %v1936
    %v1938 = vpop.f32.mrf.mxu0
    %1939 = vdwg.mxu0
    %1940 = vmatprep.subr.mxu0 0.0
    %1941 = vmatpush1.msra.mxu0 0.0
    %1942 = vmatprep.subr.mxu0 0.0
    %1943 = vmatpush1.msra.mxu0 0.0
    %1944 = vmatprep.subr.mxu0 0.0
    %1945 = vmatpush1.msra.mxu0 0.0
    %1946 = vmatprep.subr.mxu0 0.0
    %1947 = vmatpush1.msra.mxu0 0.0
    %1948 = vmatprep.subr.mxu0 0.0
    %1949 = vmatpush1.msra.mxu0 0.0
    %1950 = vmatprep.subr.mxu0 0.0
    %1951 = vmatpush1.msra.mxu0 0.0
    %1952 = vmatprep.subr.mxu0 0.0
    %1953 = vmatpush1.msra.mxu0 0.0
    %1954 = vmatprep.subr.mxu0 0.0
    %1955 = vmatpush1.msra.mxu0 0.0
    %1956 = vmatprep.subr.mxu0 0.0
    %1957 = vmatpush1.msra.mxu0 0.0
    %1958 = vmatprep.subr.mxu0 0.0
    %1959 = vmatpush1.msra.mxu0 0.0
    %1960 = vmatprep.subr.mxu0 0.0
    %1961 = vmatpush1.msra.mxu0 0.0
    %1962 = vmatprep.subr.mxu0 0.0
    %1963 = vmatpush1.msra.mxu0 0.0
    %1964 = vmatprep.subr.mxu0 0.0
    %1965 = vmatpush1.msra.mxu0 %v1852
    %1966 = vmatprep.subr.mxu0 0.0
    %1967 = vmatpush1.msra.mxu0 %v1847
    %1968 = vmatprep.subr.mxu0 0.0
    %1969 = vmatpush1.msra.mxu0 %v1842
    %1970 = vmatprep.subr.mxu0 0.0
    %1971 = vmatpush1.msra.mxu0 %v1837
    %1972 = vmatprep.subr.mxu0 0.0
    %1973 = vmatpush2.msra.mxu0 0.0
    %1974 = vmatprep.subr.mxu0 0.0
    %1975 = vmatpush2.msra.mxu0 0.0
    %1976 = vmatprep.subr.mxu0 0.0
    %1977 = vmatpush2.msra.mxu0 0.0
    %1978 = vmatprep.subr.mxu0 0.0
    %1979 = vmatpush2.msra.mxu0 0.0
    %1980 = vmatprep.subr.mxu0 0.0
    %1981 = vmatpush2.msra.mxu0 0.0
    %1982 = vmatprep.subr.mxu0 0.0
    %1983 = vmatpush2.msra.mxu0 0.0
    %1984 = vmatprep.subr.mxu0 0.0
    %1985 = vmatpush2.msra.mxu0 0.0
    %1986 = vmatprep.subr.mxu0 0.0
    %1987 = vmatpush2.msra.mxu0 0.0
    %1988 = vmatprep.subr.mxu0 0.0
    %1989 = vmatpush2.msra.mxu0 0.0
    %1990 = vmatprep.subr.mxu0 0.0
    %1991 = vmatpush2.msra.mxu0 0.0
    %1992 = vmatprep.subr.mxu0 0.0
    %1993 = vmatpush2.msra.mxu0 0.0
    %1994 = vmatprep.subr.mxu0 0.0
    %1995 = vmatpush2.msra.mxu0 0.0
    %1996 = vmatprep.subr.mxu0 0.0
    %1997 = vmatpush2.msra.mxu0 0.0
    %1998 = vmatprep.subr.mxu0 0.0
    %1999 = vmatpush2.msra.mxu0 0.0
    %2000 = vmatprep.subr.mxu0 0.0
    %2001 = vmatpush2.msra.mxu0 0.0
    %2002 = vmatprep.subr.mxu0 0.0
    %2003 = vmatpush2.msra.mxu0 0.0
    %2004 = vmatprep.mubr.f32.mxu0 0.0
    %2005 = vmatmul.mubr.f32.gmra.mxu0 %v439
    %v2006 = vpop.f32.mrf.mxu0
    %v2007 = vadd.f32 0.0, %v2006
    %v2008 = vpop.f32.mrf.mxu0
    %2009 = vmatprep.mubr.f32.mxu0 0.0
    %2010 = vmatmul.mubr.f32.gmra.mxu0 %v442
    %v2011 = vpop.f32.mrf.mxu0
    %v2012 = vadd.f32 0.0, %v2011
    %v2013 = vpop.f32.mrf.mxu0
    %2014 = vmatprep.mubr.f32.mxu0 0.0
    %2015 = vmatmul.mubr.f32.gmra.mxu0 %v445
    %v2016 = vpop.f32.mrf.mxu0
    %v2017 = vadd.f32 0.0, %v2016
    %v2018 = vpop.f32.mrf.mxu0
    %2019 = vmatprep.mubr.f32.mxu0 0.0
    %2020 = vmatmul.mubr.f32.gmra.mxu0 %v448
    %v2021 = vpop.f32.mrf.mxu0
    %v2022 = vadd.f32 0.0, %v2021
    %v2023 = vpop.f32.mrf.mxu0
    %2024 = vdwg.mxu0
    %v2025 = vadd.f32 %v1922, %v2007
    %v2026 = vadd.f32 %v1927, %v2012
    %v2027 = vadd.f32 %v1932, %v2017
    %v2028 = vadd.f32 %v1937, %v2022
    %v2029 = vlaneseq
    %v2030 = vshrl.u32 %v2029, 7
    %v2031 = vsub.s32 0, %v2030
    %v2032 = vrot.slane %v1575, %v2031
    %v2033 = vadd.f32 %v2025, %v2032
    %v2034 = vadd.f32 %v2026, %v2032
    %v2035 = vadd.f32 %v2027, %v2032
    %v2036 = vadd.f32 %v2028, %v2032
    %v2037 = vmax.f32 %v2033, 0.0
    %v2038 = vmax.f32 %v2034, 0.0
    %v2039 = vmax.f32 %v2035, 0.0
    %v2040 = vmax.f32 %v2036, 0.0
    %v2041 = vld [vmem:[#allocation2 + $0xe0] sm:$0x1]
    %v2042 = vld [vmem:[#allocation2 + $0xe8] sm:$0xff]
    %v2043 = vld [vmem:[#allocation2 + $0xf0] sm:$0xff]
    %v2044 = vld [vmem:[#allocation2 + $0xf8] sm:$0xff]
    %v2045 = vld [vmem:[#allocation2 + $0x100] sm:$0xff]
    %v2046 = vld [vmem:[#allocation2 + $0x108] sm:$0xff]
    %v2047 = vld [vmem:[#allocation2 + $0x110] sm:$0xff]
    %v2048 = vld [vmem:[#allocation2 + $0x118] sm:$0xff]
    %v2049 = vld [vmem:[#allocation2 + $0x120] sm:$0xff]
    %v2050 = vld [vmem:[#allocation2 + $0x128] sm:$0xff]
    %v2051 = vld [vmem:[#allocation2 + $0x130] sm:$0xff]
    %v2052 = vld [vmem:[#allocation2 + $0x138] sm:$0xff]
    %v2053 = vld [vmem:[#allocation2 + $0x140] sm:$0xff]
    %v2055 = vsel %vm340, %v2037, 0
    %v2058 = vsel %vm340, %v2038, 0
    %v2061 = vsel %vm340, %v2039, 0
    %v2064 = vsel %vm340, %v2040, 0
    %2066 = vmatprep.subr.mxu0 0.0
    %2067 = vmatpush1.msra.mxu0 0.0
    %2068 = vmatprep.subr.mxu0 0.0
    %2069 = vmatpush1.msra.mxu0 0.0
    %2070 = vmatprep.subr.mxu0 0.0
    %2071 = vmatpush1.msra.mxu0 0.0
    %2072 = vmatprep.subr.mxu0 0.0
    %2073 = vmatpush1.msra.mxu0 0.0
    %2074 = vmatprep.subr.mxu0 0.0
    %2075 = vmatpush1.msra.mxu0 0.0
    %2076 = vmatprep.subr.mxu0 0.0
    %2077 = vmatpush1.msra.mxu0 0.0
    %2078 = vmatprep.subr.mxu0 0.0
    %2079 = vmatpush1.msra.mxu0 0.0
    %2080 = vmatprep.subr.mxu0 0.0
    %2081 = vmatpush1.msra.mxu0 0.0
    %2082 = vmatprep.subr.mxu0 0.0
    %2083 = vmatpush1.msra.mxu0 0.0
    %2084 = vmatprep.subr.mxu0 0.0
    %2085 = vmatpush1.msra.mxu0 0.0
    %2086 = vmatprep.subr.mxu0 0.0
    %2087 = vmatpush1.msra.mxu0 0.0
    %2088 = vmatprep.subr.mxu0 0.0
    %2089 = vmatpush1.msra.mxu0 0.0
    %2090 = vmatprep.subr.mxu0 0.0
    %2091 = vmatpush1.msra.mxu0 %v2045
    %2092 = vmatprep.subr.mxu0 0.0
    %2093 = vmatpush1.msra.mxu0 %v2044
    %2094 = vmatprep.subr.mxu0 0.0
    %2095 = vmatpush1.msra.mxu0 %v2043
    %2096 = vmatprep.subr.mxu0 0.0
    %2097 = vmatpush1.msra.mxu0 %v2042
    %2098 = vmatprep.subr.mxu0 0.0
    %2099 = vmatpush2.msra.mxu0 0.0
    %2100 = vmatprep.subr.mxu0 0.0
    %2101 = vmatpush2.msra.mxu0 0.0
    %2102 = vmatprep.subr.mxu0 0.0
    %2103 = vmatpush2.msra.mxu0 0.0
    %2104 = vmatprep.subr.mxu0 0.0
    %2105 = vmatpush2.msra.mxu0 0.0
    %2106 = vmatprep.subr.mxu0 0.0
    %2107 = vmatpush2.msra.mxu0 0.0
    %2108 = vmatprep.subr.mxu0 0.0
    %2109 = vmatpush2.msra.mxu0 0.0
    %2110 = vmatprep.subr.mxu0 0.0
    %2111 = vmatpush2.msra.mxu0 0.0
    %2112 = vmatprep.subr.mxu0 0.0
    %2113 = vmatpush2.msra.mxu0 0.0
    %2114 = vmatprep.subr.mxu0 0.0
    %2115 = vmatpush2.msra.mxu0 0.0
    %2116 = vmatprep.subr.mxu0 0.0
    %2117 = vmatpush2.msra.mxu0 0.0
    %2118 = vmatprep.subr.mxu0 0.0
    %2119 = vmatpush2.msra.mxu0 0.0
    %2120 = vmatprep.subr.mxu0 0.0
    %2121 = vmatpush2.msra.mxu0 0.0
    %2122 = vmatprep.subr.mxu0 0.0
    %2123 = vmatpush2.msra.mxu0 0.0
    %2124 = vmatprep.subr.mxu0 0.0
    %2125 = vmatpush2.msra.mxu0 0.0
    %2126 = vmatprep.subr.mxu0 0.0
    %2127 = vmatpush2.msra.mxu0 0.0
    %2128 = vmatprep.subr.mxu0 0.0
    %2129 = vmatpush2.msra.mxu0 0.0
    %2130 = vmatprep.mubr.f32.mxu0 0.0
    %2131 = vmatmul.mubr.f32.gmra.mxu0 %v2055
    %v2132 = vpop.f32.mrf.mxu0
    %v2133 = vadd.f32 0.0, %v2132
    %v2134 = vpop.f32.mrf.mxu0
    %2135 = vmatprep.mubr.f32.mxu0 0.0
    %2136 = vmatmul.mubr.f32.gmra.mxu0 %v2058
    %v2137 = vpop.f32.mrf.mxu0
    %v2138 = vadd.f32 0.0, %v2137
    %v2139 = vpop.f32.mrf.mxu0
    %2140 = vmatprep.mubr.f32.mxu0 0.0
    %2141 = vmatmul.mubr.f32.gmra.mxu0 %v2061
    %v2142 = vpop.f32.mrf.mxu0
    %v2143 = vadd.f32 0.0, %v2142
    %v2144 = vpop.f32.mrf.mxu0
    %2145 = vmatprep.mubr.f32.mxu0 0.0
    %2146 = vmatmul.mubr.f32.gmra.mxu0 %v2064
    %v2147 = vpop.f32.mrf.mxu0
    %v2148 = vadd.f32 0.0, %v2147
    %v2149 = vpop.f32.mrf.mxu0
    %2150 = vdwg.mxu0
    %2151 = vmatprep.subr.mxu0 0.0
    %2152 = vmatpush1.msra.mxu0 0.0
    %2153 = vmatprep.subr.mxu0 0.0
    %2154 = vmatpush1.msra.mxu0 0.0
    %2155 = vmatprep.subr.mxu0 0.0
    %2156 = vmatpush1.msra.mxu0 0.0
    %2157 = vmatprep.subr.mxu0 0.0
    %2158 = vmatpush1.msra.mxu0 0.0
    %2159 = vmatprep.subr.mxu0 0.0
    %2160 = vmatpush1.msra.mxu0 0.0
    %2161 = vmatprep.subr.mxu0 0.0
    %2162 = vmatpush1.msra.mxu0 0.0
    %2163 = vmatprep.subr.mxu0 0.0
    %2164 = vmatpush1.msra.mxu0 0.0
    %2165 = vmatprep.subr.mxu0 0.0
    %2166 = vmatpush1.msra.mxu0 0.0
    %2167 = vmatprep.subr.mxu0 0.0
    %2168 = vmatpush1.msra.mxu0 0.0
    %2169 = vmatprep.subr.mxu0 0.0
    %2170 = vmatpush1.msra.mxu0 0.0
    %2171 = vmatprep.subr.mxu0 0.0
    %2172 = vmatpush1.msra.mxu0 0.0
    %2173 = vmatprep.subr.mxu0 0.0
    %2174 = vmatpush1.msra.mxu0 0.0
    %2175 = vmatprep.subr.mxu0 0.0
    %2176 = vmatpush1.msra.mxu0 %v2049
    %2177 = vmatprep.subr.mxu0 0.0
    %2178 = vmatpush1.msra.mxu0 %v2048
    %2179 = vmatprep.subr.mxu0 0.0
    %2180 = vmatpush1.msra.mxu0 %v2047
    %2181 = vmatprep.subr.mxu0 0.0
    %2182 = vmatpush1.msra.mxu0 %v2046
    %2183 = vmatprep.subr.mxu0 0.0
    %2184 = vmatpush2.msra.mxu0 0.0
    %2185 = vmatprep.subr.mxu0 0.0
    %2186 = vmatpush2.msra.mxu0 0.0
    %2187 = vmatprep.subr.mxu0 0.0
    %2188 = vmatpush2.msra.mxu0 0.0
    %2189 = vmatprep.subr.mxu0 0.0
    %2190 = vmatpush2.msra.mxu0 0.0
    %2191 = vmatprep.subr.mxu0 0.0
    %2192 = vmatpush2.msra.mxu0 0.0
    %2193 = vmatprep.subr.mxu0 0.0
    %2194 = vmatpush2.msra.mxu0 0.0
    %2195 = vmatprep.subr.mxu0 0.0
    %2196 = vmatpush2.msra.mxu0 0.0
    %2197 = vmatprep.subr.mxu0 0.0
    %2198 = vmatpush2.msra.mxu0 0.0
    %2199 = vmatprep.subr.mxu0 0.0
    %2200 = vmatpush2.msra.mxu0 0.0
    %2201 = vmatprep.subr.mxu0 0.0
    %2202 = vmatpush2.msra.mxu0 0.0
    %2203 = vmatprep.subr.mxu0 0.0
    %2204 = vmatpush2.msra.mxu0 0.0
    %2205 = vmatprep.subr.mxu0 0.0
    %2206 = vmatpush2.msra.mxu0 0.0
    %2207 = vmatprep.subr.mxu0 0.0
    %2208 = vmatpush2.msra.mxu0 0.0
    %2209 = vmatprep.subr.mxu0 0.0
    %2210 = vmatpush2.msra.mxu0 0.0
    %2211 = vmatprep.subr.mxu0 0.0
    %2212 = vmatpush2.msra.mxu0 0.0
    %2213 = vmatprep.subr.mxu0 0.0
    %2214 = vmatpush2.msra.mxu0 0.0
    %2215 = vmatprep.mubr.f32.mxu0 0.0
    %2216 = vmatmul.mubr.f32.gmra.mxu0 %v2055
    %v2217 = vpop.f32.mrf.mxu0
    %v2218 = vadd.f32 0.0, %v2217
    %v2219 = vpop.f32.mrf.mxu0
    %2220 = vmatprep.mubr.f32.mxu0 0.0
    %2221 = vmatmul.mubr.f32.gmra.mxu0 %v2058
    %v2222 = vpop.f32.mrf.mxu0
    %v2223 = vadd.f32 0.0, %v2222
    %v2224 = vpop.f32.mrf.mxu0
    %2225 = vmatprep.mubr.f32.mxu0 0.0
    %2226 = vmatmul.mubr.f32.gmra.mxu0 %v2061
    %v2227 = vpop.f32.mrf.mxu0
    %v2228 = vadd.f32 0.0, %v2227
    %v2229 = vpop.f32.mrf.mxu0
    %2230 = vmatprep.mubr.f32.mxu0 0.0
    %2231 = vmatmul.mubr.f32.gmra.mxu0 %v2064
    %v2232 = vpop.f32.mrf.mxu0
    %v2233 = vadd.f32 0.0, %v2232
    %v2234 = vpop.f32.mrf.mxu0
    %2235 = vdwg.mxu0
    %2236 = vmatprep.subr.mxu0 0.0
    %2237 = vmatpush1.msra.mxu0 0.0
    %2238 = vmatprep.subr.mxu0 0.0
    %2239 = vmatpush1.msra.mxu0 0.0
    %2240 = vmatprep.subr.mxu0 0.0
    %2241 = vmatpush1.msra.mxu0 0.0
    %2242 = vmatprep.subr.mxu0 0.0
    %2243 = vmatpush1.msra.mxu0 0.0
    %2244 = vmatprep.subr.mxu0 0.0
    %2245 = vmatpush1.msra.mxu0 0.0
    %2246 = vmatprep.subr.mxu0 0.0
    %2247 = vmatpush1.msra.mxu0 0.0
    %2248 = vmatprep.subr.mxu0 0.0
    %2249 = vmatpush1.msra.mxu0 0.0
    %2250 = vmatprep.subr.mxu0 0.0
    %2251 = vmatpush1.msra.mxu0 0.0
    %2252 = vmatprep.subr.mxu0 0.0
    %2253 = vmatpush1.msra.mxu0 0.0
    %2254 = vmatprep.subr.mxu0 0.0
    %2255 = vmatpush1.msra.mxu0 0.0
    %2256 = vmatprep.subr.mxu0 0.0
    %2257 = vmatpush1.msra.mxu0 0.0
    %2258 = vmatprep.subr.mxu0 0.0
    %2259 = vmatpush1.msra.mxu0 0.0
    %2260 = vmatprep.subr.mxu0 0.0
    %2261 = vmatpush1.msra.mxu0 %v2053
    %2262 = vmatprep.subr.mxu0 0.0
    %2263 = vmatpush1.msra.mxu0 %v2052
    %2264 = vmatprep.subr.mxu0 0.0
    %2265 = vmatpush1.msra.mxu0 %v2051
    %2266 = vmatprep.subr.mxu0 0.0
    %2267 = vmatpush1.msra.mxu0 %v2050
    %2268 = vmatprep.subr.mxu0 0.0
    %2269 = vmatpush2.msra.mxu0 0.0
    %2270 = vmatprep.subr.mxu0 0.0
    %2271 = vmatpush2.msra.mxu0 0.0
    %2272 = vmatprep.subr.mxu0 0.0
    %2273 = vmatpush2.msra.mxu0 0.0
    %2274 = vmatprep.subr.mxu0 0.0
    %2275 = vmatpush2.msra.mxu0 0.0
    %2276 = vmatprep.subr.mxu0 0.0
    %2277 = vmatpush2.msra.mxu0 0.0
    %2278 = vmatprep.subr.mxu0 0.0
    %2279 = vmatpush2.msra.mxu0 0.0
    %2280 = vmatprep.subr.mxu0 0.0
    %2281 = vmatpush2.msra.mxu0 0.0
    %2282 = vmatprep.subr.mxu0 0.0
    %2283 = vmatpush2.msra.mxu0 0.0
    %2284 = vmatprep.subr.mxu0 0.0
    %2285 = vmatpush2.msra.mxu0 0.0
    %2286 = vmatprep.subr.mxu0 0.0
    %2287 = vmatpush2.msra.mxu0 0.0
    %2288 = vmatprep.subr.mxu0 0.0
    %2289 = vmatpush2.msra.mxu0 0.0
    %2290 = vmatprep.subr.mxu0 0.0
    %2291 = vmatpush2.msra.mxu0 0.0
    %2292 = vmatprep.subr.mxu0 0.0
    %2293 = vmatpush2.msra.mxu0 0.0
    %2294 = vmatprep.subr.mxu0 0.0
    %2295 = vmatpush2.msra.mxu0 0.0
    %2296 = vmatprep.subr.mxu0 0.0
    %2297 = vmatpush2.msra.mxu0 0.0
    %2298 = vmatprep.subr.mxu0 0.0
    %2299 = vmatpush2.msra.mxu0 0.0
    %2300 = vmatprep.mubr.f32.mxu0 0.0
    %2301 = vmatmul.mubr.f32.gmra.mxu0 %v2055
    %v2302 = vpop.f32.mrf.mxu0
    %v2303 = vadd.f32 0.0, %v2302
    %v2304 = vpop.f32.mrf.mxu0
    %2305 = vmatprep.mubr.f32.mxu0 0.0
    %2306 = vmatmul.mubr.f32.gmra.mxu0 %v2058
    %v2307 = vpop.f32.mrf.mxu0
    %v2308 = vadd.f32 0.0, %v2307
    %v2309 = vpop.f32.mrf.mxu0
    %2310 = vmatprep.mubr.f32.mxu0 0.0
    %2311 = vmatmul.mubr.f32.gmra.mxu0 %v2061
    %v2312 = vpop.f32.mrf.mxu0
    %v2313 = vadd.f32 0.0, %v2312
    %v2314 = vpop.f32.mrf.mxu0
    %2315 = vmatprep.mubr.f32.mxu0 0.0
    %2316 = vmatmul.mubr.f32.gmra.mxu0 %v2064
    %v2317 = vpop.f32.mrf.mxu0
    %v2318 = vadd.f32 0.0, %v2317
    %v2319 = vpop.f32.mrf.mxu0
    %2320 = vdwg.mxu0
    %2321 = vmatprep.subr.mxu0 0.0
    %2322 = vmatpush1.msra.mxu0 0.0
    %2323 = vmatprep.subr.mxu0 0.0
    %2324 = vmatpush1.msra.mxu0 0.0
    %2325 = vmatprep.subr.mxu0 0.0
    %2326 = vmatpush1.msra.mxu0 0.0
    %2327 = vmatprep.subr.mxu0 0.0
    %2328 = vmatpush1.msra.mxu0 0.0
    %2329 = vmatprep.subr.mxu0 0.0
    %2330 = vmatpush1.msra.mxu0 0.0
    %2331 = vmatprep.subr.mxu0 0.0
    %2332 = vmatpush1.msra.mxu0 0.0
    %2333 = vmatprep.subr.mxu0 0.0
    %2334 = vmatpush1.msra.mxu0 0.0
    %2335 = vmatprep.subr.mxu0 0.0
    %2336 = vmatpush1.msra.mxu0 0.0
    %2337 = vmatprep.subr.mxu0 0.0
    %2338 = vmatpush1.msra.mxu0 0.0
    %2339 = vmatprep.subr.mxu0 0.0
    %2340 = vmatpush1.msra.mxu0 0.0
    %2341 = vmatprep.subr.mxu0 0.0
    %2342 = vmatpush1.msra.mxu0 0.0
    %2343 = vmatprep.subr.mxu0 0.0
    %2344 = vmatpush1.msra.mxu0 0.0
    %2345 = vmatprep.subr.mxu0 0.0
    %2346 = vmatpush1.msra.mxu0 %v2148
    %2347 = vmatprep.subr.mxu0 0.0
    %2348 = vmatpush1.msra.mxu0 %v2143
    %2349 = vmatprep.subr.mxu0 0.0
    %2350 = vmatpush1.msra.mxu0 %v2138
    %2351 = vmatprep.subr.mxu0 0.0
    %2352 = vmatpush1.msra.mxu0 %v2133
    %2353 = vmatprep.subr.mxu0 0.0
    %2354 = vmatpush2.msra.mxu0 0.0
    %2355 = vmatprep.subr.mxu0 0.0
    %2356 = vmatpush2.msra.mxu0 0.0
    %2357 = vmatprep.subr.mxu0 0.0
    %2358 = vmatpush2.msra.mxu0 0.0
    %2359 = vmatprep.subr.mxu0 0.0
    %2360 = vmatpush2.msra.mxu0 0.0
    %2361 = vmatprep.subr.mxu0 0.0
    %2362 = vmatpush2.msra.mxu0 0.0
    %2363 = vmatprep.subr.mxu0 0.0
    %2364 = vmatpush2.msra.mxu0 0.0
    %2365 = vmatprep.subr.mxu0 0.0
    %2366 = vmatpush2.msra.mxu0 0.0
    %2367 = vmatprep.subr.mxu0 0.0
    %2368 = vmatpush2.msra.mxu0 0.0
    %2369 = vmatprep.subr.mxu0 0.0
    %2370 = vmatpush2.msra.mxu0 0.0
    %2371 = vmatprep.subr.mxu0 0.0
    %2372 = vmatpush2.msra.mxu0 0.0
    %2373 = vmatprep.subr.mxu0 0.0
    %2374 = vmatpush2.msra.mxu0 0.0
    %2375 = vmatprep.subr.mxu0 0.0
    %2376 = vmatpush2.msra.mxu0 0.0
    %2377 = vmatprep.subr.mxu0 0.0
    %2378 = vmatpush2.msra.mxu0 0.0
    %2379 = vmatprep.subr.mxu0 0.0
    %2380 = vmatpush2.msra.mxu0 0.0
    %2381 = vmatprep.subr.mxu0 0.0
    %2382 = vmatpush2.msra.mxu0 0.0
    %2383 = vmatprep.subr.mxu0 0.0
    %2384 = vmatpush2.msra.mxu0 0.0
    %2385 = vmatprep.mubr.f32.mxu0 0.0
    %2386 = vmatmul.mubr.f32.gmra.mxu0 %v342
    %v2387 = vpop.f32.mrf.mxu0
    %v2388 = vadd.f32 %v2218, %v2387
    %v2389 = vpop.f32.mrf.mxu0
    %2390 = vmatprep.mubr.f32.mxu0 0.0
    %2391 = vmatmul.mubr.f32.gmra.mxu0 %v345
    %v2392 = vpop.f32.mrf.mxu0
    %v2393 = vadd.f32 %v2223, %v2392
    %v2394 = vpop.f32.mrf.mxu0
    %2395 = vmatprep.mubr.f32.mxu0 0.0
    %2396 = vmatmul.mubr.f32.gmra.mxu0 %v348
    %v2397 = vpop.f32.mrf.mxu0
    %v2398 = vadd.f32 %v2228, %v2397
    %v2399 = vpop.f32.mrf.mxu0
    %2400 = vmatprep.mubr.f32.mxu0 0.0
    %2401 = vmatmul.mubr.f32.gmra.mxu0 %v351
    %v2402 = vpop.f32.mrf.mxu0
    %v2403 = vadd.f32 %v2233, %v2402
    %v2404 = vpop.f32.mrf.mxu0
    %2405 = vdwg.mxu0
    %2406 = vmatprep.subr.mxu0 0.0
    %2407 = vmatpush1.msra.mxu0 0.0
    %2408 = vmatprep.subr.mxu0 0.0
    %2409 = vmatpush1.msra.mxu0 0.0
    %2410 = vmatprep.subr.mxu0 0.0
    %2411 = vmatpush1.msra.mxu0 0.0
    %2412 = vmatprep.subr.mxu0 0.0
    %2413 = vmatpush1.msra.mxu0 0.0
    %2414 = vmatprep.subr.mxu0 0.0
    %2415 = vmatpush1.msra.mxu0 0.0
    %2416 = vmatprep.subr.mxu0 0.0
    %2417 = vmatpush1.msra.mxu0 0.0
    %2418 = vmatprep.subr.mxu0 0.0
    %2419 = vmatpush1.msra.mxu0 0.0
    %2420 = vmatprep.subr.mxu0 0.0
    %2421 = vmatpush1.msra.mxu0 0.0
    %2422 = vmatprep.subr.mxu0 0.0
    %2423 = vmatpush1.msra.mxu0 0.0
    %2424 = vmatprep.subr.mxu0 0.0
    %2425 = vmatpush1.msra.mxu0 0.0
    %2426 = vmatprep.subr.mxu0 0.0
    %2427 = vmatpush1.msra.mxu0 0.0
    %2428 = vmatprep.subr.mxu0 0.0
    %2429 = vmatpush1.msra.mxu0 0.0
    %2430 = vmatprep.subr.mxu0 0.0
    %2431 = vmatpush1.msra.mxu0 %v2318
    %2432 = vmatprep.subr.mxu0 0.0
    %2433 = vmatpush1.msra.mxu0 %v2313
    %2434 = vmatprep.subr.mxu0 0.0
    %2435 = vmatpush1.msra.mxu0 %v2308
    %2436 = vmatprep.subr.mxu0 0.0
    %2437 = vmatpush1.msra.mxu0 %v2303
    %2438 = vmatprep.subr.mxu0 0.0
    %2439 = vmatpush2.msra.mxu0 0.0
    %2440 = vmatprep.subr.mxu0 0.0
    %2441 = vmatpush2.msra.mxu0 0.0
    %2442 = vmatprep.subr.mxu0 0.0
    %2443 = vmatpush2.msra.mxu0 0.0
    %2444 = vmatprep.subr.mxu0 0.0
    %2445 = vmatpush2.msra.mxu0 0.0
    %2446 = vmatprep.subr.mxu0 0.0
    %2447 = vmatpush2.msra.mxu0 0.0
    %2448 = vmatprep.subr.mxu0 0.0
    %2449 = vmatpush2.msra.mxu0 0.0
    %2450 = vmatprep.subr.mxu0 0.0
    %2451 = vmatpush2.msra.mxu0 0.0
    %2452 = vmatprep.subr.mxu0 0.0
    %2453 = vmatpush2.msra.mxu0 0.0
    %2454 = vmatprep.subr.mxu0 0.0
    %2455 = vmatpush2.msra.mxu0 0.0
    %2456 = vmatprep.subr.mxu0 0.0
    %2457 = vmatpush2.msra.mxu0 0.0
    %2458 = vmatprep.subr.mxu0 0.0
    %2459 = vmatpush2.msra.mxu0 0.0
    %2460 = vmatprep.subr.mxu0 0.0
    %2461 = vmatpush2.msra.mxu0 0.0
    %2462 = vmatprep.subr.mxu0 0.0
    %2463 = vmatpush2.msra.mxu0 0.0
    %2464 = vmatprep.subr.mxu0 0.0
    %2465 = vmatpush2.msra.mxu0 0.0
    %2466 = vmatprep.subr.mxu0 0.0
    %2467 = vmatpush2.msra.mxu0 0.0
    %2468 = vmatprep.subr.mxu0 0.0
    %2469 = vmatpush2.msra.mxu0 0.0
    %2470 = vmatprep.mubr.f32.mxu0 0.0
    %2471 = vmatmul.mubr.f32.gmra.mxu0 %v439
    %v2472 = vpop.f32.mrf.mxu0
    %v2473 = vadd.f32 0.0, %v2472
    %v2474 = vpop.f32.mrf.mxu0
    %2475 = vmatprep.mubr.f32.mxu0 0.0
    %2476 = vmatmul.mubr.f32.gmra.mxu0 %v442
    %v2477 = vpop.f32.mrf.mxu0
    %v2478 = vadd.f32 0.0, %v2477
    %v2479 = vpop.f32.mrf.mxu0
    %2480 = vmatprep.mubr.f32.mxu0 0.0
    %2481 = vmatmul.mubr.f32.gmra.mxu0 %v445
    %v2482 = vpop.f32.mrf.mxu0
    %v2483 = vadd.f32 0.0, %v2482
    %v2484 = vpop.f32.mrf.mxu0
    %2485 = vmatprep.mubr.f32.mxu0 0.0
    %2486 = vmatmul.mubr.f32.gmra.mxu0 %v448
    %v2487 = vpop.f32.mrf.mxu0
    %v2488 = vadd.f32 0.0, %v2487
    %v2489 = vpop.f32.mrf.mxu0
    %2490 = vdwg.mxu0
    %v2491 = vadd.f32 %v2388, %v2473
    %v2492 = vadd.f32 %v2393, %v2478
    %v2493 = vadd.f32 %v2398, %v2483
    %v2494 = vadd.f32 %v2403, %v2488
    %v2495 = vlaneseq
    %v2496 = vshrl.u32 %v2495, 7
    %v2497 = vsub.s32 0, %v2496
    %v2498 = vrot.slane %v2041, %v2497
    %v2499 = vadd.f32 %v2491, %v2498
    %v2500 = vadd.f32 %v2492, %v2498
    %v2501 = vadd.f32 %v2493, %v2498
    %v2502 = vadd.f32 %v2494, %v2498
    %v2503 = vmax.f32 %v2499, 0.0
    %v2504 = vmax.f32 %v2500, 0.0
    %v2505 = vmax.f32 %v2501, 0.0
    %v2506 = vmax.f32 %v2502, 0.0
    %v2507 = vld [vmem:[#allocation2 + $0x148] sm:$0x1]
    %v2508 = vld [vmem:[#allocation2 + $0x150] sm:$0xff]
    %v2509 = vld [vmem:[#allocation2 + $0x158] sm:$0xff]
    %v2510 = vld [vmem:[#allocation2 + $0x160] sm:$0xff]
    %v2511 = vld [vmem:[#allocation2 + $0x168] sm:$0xff]
    %v2512 = vld [vmem:[#allocation2 + $0x170] sm:$0xff]
    %v2513 = vld [vmem:[#allocation2 + $0x178] sm:$0xff]
    %v2515 = vsel %vm558, %v2503, 0
    %v2518 = vsel %vm558, %v2504, 0
    %v2521 = vsel %vm558, %v2505, 0
    %v2524 = vsel %vm558, %v2506, 0
    %2526 = vmatprep.subr.mxu0 0.0
    %2527 = vmatpush1.msra.mxu0 0.0
    %2528 = vmatprep.subr.mxu0 0.0
    %2529 = vmatpush1.msra.mxu0 0.0
    %2530 = vmatprep.subr.mxu0 0.0
    %2531 = vmatpush1.msra.mxu0 0.0
    %2532 = vmatprep.subr.mxu0 0.0
    %2533 = vmatpush1.msra.mxu0 0.0
    %2534 = vmatprep.subr.mxu0 0.0
    %2535 = vmatpush1.msra.mxu0 0.0
    %2536 = vmatprep.subr.mxu0 0.0
    %2537 = vmatpush1.msra.mxu0 0.0
    %2538 = vmatprep.subr.mxu0 0.0
    %2539 = vmatpush1.msra.mxu0 0.0
    %2540 = vmatprep.subr.mxu0 0.0
    %2541 = vmatpush1.msra.mxu0 0.0
    %2542 = vmatprep.subr.mxu0 0.0
    %2543 = vmatpush1.msra.mxu0 0.0
    %2544 = vmatprep.subr.mxu0 0.0
    %2545 = vmatpush1.msra.mxu0 0.0
    %2546 = vmatprep.subr.mxu0 0.0
    %2547 = vmatpush1.msra.mxu0 0.0
    %2548 = vmatprep.subr.mxu0 0.0
    %2549 = vmatpush1.msra.mxu0 0.0
    %2550 = vmatprep.subr.mxu0 0.0
    %2551 = vmatpush1.msra.mxu0 0.0
    %2552 = vmatprep.subr.mxu0 0.0
    %2553 = vmatpush1.msra.mxu0 0.0
    %2554 = vmatprep.subr.mxu0 0.0
    %2555 = vmatpush1.msra.mxu0 %v2509
    %2556 = vmatprep.subr.mxu0 0.0
    %2557 = vmatpush1.msra.mxu0 %v2508
    %2558 = vmatprep.subr.mxu0 0.0
    %2559 = vmatpush2.msra.mxu0 0.0
    %2560 = vmatprep.subr.mxu0 0.0
    %2561 = vmatpush2.msra.mxu0 0.0
    %2562 = vmatprep.subr.mxu0 0.0
    %2563 = vmatpush2.msra.mxu0 0.0
    %2564 = vmatprep.subr.mxu0 0.0
    %2565 = vmatpush2.msra.mxu0 0.0
    %2566 = vmatprep.subr.mxu0 0.0
    %2567 = vmatpush2.msra.mxu0 0.0
    %2568 = vmatprep.subr.mxu0 0.0
    %2569 = vmatpush2.msra.mxu0 0.0
    %2570 = vmatprep.subr.mxu0 0.0
    %2571 = vmatpush2.msra.mxu0 0.0
    %2572 = vmatprep.subr.mxu0 0.0
    %2573 = vmatpush2.msra.mxu0 0.0
    %2574 = vmatprep.subr.mxu0 0.0
    %2575 = vmatpush2.msra.mxu0 0.0
    %2576 = vmatprep.subr.mxu0 0.0
    %2577 = vmatpush2.msra.mxu0 0.0
    %2578 = vmatprep.subr.mxu0 0.0
    %2579 = vmatpush2.msra.mxu0 0.0
    %2580 = vmatprep.subr.mxu0 0.0
    %2581 = vmatpush2.msra.mxu0 0.0
    %2582 = vmatprep.subr.mxu0 0.0
    %2583 = vmatpush2.msra.mxu0 0.0
    %2584 = vmatprep.subr.mxu0 0.0
    %2585 = vmatpush2.msra.mxu0 0.0
    %2586 = vmatprep.subr.mxu0 0.0
    %2587 = vmatpush2.msra.mxu0 0.0
    %2588 = vmatprep.subr.mxu0 0.0
    %2589 = vmatpush2.msra.mxu0 0.0
    %2590 = vmatprep.mubr.f32.mxu0 0.0
    %2591 = vmatmul.mubr.f32.gmra.mxu0 %v2515
    %v2592 = vpop.f32.mrf.mxu0
    %v2593 = vadd.f32 0.0, %v2592
    %v2594 = vpop.f32.mrf.mxu0
    %2595 = vmatprep.mubr.f32.mxu0 0.0
    %2596 = vmatmul.mubr.f32.gmra.mxu0 %v2518
    %v2597 = vpop.f32.mrf.mxu0
    %v2598 = vadd.f32 0.0, %v2597
    %v2599 = vpop.f32.mrf.mxu0
    %2600 = vmatprep.mubr.f32.mxu0 0.0
    %2601 = vmatmul.mubr.f32.gmra.mxu0 %v2521
    %v2602 = vpop.f32.mrf.mxu0
    %v2603 = vadd.f32 0.0, %v2602
    %v2604 = vpop.f32.mrf.mxu0
    %2605 = vmatprep.mubr.f32.mxu0 0.0
    %2606 = vmatmul.mubr.f32.gmra.mxu0 %v2524
    %v2607 = vpop.f32.mrf.mxu0
    %v2608 = vadd.f32 0.0, %v2607
    %v2609 = vpop.f32.mrf.mxu0
    %2610 = vdwg.mxu0
    %2611 = vmatprep.subr.mxu0 0.0
    %2612 = vmatpush1.msra.mxu0 0.0
    %2613 = vmatprep.subr.mxu0 0.0
    %2614 = vmatpush1.msra.mxu0 0.0
    %2615 = vmatprep.subr.mxu0 0.0
    %2616 = vmatpush1.msra.mxu0 0.0
    %2617 = vmatprep.subr.mxu0 0.0
    %2618 = vmatpush1.msra.mxu0 0.0
    %2619 = vmatprep.subr.mxu0 0.0
    %2620 = vmatpush1.msra.mxu0 0.0
    %2621 = vmatprep.subr.mxu0 0.0
    %2622 = vmatpush1.msra.mxu0 0.0
    %2623 = vmatprep.subr.mxu0 0.0
    %2624 = vmatpush1.msra.mxu0 0.0
    %2625 = vmatprep.subr.mxu0 0.0
    %2626 = vmatpush1.msra.mxu0 0.0
    %2627 = vmatprep.subr.mxu0 0.0
    %2628 = vmatpush1.msra.mxu0 0.0
    %2629 = vmatprep.subr.mxu0 0.0
    %2630 = vmatpush1.msra.mxu0 0.0
    %2631 = vmatprep.subr.mxu0 0.0
    %2632 = vmatpush1.msra.mxu0 0.0
    %2633 = vmatprep.subr.mxu0 0.0
    %2634 = vmatpush1.msra.mxu0 0.0
    %2635 = vmatprep.subr.mxu0 0.0
    %2636 = vmatpush1.msra.mxu0 0.0
    %2637 = vmatprep.subr.mxu0 0.0
    %2638 = vmatpush1.msra.mxu0 0.0
    %2639 = vmatprep.subr.mxu0 0.0
    %2640 = vmatpush1.msra.mxu0 %v2511
    %2641 = vmatprep.subr.mxu0 0.0
    %2642 = vmatpush1.msra.mxu0 %v2510
    %2643 = vmatprep.subr.mxu0 0.0
    %2644 = vmatpush2.msra.mxu0 0.0
    %2645 = vmatprep.subr.mxu0 0.0
    %2646 = vmatpush2.msra.mxu0 0.0
    %2647 = vmatprep.subr.mxu0 0.0
    %2648 = vmatpush2.msra.mxu0 0.0
    %2649 = vmatprep.subr.mxu0 0.0
    %2650 = vmatpush2.msra.mxu0 0.0
    %2651 = vmatprep.subr.mxu0 0.0
    %2652 = vmatpush2.msra.mxu0 0.0
    %2653 = vmatprep.subr.mxu0 0.0
    %2654 = vmatpush2.msra.mxu0 0.0
    %2655 = vmatprep.subr.mxu0 0.0
    %2656 = vmatpush2.msra.mxu0 0.0
    %2657 = vmatprep.subr.mxu0 0.0
    %2658 = vmatpush2.msra.mxu0 0.0
    %2659 = vmatprep.subr.mxu0 0.0
    %2660 = vmatpush2.msra.mxu0 0.0
    %2661 = vmatprep.subr.mxu0 0.0
    %2662 = vmatpush2.msra.mxu0 0.0
    %2663 = vmatprep.subr.mxu0 0.0
    %2664 = vmatpush2.msra.mxu0 0.0
    %2665 = vmatprep.subr.mxu0 0.0
    %2666 = vmatpush2.msra.mxu0 0.0
    %2667 = vmatprep.subr.mxu0 0.0
    %2668 = vmatpush2.msra.mxu0 0.0
    %2669 = vmatprep.subr.mxu0 0.0
    %2670 = vmatpush2.msra.mxu0 0.0
    %2671 = vmatprep.subr.mxu0 0.0
    %2672 = vmatpush2.msra.mxu0 0.0
    %2673 = vmatprep.subr.mxu0 0.0
    %2674 = vmatpush2.msra.mxu0 0.0
    %2675 = vmatprep.mubr.f32.mxu0 0.0
    %2676 = vmatmul.mubr.f32.gmra.mxu0 %v2515
    %v2677 = vpop.f32.mrf.mxu0
    %v2678 = vadd.f32 0.0, %v2677
    %v2679 = vpop.f32.mrf.mxu0
    %2680 = vmatprep.mubr.f32.mxu0 0.0
    %2681 = vmatmul.mubr.f32.gmra.mxu0 %v2518
    %v2682 = vpop.f32.mrf.mxu0
    %v2683 = vadd.f32 0.0, %v2682
    %v2684 = vpop.f32.mrf.mxu0
    %2685 = vmatprep.mubr.f32.mxu0 0.0
    %2686 = vmatmul.mubr.f32.gmra.mxu0 %v2521
    %v2687 = vpop.f32.mrf.mxu0
    %v2688 = vadd.f32 0.0, %v2687
    %v2689 = vpop.f32.mrf.mxu0
    %2690 = vmatprep.mubr.f32.mxu0 0.0
    %2691 = vmatmul.mubr.f32.gmra.mxu0 %v2524
    %v2692 = vpop.f32.mrf.mxu0
    %v2693 = vadd.f32 0.0, %v2692
    %v2694 = vpop.f32.mrf.mxu0
    %2695 = vdwg.mxu0
    %2696 = vmatprep.subr.mxu0 0.0
    %2697 = vmatpush1.msra.mxu0 0.0
    %2698 = vmatprep.subr.mxu0 0.0
    %2699 = vmatpush1.msra.mxu0 0.0
    %2700 = vmatprep.subr.mxu0 0.0
    %2701 = vmatpush1.msra.mxu0 0.0
    %2702 = vmatprep.subr.mxu0 0.0
    %2703 = vmatpush1.msra.mxu0 0.0
    %2704 = vmatprep.subr.mxu0 0.0
    %2705 = vmatpush1.msra.mxu0 0.0
    %2706 = vmatprep.subr.mxu0 0.0
    %2707 = vmatpush1.msra.mxu0 0.0
    %2708 = vmatprep.subr.mxu0 0.0
    %2709 = vmatpush1.msra.mxu0 0.0
    %2710 = vmatprep.subr.mxu0 0.0
    %2711 = vmatpush1.msra.mxu0 0.0
    %2712 = vmatprep.subr.mxu0 0.0
    %2713 = vmatpush1.msra.mxu0 0.0
    %2714 = vmatprep.subr.mxu0 0.0
    %2715 = vmatpush1.msra.mxu0 0.0
    %2716 = vmatprep.subr.mxu0 0.0
    %2717 = vmatpush1.msra.mxu0 0.0
    %2718 = vmatprep.subr.mxu0 0.0
    %2719 = vmatpush1.msra.mxu0 0.0
    %2720 = vmatprep.subr.mxu0 0.0
    %2721 = vmatpush1.msra.mxu0 0.0
    %2722 = vmatprep.subr.mxu0 0.0
    %2723 = vmatpush1.msra.mxu0 0.0
    %2724 = vmatprep.subr.mxu0 0.0
    %2725 = vmatpush1.msra.mxu0 %v2513
    %2726 = vmatprep.subr.mxu0 0.0
    %2727 = vmatpush1.msra.mxu0 %v2512
    %2728 = vmatprep.subr.mxu0 0.0
    %2729 = vmatpush2.msra.mxu0 0.0
    %2730 = vmatprep.subr.mxu0 0.0
    %2731 = vmatpush2.msra.mxu0 0.0
    %2732 = vmatprep.subr.mxu0 0.0
    %2733 = vmatpush2.msra.mxu0 0.0
    %2734 = vmatprep.subr.mxu0 0.0
    %2735 = vmatpush2.msra.mxu0 0.0
    %2736 = vmatprep.subr.mxu0 0.0
    %2737 = vmatpush2.msra.mxu0 0.0
    %2738 = vmatprep.subr.mxu0 0.0
    %2739 = vmatpush2.msra.mxu0 0.0
    %2740 = vmatprep.subr.mxu0 0.0
    %2741 = vmatpush2.msra.mxu0 0.0
    %2742 = vmatprep.subr.mxu0 0.0
    %2743 = vmatpush2.msra.mxu0 0.0
    %2744 = vmatprep.subr.mxu0 0.0
    %2745 = vmatpush2.msra.mxu0 0.0
    %2746 = vmatprep.subr.mxu0 0.0
    %2747 = vmatpush2.msra.mxu0 0.0
    %2748 = vmatprep.subr.mxu0 0.0
    %2749 = vmatpush2.msra.mxu0 0.0
    %2750 = vmatprep.subr.mxu0 0.0
    %2751 = vmatpush2.msra.mxu0 0.0
    %2752 = vmatprep.subr.mxu0 0.0
    %2753 = vmatpush2.msra.mxu0 0.0
    %2754 = vmatprep.subr.mxu0 0.0
    %2755 = vmatpush2.msra.mxu0 0.0
    %2756 = vmatprep.subr.mxu0 0.0
    %2757 = vmatpush2.msra.mxu0 0.0
    %2758 = vmatprep.subr.mxu0 0.0
    %2759 = vmatpush2.msra.mxu0 0.0
    %2760 = vmatprep.mubr.f32.mxu0 0.0
    %2761 = vmatmul.mubr.f32.gmra.mxu0 %v2515
    %v2762 = vpop.f32.mrf.mxu0
    %v2763 = vadd.f32 0.0, %v2762
    %v2764 = vpop.f32.mrf.mxu0
    %2765 = vmatprep.mubr.f32.mxu0 0.0
    %2766 = vmatmul.mubr.f32.gmra.mxu0 %v2518
    %v2767 = vpop.f32.mrf.mxu0
    %v2768 = vadd.f32 0.0, %v2767
    %v2769 = vpop.f32.mrf.mxu0
    %2770 = vmatprep.mubr.f32.mxu0 0.0
    %2771 = vmatmul.mubr.f32.gmra.mxu0 %v2521
    %v2772 = vpop.f32.mrf.mxu0
    %v2773 = vadd.f32 0.0, %v2772
    %v2774 = vpop.f32.mrf.mxu0
    %2775 = vmatprep.mubr.f32.mxu0 0.0
    %2776 = vmatmul.mubr.f32.gmra.mxu0 %v2524
    %v2777 = vpop.f32.mrf.mxu0
    %v2778 = vadd.f32 0.0, %v2777
    %v2779 = vpop.f32.mrf.mxu0
    %2780 = vdwg.mxu0
    %2781 = vmatprep.subr.mxu0 0.0
    %2782 = vmatpush1.msra.mxu0 0.0
    %2783 = vmatprep.subr.mxu0 0.0
    %2784 = vmatpush1.msra.mxu0 0.0
    %2785 = vmatprep.subr.mxu0 0.0
    %2786 = vmatpush1.msra.mxu0 0.0
    %2787 = vmatprep.subr.mxu0 0.0
    %2788 = vmatpush1.msra.mxu0 0.0
    %2789 = vmatprep.subr.mxu0 0.0
    %2790 = vmatpush1.msra.mxu0 0.0
    %2791 = vmatprep.subr.mxu0 0.0
    %2792 = vmatpush1.msra.mxu0 0.0
    %2793 = vmatprep.subr.mxu0 0.0
    %2794 = vmatpush1.msra.mxu0 0.0
    %2795 = vmatprep.subr.mxu0 0.0
    %2796 = vmatpush1.msra.mxu0 0.0
    %2797 = vmatprep.subr.mxu0 0.0
    %2798 = vmatpush1.msra.mxu0 0.0
    %2799 = vmatprep.subr.mxu0 0.0
    %2800 = vmatpush1.msra.mxu0 0.0
    %2801 = vmatprep.subr.mxu0 0.0
    %2802 = vmatpush1.msra.mxu0 0.0
    %2803 = vmatprep.subr.mxu0 0.0
    %2804 = vmatpush1.msra.mxu0 0.0
    %2805 = vmatprep.subr.mxu0 0.0
    %2806 = vmatpush1.msra.mxu0 %v2608
    %2807 = vmatprep.subr.mxu0 0.0
    %2808 = vmatpush1.msra.mxu0 %v2603
    %2809 = vmatprep.subr.mxu0 0.0
    %2810 = vmatpush1.msra.mxu0 %v2598
    %2811 = vmatprep.subr.mxu0 0.0
    %2812 = vmatpush1.msra.mxu0 %v2593
    %2813 = vmatprep.subr.mxu0 0.0
    %2814 = vmatpush2.msra.mxu0 0.0
    %2815 = vmatprep.subr.mxu0 0.0
    %2816 = vmatpush2.msra.mxu0 0.0
    %2817 = vmatprep.subr.mxu0 0.0
    %2818 = vmatpush2.msra.mxu0 0.0
    %2819 = vmatprep.subr.mxu0 0.0
    %2820 = vmatpush2.msra.mxu0 0.0
    %2821 = vmatprep.subr.mxu0 0.0
    %2822 = vmatpush2.msra.mxu0 0.0
    %2823 = vmatprep.subr.mxu0 0.0
    %2824 = vmatpush2.msra.mxu0 0.0
    %2825 = vmatprep.subr.mxu0 0.0
    %2826 = vmatpush2.msra.mxu0 0.0
    %2827 = vmatprep.subr.mxu0 0.0
    %2828 = vmatpush2.msra.mxu0 0.0
    %2829 = vmatprep.subr.mxu0 0.0
    %2830 = vmatpush2.msra.mxu0 0.0
    %2831 = vmatprep.subr.mxu0 0.0
    %2832 = vmatpush2.msra.mxu0 0.0
    %2833 = vmatprep.subr.mxu0 0.0
    %2834 = vmatpush2.msra.mxu0 0.0
    %2835 = vmatprep.subr.mxu0 0.0
    %2836 = vmatpush2.msra.mxu0 0.0
    %2837 = vmatprep.subr.mxu0 0.0
    %2838 = vmatpush2.msra.mxu0 0.0
    %2839 = vmatprep.subr.mxu0 0.0
    %2840 = vmatpush2.msra.mxu0 0.0
    %2841 = vmatprep.subr.mxu0 0.0
    %2842 = vmatpush2.msra.mxu0 0.0
    %2843 = vmatprep.subr.mxu0 0.0
    %2844 = vmatpush2.msra.mxu0 0.0
    %2845 = vmatprep.mubr.f32.mxu0 0.0
    %2846 = vmatmul.mubr.f32.gmra.mxu0 %v342
    %v2847 = vpop.f32.mrf.mxu0
    %v2848 = vadd.f32 %v2678, %v2847
    %v2849 = vpop.f32.mrf.mxu0
    %2850 = vmatprep.mubr.f32.mxu0 0.0
    %2851 = vmatmul.mubr.f32.gmra.mxu0 %v345
    %v2852 = vpop.f32.mrf.mxu0
    %v2853 = vadd.f32 %v2683, %v2852
    %v2854 = vpop.f32.mrf.mxu0
    %2855 = vmatprep.mubr.f32.mxu0 0.0
    %2856 = vmatmul.mubr.f32.gmra.mxu0 %v348
    %v2857 = vpop.f32.mrf.mxu0
    %v2858 = vadd.f32 %v2688, %v2857
    %v2859 = vpop.f32.mrf.mxu0
    %2860 = vmatprep.mubr.f32.mxu0 0.0
    %2861 = vmatmul.mubr.f32.gmra.mxu0 %v351
    %v2862 = vpop.f32.mrf.mxu0
    %v2863 = vadd.f32 %v2693, %v2862
    %v2864 = vpop.f32.mrf.mxu0
    %2865 = vdwg.mxu0
    %2866 = vmatprep.subr.mxu0 0.0
    %2867 = vmatpush1.msra.mxu0 0.0
    %2868 = vmatprep.subr.mxu0 0.0
    %2869 = vmatpush1.msra.mxu0 0.0
    %2870 = vmatprep.subr.mxu0 0.0
    %2871 = vmatpush1.msra.mxu0 0.0
    %2872 = vmatprep.subr.mxu0 0.0
    %2873 = vmatpush1.msra.mxu0 0.0
    %2874 = vmatprep.subr.mxu0 0.0
    %2875 = vmatpush1.msra.mxu0 0.0
    %2876 = vmatprep.subr.mxu0 0.0
    %2877 = vmatpush1.msra.mxu0 0.0
    %2878 = vmatprep.subr.mxu0 0.0
    %2879 = vmatpush1.msra.mxu0 0.0
    %2880 = vmatprep.subr.mxu0 0.0
    %2881 = vmatpush1.msra.mxu0 0.0
    %2882 = vmatprep.subr.mxu0 0.0
    %2883 = vmatpush1.msra.mxu0 0.0
    %2884 = vmatprep.subr.mxu0 0.0
    %2885 = vmatpush1.msra.mxu0 0.0
    %2886 = vmatprep.subr.mxu0 0.0
    %2887 = vmatpush1.msra.mxu0 0.0
    %2888 = vmatprep.subr.mxu0 0.0
    %2889 = vmatpush1.msra.mxu0 0.0
    %2890 = vmatprep.subr.mxu0 0.0
    %2891 = vmatpush1.msra.mxu0 %v2778
    %2892 = vmatprep.subr.mxu0 0.0
    %2893 = vmatpush1.msra.mxu0 %v2773
    %2894 = vmatprep.subr.mxu0 0.0
    %2895 = vmatpush1.msra.mxu0 %v2768
    %2896 = vmatprep.subr.mxu0 0.0
    %2897 = vmatpush1.msra.mxu0 %v2763
    %2898 = vmatprep.subr.mxu0 0.0
    %2899 = vmatpush2.msra.mxu0 0.0
    %2900 = vmatprep.subr.mxu0 0.0
    %2901 = vmatpush2.msra.mxu0 0.0
    %2902 = vmatprep.subr.mxu0 0.0
    %2903 = vmatpush2.msra.mxu0 0.0
    %2904 = vmatprep.subr.mxu0 0.0
    %2905 = vmatpush2.msra.mxu0 0.0
    %2906 = vmatprep.subr.mxu0 0.0
    %2907 = vmatpush2.msra.mxu0 0.0
    %2908 = vmatprep.subr.mxu0 0.0
    %2909 = vmatpush2.msra.mxu0 0.0
    %2910 = vmatprep.subr.mxu0 0.0
    %2911 = vmatpush2.msra.mxu0 0.0
    %2912 = vmatprep.subr.mxu0 0.0
    %2913 = vmatpush2.msra.mxu0 0.0
    %2914 = vmatprep.subr.mxu0 0.0
    %2915 = vmatpush2.msra.mxu0 0.0
    %2916 = vmatprep.subr.mxu0 0.0
    %2917 = vmatpush2.msra.mxu0 0.0
    %2918 = vmatprep.subr.mxu0 0.0
    %2919 = vmatpush2.msra.mxu0 0.0
    %2920 = vmatprep.subr.mxu0 0.0
    %2921 = vmatpush2.msra.mxu0 0.0
    %2922 = vmatprep.subr.mxu0 0.0
    %2923 = vmatpush2.msra.mxu0 0.0
    %2924 = vmatprep.subr.mxu0 0.0
    %2925 = vmatpush2.msra.mxu0 0.0
    %2926 = vmatprep.subr.mxu0 0.0
    %2927 = vmatpush2.msra.mxu0 0.0
    %2928 = vmatprep.subr.mxu0 0.0
    %2929 = vmatpush2.msra.mxu0 0.0
    %2930 = vmatprep.mubr.f32.mxu0 0.0
    %2931 = vmatmul.mubr.f32.gmra.mxu0 %v439
    %v2932 = vpop.f32.mrf.mxu0
    %v2933 = vadd.f32 0.0, %v2932
    %v2934 = vpop.f32.mrf.mxu0
    %2935 = vmatprep.mubr.f32.mxu0 0.0
    %2936 = vmatmul.mubr.f32.gmra.mxu0 %v442
    %v2937 = vpop.f32.mrf.mxu0
    %v2938 = vadd.f32 0.0, %v2937
    %v2939 = vpop.f32.mrf.mxu0
    %2940 = vmatprep.mubr.f32.mxu0 0.0
    %2941 = vmatmul.mubr.f32.gmra.mxu0 %v445
    %v2942 = vpop.f32.mrf.mxu0
    %v2943 = vadd.f32 0.0, %v2942
    %v2944 = vpop.f32.mrf.mxu0
    %2945 = vmatprep.mubr.f32.mxu0 0.0
    %2946 = vmatmul.mubr.f32.gmra.mxu0 %v448
    %v2947 = vpop.f32.mrf.mxu0
    %v2948 = vadd.f32 0.0, %v2947
    %v2949 = vpop.f32.mrf.mxu0
    %2950 = vdwg.mxu0
    %v2951 = vadd.f32 %v2848, %v2933
    %v2952 = vadd.f32 %v2853, %v2938
    %v2953 = vadd.f32 %v2858, %v2943
    %v2954 = vadd.f32 %v2863, %v2948
    %v2955 = vlaneseq
    %v2956 = vshrl.u32 %v2955, 7
    %v2957 = vsub.s32 0, %v2956
    %v2958 = vrot.slane %v2507, %v2957
    %v2959 = vadd.f32 %v2951, %v2958
    %v2960 = vadd.f32 %v2952, %v2958
    %v2961 = vadd.f32 %v2953, %v2958
    %v2962 = vadd.f32 %v2954, %v2958
    %2963 = vst.msk [vmem:[%s3] sm:$0xff] %vm62, %v2959
    %2964 = vst.msk [vmem:[%s3 + $0x8] sm:$0xff] %vm62, %v2960
    %2965 = vst.msk [vmem:[%s3 + $0x10] sm:$0xff] %vm62, %v2961
    %2966 = vst.msk [vmem:[%s3 + $0x18] sm:$0xff] %vm62, %v2962
    // Predicated region
    $region22: #{forward.1} parent=1 // pred_check
      _
    $region23: #{forward.1} parent=1 // pred_check_branch
      %2968 = sbr.rel (0) target = $region25
    $region24: #{forward.1} parent=1 // pred_region
      _
    $region25: #{forward.1} parent=1 // pred_fallthru
      _
    // Predicated region
    $region26: #{forward.1} parent=1 // pred_check
      _
    $region27: #{forward.1} parent=1 // pred_check_branch
      %2970 = sbr.rel (0) target = $region29
    $region28: #{forward.1} parent=1 // pred_region
      _
    $region29: #{forward.1} parent=1 // pred_fallthru
      _
    %2971 = vsyncpa [#allocation3], 1
    %2972 = vsyncpa [#allocation5], 1

</llo_original>
